<compile_context>
chip_gen: v6e
topology: v6e:2x2x1
jax: 0.10.0
libtpu: 0.0.40
codegen_flags: <defaults>
</compile_context>

<pallas_src>
import jax
import jax.numpy as jnp
from jax import lax
from jax.experimental import pallas as pl
from jax.experimental.pallas import tpu as pltpu

jax.config.update("jax_default_matmul_precision", "highest")

HIDDEN = 32      # hidden_size
VOCAB = 64       # output_size
SEQ = 8          # number of encoder outputs


# ---------------------------------------------------------------------------
# Kernel: whole decode (T steps) in one invocation.  Everything VMEM-resident.
# ---------------------------------------------------------------------------
def _decode_kernel(
    gi_emb_ref,   # VMEM (T, 3H)  emb[token] @ W_ih_emb^T + b_ih (precomputed)
    ctx0_ref,     # VMEM (1, H)   initial context
    hid0_ref,     # VMEM (1, H)   initial hidden
    enc_ref,      # VMEM (S, H)   encoder outputs
    eprojT_ref,   # VMEM (H, S)   (W_a enc + b_a)^T, pre-transposed
    wih_ctx_ref,  # VMEM (H, 3H)  context half of GRU input weights (gates r|z|n)
    whh_ref,      # VMEM (H, 3H)  GRU hidden weights
    bh_ref,       # VMEM (1, 3H)
    wout_h_ref,   # VMEM (H, V)   output Linear, rnn_output half
    wout_c_ref,   # VMEM (H, V)   output Linear, context half
    bout_ref,     # VMEM (1, V)
    out_ref,      # VMEM (T, V)   log_softmax outputs
    ctxs_ref,     # VMEM (T, H)   contexts
    hids_ref,     # VMEM (T, H)   hidden states (== rnn_output)
    attns_ref,    # VMEM (T, S)   attention weights
):
    T = gi_emb_ref.shape[0]
    H = whh_ref.shape[0]

    def step(t, carry):
        h, ctx = carry

        # ---- GRU cell (PyTorch gate order r, z, n) ----
        # gi = [emb, ctx] @ W_ih^T + b_ih ; emb half precomputed outside.
        gi = gi_emb_ref[pl.ds(t, 1), :] + jnp.dot(
            ctx, wih_ctx_ref[...], preferred_element_type=jnp.float32)
        gh = jnp.dot(h, whh_ref[...],
                     preferred_element_type=jnp.float32) + bh_ref[...]
        rz = jax.nn.sigmoid(gi[:, :2 * H] + gh[:, :2 * H])      # fused r/z
        r = rz[:, :H]
        z = rz[:, H:]
        n = jnp.tanh(gi[:, 2 * H:] + r * gh[:, 2 * H:])
        h_new = (1.0 - z) * n + z * h                            # (1, H)

        # ---- Attention ('general') against pre-projected, pre-transposed enc ----
        scores = jnp.dot(h_new, eprojT_ref[...],
                         preferred_element_type=jnp.float32)    # (1, S)
        m = jnp.max(scores, axis=1, keepdims=True)
        p = jnp.exp(scores - m)
        attn = p / jnp.sum(p, axis=1, keepdims=True)             # (1, S)
        new_ctx = jnp.dot(attn, enc_ref[...],
                          preferred_element_type=jnp.float32)    # (1, H)

        hids_ref[pl.ds(t, 1), :] = h_new
        ctxs_ref[pl.ds(t, 1), :] = new_ctx
        attns_ref[pl.ds(t, 1), :] = attn
        return h_new, new_ctx

    lax.fori_loop(0, T, step, (hid0_ref[...], ctx0_ref[...]), unroll=True)

    # ---- Batched output head (off the recurrence): one M=T matmul pair ----
    hids = hids_ref[...]                                         # (T, H)
    ctxs = ctxs_ref[...]                                         # (T, H)
    logits = (jnp.dot(hids, wout_h_ref[...], preferred_element_type=jnp.float32)
              + jnp.dot(ctxs, wout_c_ref[...], preferred_element_type=jnp.float32)
              + bout_ref[...])                                   # (T, V)
    lmax = jnp.max(logits, axis=1, keepdims=True)
    shifted = logits - lmax
    lse = jnp.log(jnp.sum(jnp.exp(shifted), axis=1, keepdims=True))
    out_ref[...] = shifted - lse


# ---------------------------------------------------------------------------
# Parameters (PyTorch-convention "raw" params + one-time packing).
# ---------------------------------------------------------------------------
def init_params(key, hidden_size=HIDDEN, output_size=VOCAB):
    """Deterministic synthetic parameters matching the PyTorch module's shapes."""
    H, V = hidden_size, output_size
    ks = jax.random.split(key, 9)

    def u(k, shape, scale):
        return jax.random.uniform(k, shape, jnp.float32, -scale, scale)

    s_h = float(1.0 / jnp.sqrt(H))
    s_o = float(1.0 / jnp.sqrt(2 * H))
    return {
        "embedding": u(ks[0], (V, H), 0.1),       # nn.Embedding(V, H)
        "w_ih": u(ks[1], (3 * H, 2 * H), s_h),    # GRU weight_ih_l0
        "w_hh": u(ks[2], (3 * H, H), s_h),        # GRU weight_hh_l0
        "b_ih": u(ks[3], (3 * H,), s_h),
        "b_hh": u(ks[4], (3 * H,), s_h),
        "w_a": u(ks[5], (H, H), s_h),             # Attention Linear(H, H)
        "b_a": u(ks[6], (H,), s_h),
        "w_out": u(ks[7], (V, 2 * H), s_o),       # nn.Linear(2H, V)
        "b_out": u(ks[8], (V,), s_o),
    }


def pack_params(raw):
    """One-time re-layout of PyTorch weights into kernel layout (outside jit).

    GRU input weight / output weight are split into their (emb|ctx) / (h|ctx)
    halves so the kernel never concatenates activations.
    """
    H = int(raw["w_hh"].shape[1])
    w_ih_t = jnp.asarray(raw["w_ih"]).T            # (2H, 3H)
    w_out_t = jnp.asarray(raw["w_out"]).T          # (2H, V)
    return {
        "embedding": jnp.asarray(raw["embedding"]),    # (V, H)
        "w_ih_emb_t": w_ih_t[:H, :],                   # (H, 3H) acts on embedding
        "w_ih_ctx_t": w_ih_t[H:, :],                   # (H, 3H) acts on context
        "w_hh_t": jnp.asarray(raw["w_hh"]).T,          # (H, 3H)
        "b_ih": jnp.asarray(raw["b_ih"])[None, :],     # (1, 3H)
        "b_hh": jnp.asarray(raw["b_hh"])[None, :],     # (1, 3H)
        "w_a_t": jnp.asarray(raw["w_a"]).T,            # (H, H)
        "b_a": jnp.asarray(raw["b_a"])[None, :],       # (1, H)
        "w_out_h_t": w_out_t[:H, :],                   # (H, V) acts on rnn_output
        "w_out_ctx_t": w_out_t[H:, :],                 # (H, V) acts on context
        "b_out": jnp.asarray(raw["b_out"])[None, :],   # (1, V)
    }


# ---------------------------------------------------------------------------
# Pallas wrappers.
# ---------------------------------------------------------------------------
def _vmem_spec():
    return pl.BlockSpec(memory_space=pltpu.MemorySpace.VMEM)


@jax.jit
def attention_decoder_decode(packed, token_ids, last_context, last_hidden,
                             encoder_outputs):
    """Teacher-forced multi-step decode fused into ONE kernel invocation.

    token_ids: (T,) int32; last_context: (1, H); last_hidden: (1, 1, H);
    encoder_outputs: (S, 1, H).
    Returns per-step (outputs (T,V), contexts (T,H), hiddens (T,H), attn (T,S)).
    """
    enc = encoder_outputs[:, 0, :]                             # (S, H)
    # Hoisted, loop-invariant glue (computed once per decode):
    e_proj_t = (enc @ packed["w_a_t"] + packed["b_a"]).T       # (H, S)
    gi_emb = (packed["embedding"][token_ids.astype(jnp.int32)]
              @ packed["w_ih_emb_t"] + packed["b_ih"])         # (T, 3H)
    hid0 = last_hidden[0]                                      # (1, H)

    T = token_ids.shape[0]
    S, H = enc.shape
    V = packed["b_out"].shape[1]

    out_shapes = (
        jax.ShapeDtypeStruct((T, V), jnp.float32),
        jax.ShapeDtypeStruct((T, H), jnp.float32),
        jax.ShapeDtypeStruct((T, H), jnp.float32),
        jax.ShapeDtypeStruct((T, S), jnp.float32),
    )
    return pl.pallas_call(
        _decode_kernel,
        out_shape=out_shapes,
        in_specs=[_vmem_spec() for _ in range(11)],
        out_specs=tuple(_vmem_spec() for _ in range(4)),
    )(gi_emb, last_context, hid0, enc, e_proj_t,
      packed["w_ih_ctx_t"], packed["w_hh_t"], packed["b_hh"],
      packed["w_out_h_t"], packed["w_out_ctx_t"], packed["b_out"])


@jax.jit
def attention_decoder_step(packed, word_input, last_context, last_hidden,
                           encoder_outputs):
    """Single decode step == the PyTorch module forward (T=1 case of decode).

    Returns (output (1,V), context (1,H), hidden (1,1,H), attn_weights (1,1,S)).
    """
    token_ids = jnp.reshape(word_input, (1,)).astype(jnp.int32)
    out, ctx, hid, attn = attention_decoder_decode(
        packed, token_ids, last_context, last_hidden, encoder_outputs)
    return out, ctx, hid[:, None, :], attn[:, None, :]


# ---------------------------------------------------------------------------
# Pure-JAX references (mirror the PyTorch forward).
# ---------------------------------------------------------------------------
def _reference_step(raw, word_input, last_context, last_hidden, encoder_outputs):
    H = HIDDEN
    emb = raw["embedding"][word_input][None, :]
    x = jnp.concatenate([emb, last_context], axis=1)            # (1, 2H)
    h = last_hidden[0]
    gi = x @ raw["w_ih"].T + raw["b_ih"]
    gh = h @ raw["w_hh"].T + raw["b_hh"]
    r = jax.nn.sigmoid(gi[:, 0:H] + gh[:, 0:H])
    z = jax.nn.sigmoid(gi[:, H:2 * H] + gh[:, H:2 * H])
    n = jnp.tanh(gi[:, 2 * H:] + r * gh[:, 2 * H:])
    h_new = (1.0 - z) * n + z * h
    enc = encoder_outputs[:, 0, :]
    e = enc @ raw["w_a"].T + raw["b_a"]                         # (S, H)
    scores = h_new @ e.T                                        # (1, S)
    attn = jax.nn.softmax(scores, axis=1)
    ctx = attn @ enc                                            # (1, H)
    logits = jnp.concatenate([h_new, ctx], 1) @ raw["w_out"].T + raw["b_out"]
    out = jax.nn.log_softmax(logits, axis=1)
    return out, ctx, h_new[None, :, :], attn[None, :, :]


def _reference_decode(raw, token_ids, last_context, last_hidden, encoder_outputs):
    outs, ctxs, hids, attns = [], [], [], []
    ctx, hid = last_context, last_hidden
    for t in range(int(token_ids.shape[0])):
        out, ctx, hid, attn = _reference_step(raw, token_ids[t], ctx, hid,
                                              encoder_outputs)
        outs.append(out); ctxs.append(ctx)
        hids.append(hid[0]); attns.append(attn[0])
    return (jnp.concatenate(outs, 0), jnp.concatenate(ctxs, 0),
            jnp.concatenate(hids, 0), jnp.concatenate(attns, 0))


# ---------------------------------------------------------------------------
if __name__ == "__main__":
    key = jax.random.PRNGKey(0)
    pkey, k1, k2, k3, k4 = jax.random.split(key, 5)
    raw = init_params(pkey, HIDDEN, VOCAB)
    packed = pack_params(raw)   # one-time weight packing (outside jit)

    word_input = jnp.array(5, dtype=jnp.int32)
    last_context = jax.random.normal(k1, (1, HIDDEN), jnp.float32)
    last_hidden = jax.random.normal(k2, (1, 1, HIDDEN), jnp.float32)
    encoder_outputs = jax.random.normal(k3, (SEQ, 1, HIDDEN), jnp.float32)

    # --- single step (exactly the module forward) ---
    outs = attention_decoder_step(packed, word_input, last_context,
                                  last_hidden, encoder_outputs)
    outs = jax.block_until_ready(outs)
    refs = _reference_step(raw, word_input, last_context, last_hidden,
                           encoder_outputs)
    for got, ref in zip(outs, refs):
        assert got.shape == ref.shape, (got.shape, ref.shape)
        assert jnp.allclose(got, ref, rtol=1e-4, atol=1e-4), (
            float(jnp.max(jnp.abs(got - ref))))

    # --- fused multi-step decode (amortizes launch + weight residency) ---
    token_ids = jax.random.randint(k4, (4,), 0, VOCAB, dtype=jnp.int32)
    d_outs = attention_decoder_decode(packed, token_ids, last_context,
                                      last_hidden, encoder_outputs)
    d_outs = jax.block_until_ready(d_outs)
    d_refs = _reference_decode(raw, token_ids, last_context, last_hidden,
                               encoder_outputs)
    for got, ref in zip(d_outs, d_refs):
        assert got.shape == ref.shape, (got.shape, ref.shape)
        assert jnp.allclose(got, ref, rtol=1e-4, atol=1e-4), (
            float(jnp.max(jnp.abs(got - ref))))

    # TODO(synk): for v7x, batching >=2 independent decode sequences (leading
    # 'parallel' grid axis) would engage the second TensorCore; the reference
    # module is strictly single-sequence so it is not modeled here.
    print("KERNEL_OK")
</pallas_src>

<mosaic_0001>
module attributes {stable_mosaic.version = 11 : i64} {
  func.func @_decode_kernel(%arg0: memref<1x96xf32, #tpu.memory_space<vmem>>, %arg1: memref<1x32xf32, #tpu.memory_space<vmem>>, %arg2: memref<1x32xf32, #tpu.memory_space<vmem>>, %arg3: memref<8x32xf32, #tpu.memory_space<vmem>>, %arg4: memref<32x8xf32, #tpu.memory_space<vmem>>, %arg5: memref<32x96xf32, #tpu.memory_space<vmem>>, %arg6: memref<32x96xf32, #tpu.memory_space<vmem>>, %arg7: memref<1x96xf32, #tpu.memory_space<vmem>>, %arg8: memref<32x64xf32, #tpu.memory_space<vmem>>, %arg9: memref<32x64xf32, #tpu.memory_space<vmem>>, %arg10: memref<1x64xf32, #tpu.memory_space<vmem>>, %arg11: memref<1x64xf32, #tpu.memory_space<vmem>>, %arg12: memref<1x32xf32, #tpu.memory_space<vmem>>, %arg13: memref<1x32xf32, #tpu.memory_space<vmem>>, %arg14: memref<1x8xf32, #tpu.memory_space<vmem>>) attributes {dimension_semantics = [], scalar_prefetch = 0 : i64, scratch_operands = 0 : i64, tpu.core_type = #tpu.core_type<tc>} {
    %c0 = arith.constant 0 : index
    %c0_0 = arith.constant 0 : index
    %0 = vector.load %arg2[%c0, %c0_0] : memref<1x32xf32, #tpu.memory_space<vmem>>, vector<1x32xf32>
    %c0_1 = arith.constant 0 : index
    %c0_2 = arith.constant 0 : index
    %1 = vector.load %arg1[%c0_1, %c0_2] : memref<1x32xf32, #tpu.memory_space<vmem>>, vector<1x32xf32>
    %c0_i32 = arith.constant 0 : i32
    %2 = arith.index_cast %c0_i32 : i32 to index
    %c0_3 = arith.constant 0 : index
    %3 = vector.load %arg0[%2, %c0_3] : memref<1x96xf32, #tpu.memory_space<vmem>>, vector<1x96xf32>
    %c0_4 = arith.constant 0 : index
    %c0_5 = arith.constant 0 : index
    %4 = vector.load %arg5[%c0_4, %c0_5] : memref<32x96xf32, #tpu.memory_space<vmem>>, vector<32x96xf32>
    %cst = arith.constant dense<0.000000e+00> : vector<1x96xf32>
    %5 = tpu.matmul %1, %4, %cst {dimension_numbers = #tpu.dot_dimension_numbers<[1], [0], [0], [1], [0, 0, 1, 1], [], []>, precision = #tpu.contract_precision<fp32>} : vector<1x32xf32>, vector<32x96xf32>, vector<1x96xf32> -> vector<1x96xf32>
    %6 = arith.addf %3, %5 : vector<1x96xf32>
    %c0_6 = arith.constant 0 : index
    %c0_7 = arith.constant 0 : index
    %7 = vector.load %arg6[%c0_6, %c0_7] : memref<32x96xf32, #tpu.memory_space<vmem>>, vector<32x96xf32>
    %cst_8 = arith.constant dense<0.000000e+00> : vector<1x96xf32>
    %8 = tpu.matmul %0, %7, %cst_8 {dimension_numbers = #tpu.dot_dimension_numbers<[1], [0], [0], [1], [0, 0, 1, 1], [], []>, precision = #tpu.contract_precision<fp32>} : vector<1x32xf32>, vector<32x96xf32>, vector<1x96xf32> -> vector<1x96xf32>
    %c0_9 = arith.constant 0 : index
    %c0_10 = arith.constant 0 : index
    %9 = vector.load %arg7[%c0_9, %c0_10] : memref<1x96xf32, #tpu.memory_space<vmem>>, vector<1x96xf32>
    %10 = arith.addf %8, %9 : vector<1x96xf32>
    %11 = vector.extract_strided_slice %6 {offsets = [0, 0], sizes = [1, 64], strides = [1, 1]} : vector<1x96xf32> to vector<1x64xf32>
    %12 = vector.extract_strided_slice %10 {offsets = [0, 0], sizes = [1, 64], strides = [1, 1]} : vector<1x96xf32> to vector<1x64xf32>
    %13 = arith.addf %11, %12 : vector<1x64xf32>
    %14 = arith.negf %13 : vector<1x64xf32>
    %15 = math.exp %14 : vector<1x64xf32>
    %cst_11 = arith.constant 1.000000e+00 : f32
    %16 = vector.broadcast %cst_11 : f32 to vector<1x64xf32>
    %17 = arith.addf %16, %15 : vector<1x64xf32>
    %18 = arith.divf %16, %17 : vector<1x64xf32>
    %19 = vector.extract_strided_slice %18 {offsets = [0, 0], sizes = [1, 32], strides = [1, 1]} : vector<1x64xf32> to vector<1x32xf32>
    %20 = vector.extract_strided_slice %18 {offsets = [0, 32], sizes = [1, 32], strides = [1, 1]} : vector<1x64xf32> to vector<1x32xf32>
    %21 = vector.extract_strided_slice %6 {offsets = [0, 64], sizes = [1, 32], strides = [1, 1]} : vector<1x96xf32> to vector<1x32xf32>
    %22 = vector.extract_strided_slice %10 {offsets = [0, 64], sizes = [1, 32], strides = [1, 1]} : vector<1x96xf32> to vector<1x32xf32>
    %23 = arith.mulf %19, %22 : vector<1x32xf32>
    %24 = arith.addf %21, %23 : vector<1x32xf32>
    %25 = math.tanh %24 : vector<1x32xf32>
    %cst_12 = arith.constant 1.000000e+00 : f32
    %26 = vector.broadcast %cst_12 : f32 to vector<1x32xf32>
    %27 = arith.subf %26, %20 : vector<1x32xf32>
    %28 = arith.mulf %27, %25 : vector<1x32xf32>
    %29 = arith.mulf %20, %0 : vector<1x32xf32>
    %30 = arith.addf %28, %29 : vector<1x32xf32>
    %c0_13 = arith.constant 0 : index
    %c0_14 = arith.constant 0 : index
    %31 = vector.load %arg4[%c0_13, %c0_14] : memref<32x8xf32, #tpu.memory_space<vmem>>, vector<32x8xf32>
    %cst_15 = arith.constant dense<0.000000e+00> : vector<1x8xf32>
    %32 = tpu.matmul %30, %31, %cst_15 {dimension_numbers = #tpu.dot_dimension_numbers<[1], [0], [0], [1], [0, 0, 1, 1], [], []>, precision = #tpu.contract_precision<fp32>} : vector<1x32xf32>, vector<32x8xf32>, vector<1x8xf32> -> vector<1x8xf32>
    %cst_16 = arith.constant dense<0xFF800000> : vector<1xf32>
    %33 = vector.multi_reduction <maximumf>, %32, %cst_16 [1] : vector<1x8xf32> to vector<1xf32>
    %34 = vector.shape_cast %33 : vector<1xf32> to vector<1x1xf32>
    %35 = vector.broadcast %34 : vector<1x1xf32> to vector<1x8xf32>
    %36 = arith.subf %32, %35 : vector<1x8xf32>
    %37 = math.exp %36 : vector<1x8xf32>
    %cst_17 = arith.constant dense<0.000000e+00> : vector<1xf32>
    %38 = vector.multi_reduction <add>, %37, %cst_17 [1] : vector<1x8xf32> to vector<1xf32>
    %39 = vector.shape_cast %38 : vector<1xf32> to vector<1x1xf32>
    %40 = vector.broadcast %39 : vector<1x1xf32> to vector<1x8xf32>
    %41 = arith.divf %37, %40 : vector<1x8xf32>
    %c0_18 = arith.constant 0 : index
    %c0_19 = arith.constant 0 : index
    %42 = vector.load %arg3[%c0_18, %c0_19] : memref<8x32xf32, #tpu.memory_space<vmem>>, vector<8x32xf32>
    %cst_20 = arith.constant dense<0.000000e+00> : vector<1x32xf32>
    %43 = tpu.matmul %41, %42, %cst_20 {dimension_numbers = #tpu.dot_dimension_numbers<[1], [0], [0], [1], [0, 0, 1, 1], [], []>, precision = #tpu.contract_precision<fp32>} : vector<1x8xf32>, vector<8x32xf32>, vector<1x32xf32> -> vector<1x32xf32>
    %44 = arith.index_cast %c0_i32 : i32 to index
    %c0_21 = arith.constant 0 : index
    %45 = vector.load %arg13[%44, %c0_21] : memref<1x32xf32, #tpu.memory_space<vmem>>, vector<1x32xf32>
    tpu.vector_store %arg13[%44, %c0_21], %30 {strides = array<i32>} : memref<1x32xf32, #tpu.memory_space<vmem>>, vector<1x32xf32>,
    %46 = arith.index_cast %c0_i32 : i32 to index
    %c0_22 = arith.constant 0 : index
    %47 = vector.load %arg12[%46, %c0_22] : memref<1x32xf32, #tpu.memory_space<vmem>>, vector<1x32xf32>
    tpu.vector_store %arg12[%46, %c0_22], %43 {strides = array<i32>} : memref<1x32xf32, #tpu.memory_space<vmem>>, vector<1x32xf32>,
    %48 = arith.index_cast %c0_i32 : i32 to index
    %c0_23 = arith.constant 0 : index
    %49 = vector.load %arg14[%48, %c0_23] : memref<1x8xf32, #tpu.memory_space<vmem>>, vector<1x8xf32>
    tpu.vector_store %arg14[%48, %c0_23], %41 {strides = array<i32>} : memref<1x8xf32, #tpu.memory_space<vmem>>, vector<1x8xf32>,
    %c1_i32 = arith.constant 1 : i32
    %c0_24 = arith.constant 0 : index
    %c0_25 = arith.constant 0 : index
    %50 = vector.load %arg13[%c0_24, %c0_25] : memref<1x32xf32, #tpu.memory_space<vmem>>, vector<1x32xf32>
    %c0_26 = arith.constant 0 : index
    %c0_27 = arith.constant 0 : index
    %51 = vector.load %arg12[%c0_26, %c0_27] : memref<1x32xf32, #tpu.memory_space<vmem>>, vector<1x32xf32>
    %c0_28 = arith.constant 0 : index
    %c0_29 = arith.constant 0 : index
    %52 = vector.load %arg8[%c0_28, %c0_29] : memref<32x64xf32, #tpu.memory_space<vmem>>, vector<32x64xf32>
    %cst_30 = arith.constant dense<0.000000e+00> : vector<1x64xf32>
    %53 = tpu.matmul %50, %52, %cst_30 {dimension_numbers = #tpu.dot_dimension_numbers<[1], [0], [0], [1], [0, 0, 1, 1], [], []>, precision = #tpu.contract_precision<fp32>} : vector<1x32xf32>, vector<32x64xf32>, vector<1x64xf32> -> vector<1x64xf32>
    %c0_31 = arith.constant 0 : index
    %c0_32 = arith.constant 0 : index
    %54 = vector.load %arg9[%c0_31, %c0_32] : memref<32x64xf32, #tpu.memory_space<vmem>>, vector<32x64xf32>
    %cst_33 = arith.constant dense<0.000000e+00> : vector<1x64xf32>
    %55 = tpu.matmul %51, %54, %cst_33 {dimension_numbers = #tpu.dot_dimension_numbers<[1], [0], [0], [1], [0, 0, 1, 1], [], []>, precision = #tpu.contract_precision<fp32>} : vector<1x32xf32>, vector<32x64xf32>, vector<1x64xf32> -> vector<1x64xf32>
    %56 = arith.addf %53, %55 : vector<1x64xf32>
    %c0_34 = arith.constant 0 : index
    %c0_35 = arith.constant 0 : index
    %57 = vector.load %arg10[%c0_34, %c0_35] : memref<1x64xf32, #tpu.memory_space<vmem>>, vector<1x64xf32>
    %58 = arith.addf %56, %57 : vector<1x64xf32>
    %cst_36 = arith.constant dense<0xFF800000> : vector<1xf32>
    %59 = vector.multi_reduction <maximumf>, %58, %cst_36 [1] : vector<1x64xf32> to vector<1xf32>
    %60 = vector.shape_cast %59 : vector<1xf32> to vector<1x1xf32>
    %61 = vector.broadcast %60 : vector<1x1xf32> to vector<1x64xf32>
    %62 = arith.subf %58, %61 : vector<1x64xf32>
    %63 = math.exp %62 : vector<1x64xf32>
    %cst_37 = arith.constant dense<0.000000e+00> : vector<1xf32>
    %64 = vector.multi_reduction <add>, %63, %cst_37 [1] : vector<1x64xf32> to vector<1xf32>
    %65 = vector.shape_cast %64 : vector<1xf32> to vector<1x1xf32>
    %66 = math.log %65 : vector<1x1xf32>
    %67 = vector.broadcast %66 : vector<1x1xf32> to vector<1x64xf32>
    %68 = arith.subf %62, %67 : vector<1x64xf32>
    %c0_38 = arith.constant 0 : index
    %c0_39 = arith.constant 0 : index
    %69 = vector.load %arg11[%c0_38, %c0_39] : memref<1x64xf32, #tpu.memory_space<vmem>>, vector<1x64xf32>
    tpu.vector_store %arg11[%c0_38, %c0_39], %68 {strides = array<i32>} : memref<1x64xf32, #tpu.memory_space<vmem>>, vector<1x64xf32>,
    return
  }
}

</mosaic_0001>

<llo_original>
// kernel: attention_decoder_decode.1
$region0: #{attention_decoder_decode.1}
  #allocation0 [shape = 'u32[]', space=smem, size = 0x4, offset = 0x4, fixed_abs, tag = 'smem constant byte address 0x4 - core index']
  #allocation1 [shape = 'u32[144,128]{1,0:T(1,128)}', space=vmem, size = 0x12000, scoped, tag = 'internal scratch']
  %s0 = inlined_call_operand.vmem [shape: f32[1,96], index: 0, kind: input, shape index: {}]
  %s1 = inlined_call_operand.vmem [shape: f32[1,32], index: 1, kind: input, shape index: {}]
  %s2 = inlined_call_operand.vmem [shape: f32[1,32], index: 2, kind: input, shape index: {}]
  %s3 = inlined_call_operand.vmem [shape: f32[8,32], index: 3, kind: input, shape index: {}]
  %s4 = inlined_call_operand.vmem [shape: f32[32,8], index: 4, kind: input, shape index: {}]
  %s5 = inlined_call_operand.vmem [shape: f32[32,96], index: 5, kind: input, shape index: {}]
  %s6 = inlined_call_operand.vmem [shape: f32[32,96], index: 6, kind: input, shape index: {}]
  %s7 = inlined_call_operand.vmem [shape: f32[1,96], index: 7, kind: input, shape index: {}]
  %s8 = inlined_call_operand.vmem [shape: f32[32,64], index: 8, kind: input, shape index: {}]
  %s9 = inlined_call_operand.vmem [shape: f32[32,64], index: 9, kind: input, shape index: {}]
  %s10 = inlined_call_operand.vmem [shape: f32[1,64], index: 10, kind: input, shape index: {}]
  %s11 = inlined_call_operand.hbm [shape: f32[1,64], index: 11, kind: output, shape index: {0}]
  %s12 = inlined_call_operand.hbm [shape: f32[1,32], index: 12, kind: output, shape index: {1}]
  %s13 = inlined_call_operand.hbm [shape: f32[1,32], index: 13, kind: output, shape index: {2}]
  %s14 = inlined_call_operand.hbm [shape: f32[1,8], index: 14, kind: output, shape index: {3}]
  %15 = xla_tuple %s11, %s12, %s13, %s14
  %s16 = sld [smem:[#allocation0]]
  $region78: #{attention_decoder_decode.1} parent=0
    _
  %s18 = ssub.s32 1, %s16
  %s19 = scalar_select 0, %s18, %s16
  $region1: #{attention_decoder_decode.1} parent=0
    #allocation2 [shape = 'u8[512]{0}', space=vmem, size = 0x400, scoped, tag = 'output window, operand 0, single buffered']
    #allocation3 [shape = 's32[1]{0}', space=sflag, size = 0x4, scoped, tag = 'scoped memory for attention_decoder_decode.1']
    #allocation4 [shape = 'u8[512]{0}', space=vmem, size = 0x400, scoped, tag = 'output window, operand 1, single buffered']
    #allocation5 [shape = 's32[1]{0}', space=sflag, size = 0x4, scoped, tag = 'scoped memory for attention_decoder_decode.1']
    #allocation6 [shape = 'u8[512]{0}', space=vmem, size = 0x400, scoped, tag = 'output window, operand 2, single buffered']
    #allocation7 [shape = 'u8[512]{0}', space=vmem, size = 0x400, scoped, tag = 'output window, operand 3, single buffered']
    #allocation8 [shape = 's32[1]{0}', space=sflag, size = 0x4, scoped, tag = 'scoped memory for attention_decoder_decode.1']
    %20 = vsyncpa [#allocation3], 0
    %21 = vsyncpa [#allocation5], 0
    %22 = vsyncpa [#allocation8], 0
    // Predicated region
    $region2: #{attention_decoder_decode.1} parent=1 // pred_check
      _
    $region3: #{attention_decoder_decode.1} parent=1 // pred_check_branch
      %24 = sbr.rel (0) target = $region5
    $region4: #{attention_decoder_decode.1} parent=1 // pred_region
      _
    $region5: #{attention_decoder_decode.1} parent=1 // pred_fallthru
      _
    // Predicated region
    $region6: #{attention_decoder_decode.1} parent=1 // pred_check
      _
    $region7: #{attention_decoder_decode.1} parent=1 // pred_check_branch
      %26 = sbr.rel (0) target = $region9
    $region8: #{attention_decoder_decode.1} parent=1 // pred_region
      _
    $region9: #{attention_decoder_decode.1} parent=1 // pred_fallthru
      _
    // Predicated region
    $region10: #{attention_decoder_decode.1} parent=1 // pred_check
      _
    $region11: #{attention_decoder_decode.1} parent=1 // pred_check_branch
      %28 = sbr.rel (0) target = $region13
    $region12: #{attention_decoder_decode.1} parent=1 // pred_region
      _
    $region13: #{attention_decoder_decode.1} parent=1 // pred_fallthru
      _
    // Predicated region
    $region14: #{attention_decoder_decode.1} parent=1 // pred_check
      _
    $region15: #{attention_decoder_decode.1} parent=1 // pred_check_branch
      %30 = sbr.rel (0) target = $region17
    $region16: #{attention_decoder_decode.1} parent=1 // pred_region
      _
    $region17: #{attention_decoder_decode.1} parent=1 // pred_fallthru
      _
    // Predicated region
    $region18: #{attention_decoder_decode.1} parent=1 // pred_check
      _
    $region19: #{attention_decoder_decode.1} parent=1 // pred_check_branch
      %32 = sbr.rel (0) target = $region21
    $region20: #{attention_decoder_decode.1} parent=1 // pred_region
      _
    $region21: #{attention_decoder_decode.1} parent=1 // pred_fallthru
      _
    // Predicated region
    $region22: #{attention_decoder_decode.1} parent=1 // pred_check
      _
    $region23: #{attention_decoder_decode.1} parent=1 // pred_check_branch
      %34 = sbr.rel (0) target = $region25
    $region24: #{attention_decoder_decode.1} parent=1 // pred_region
      _
    $region25: #{attention_decoder_decode.1} parent=1 // pred_fallthru
      _
    // Predicated region
    $region26: #{attention_decoder_decode.1} parent=1 // pred_check
      _
    $region27: #{attention_decoder_decode.1} parent=1 // pred_check_branch
      %36 = sbr.rel (0) target = $region29
    $region28: #{attention_decoder_decode.1} parent=1 // pred_region
      _
    $region29: #{attention_decoder_decode.1} parent=1 // pred_fallthru
      _
    // Predicated region
    $region30: #{attention_decoder_decode.1} parent=1 // pred_check
      _
    $region31: #{attention_decoder_decode.1} parent=1 // pred_check_branch
      %38 = sbr.rel (0) target = $region33
    $region32: #{attention_decoder_decode.1} parent=1 // pred_region
      _
    $region33: #{attention_decoder_decode.1} parent=1 // pred_fallthru
      _
    // Predicated region
    $region34: #{attention_decoder_decode.1} parent=1 // pred_check
      _
    $region35: #{attention_decoder_decode.1} parent=1 // pred_check_branch
      %40 = sbr.rel (0) target = $region37
    $region36: #{attention_decoder_decode.1} parent=1 // pred_region
      _
    $region37: #{attention_decoder_decode.1} parent=1 // pred_fallthru
      _
    // Predicated region
    $region38: #{attention_decoder_decode.1} parent=1 // pred_check
      _
    $region39: #{attention_decoder_decode.1} parent=1 // pred_check_branch
      %42 = sbr.rel (0) target = $region41
    $region40: #{attention_decoder_decode.1} parent=1 // pred_region
      _
    $region41: #{attention_decoder_decode.1} parent=1 // pred_fallthru
      _
    // Predicated region
    $region42: #{attention_decoder_decode.1} parent=1 // pred_check
      _
    $region43: #{attention_decoder_decode.1} parent=1 // pred_check_branch
      %44 = sbr.rel (0) target = $region45
    $region44: #{attention_decoder_decode.1} parent=1 // pred_region
      _
    $region45: #{attention_decoder_decode.1} parent=1 // pred_fallthru
      _
    %v45 = vld [vmem:[%s2] sm:$0x1]
    %v46 = vld [vmem:[%s1] sm:$0x1]
    %v47 = vld [vmem:[%s0] sm:$0x1]
    %v48 = vld [vmem:[%s5] sm:$0xff]
    %v49 = vld [vmem:[%s5 + $0x8] sm:$0xff]
    %v50 = vld [vmem:[%s5 + $0x10] sm:$0xff]
    %v51 = vld [vmem:[%s5 + $0x18] sm:$0xff]
    %vm52 = vcmask 261120
    %v54 = vsel %vm52, %v46, 0
    %56 = vmatprep.subr.mxu0 0.0
    %57 = vmatpush1.msra.mxu0 0.0
    %58 = vmatprep.subr.mxu0 0.0
    %59 = vmatpush1.msra.mxu0 0.0
    %60 = vmatprep.subr.mxu0 0.0
    %61 = vmatpush1.msra.mxu0 0.0
    %62 = vmatprep.subr.mxu0 0.0
    %63 = vmatpush1.msra.mxu0 0.0
    %64 = vmatprep.subr.mxu0 0.0
    %65 = vmatpush1.msra.mxu0 0.0
    %66 = vmatprep.subr.mxu0 0.0
    %67 = vmatpush1.msra.mxu0 0.0
    %68 = vmatprep.subr.mxu0 0.0
    %69 = vmatpush1.msra.mxu0 0.0
    %70 = vmatprep.subr.mxu0 0.0
    %71 = vmatpush1.msra.mxu0 0.0
    %72 = vmatprep.subr.mxu0 0.0
    %73 = vmatpush1.msra.mxu0 0.0
    %74 = vmatprep.subr.mxu0 0.0
    %75 = vmatpush1.msra.mxu0 0.0
    %76 = vmatprep.subr.mxu0 0.0
    %77 = vmatpush1.msra.mxu0 0.0
    %78 = vmatprep.subr.mxu0 0.0
    %79 = vmatpush1.msra.mxu0 0.0
    %80 = vmatprep.subr.mxu0 0.0
    %v81 = vand.u32 %v51, 4294901760
    %82 = vmatpush1.msra.mxu0 %v81
    %83 = vmatprep.subr.mxu0 0.0
    %v84 = vand.u32 %v50, 4294901760
    %85 = vmatpush1.msra.mxu0 %v84
    %86 = vmatprep.subr.mxu0 0.0
    %v87 = vand.u32 %v49, 4294901760
    %88 = vmatpush1.msra.mxu0 %v87
    %89 = vmatprep.subr.mxu0 0.0
    %v90 = vand.u32 %v48, 4294901760
    %91 = vmatpush1.msra.mxu0 %v90
    %92 = vmatprep.subr.mxu0 0.0
    %93 = vmatpush2.msra.mxu0 0.0
    %94 = vmatprep.subr.mxu0 0.0
    %95 = vmatpush2.msra.mxu0 0.0
    %96 = vmatprep.subr.mxu0 0.0
    %97 = vmatpush2.msra.mxu0 0.0
    %98 = vmatprep.subr.mxu0 0.0
    %99 = vmatpush2.msra.mxu0 0.0
    %100 = vmatprep.subr.mxu0 0.0
    %101 = vmatpush2.msra.mxu0 0.0
    %102 = vmatprep.subr.mxu0 0.0
    %103 = vmatpush2.msra.mxu0 0.0
    %104 = vmatprep.subr.mxu0 0.0
    %105 = vmatpush2.msra.mxu0 0.0
    %106 = vmatprep.subr.mxu0 0.0
    %107 = vmatpush2.msra.mxu0 0.0
    %108 = vmatprep.subr.mxu0 0.0
    %109 = vmatpush2.msra.mxu0 0.0
    %110 = vmatprep.subr.mxu0 0.0
    %111 = vmatpush2.msra.mxu0 0.0
    %112 = vmatprep.subr.mxu0 0.0
    %113 = vmatpush2.msra.mxu0 0.0
    %114 = vmatprep.subr.mxu0 0.0
    %115 = vmatpush2.msra.mxu0 0.0
    %116 = vmatprep.subr.mxu0 0.0
    %117 = vmatpush2.msra.mxu0 0.0
    %118 = vmatprep.subr.mxu0 0.0
    %119 = vmatpush2.msra.mxu0 0.0
    %120 = vmatprep.subr.mxu0 0.0
    %121 = vmatpush2.msra.mxu0 0.0
    %122 = vmatprep.subr.mxu0 0.0
    %123 = vmatpush2.msra.mxu0 0.0
    %124 = vmatprep.mubr.f32.mxu0 0.0
    %v125 = vand.u32 %v54, 4294901760
    %v126 = vsub.f32 %v54, %v125
    %v127 = vand.u32 %v126, 4294901760
    %v128 = vsub.f32 %v126, %v127
    %v129 = vand.u32 %v128, 4294901760
    %130 = vmatmul.mubr.f32.gmra.mxu0 %v129
    %v131 = vpop.f32.mrf.mxu0
    %v132 = vadd.f32 0.0, %v131
    %v133 = vpop.f32.mrf.mxu0
    %134 = vdwg.mxu0
    %135 = vmatprep.subr.mxu0 0.0
    %136 = vmatpush1.msra.mxu0 0.0
    %137 = vmatprep.subr.mxu0 0.0
    %138 = vmatpush1.msra.mxu0 0.0
    %139 = vmatprep.subr.mxu0 0.0
    %140 = vmatpush1.msra.mxu0 0.0
    %141 = vmatprep.subr.mxu0 0.0
    %142 = vmatpush1.msra.mxu0 0.0
    %143 = vmatprep.subr.mxu0 0.0
    %144 = vmatpush1.msra.mxu0 0.0
    %145 = vmatprep.subr.mxu0 0.0
    %146 = vmatpush1.msra.mxu0 0.0
    %147 = vmatprep.subr.mxu0 0.0
    %148 = vmatpush1.msra.mxu0 0.0
    %149 = vmatprep.subr.mxu0 0.0
    %150 = vmatpush1.msra.mxu0 0.0
    %151 = vmatprep.subr.mxu0 0.0
    %152 = vmatpush1.msra.mxu0 0.0
    %153 = vmatprep.subr.mxu0 0.0
    %154 = vmatpush1.msra.mxu0 0.0
    %155 = vmatprep.subr.mxu0 0.0
    %156 = vmatpush1.msra.mxu0 0.0
    %157 = vmatprep.subr.mxu0 0.0
    %158 = vmatpush1.msra.mxu0 0.0
    %159 = vmatprep.subr.mxu0 0.0
    %v160 = vand.u32 %v51, 4294901760
    %v161 = vsub.f32 %v51, %v160
    %v162 = vand.u32 %v161, 4294901760
    %v163 = vsub.f32 %v161, %v162
    %v164 = vand.u32 %v163, 4294901760
    %165 = vmatpush1.msra.mxu0 %v164
    %166 = vmatprep.subr.mxu0 0.0
    %v167 = vand.u32 %v50, 4294901760
    %v168 = vsub.f32 %v50, %v167
    %v169 = vand.u32 %v168, 4294901760
    %v170 = vsub.f32 %v168, %v169
    %v171 = vand.u32 %v170, 4294901760
    %172 = vmatpush1.msra.mxu0 %v171
    %173 = vmatprep.subr.mxu0 0.0
    %v174 = vand.u32 %v49, 4294901760
    %v175 = vsub.f32 %v49, %v174
    %v176 = vand.u32 %v175, 4294901760
    %v177 = vsub.f32 %v175, %v176
    %v178 = vand.u32 %v177, 4294901760
    %179 = vmatpush1.msra.mxu0 %v178
    %180 = vmatprep.subr.mxu0 0.0
    %v181 = vand.u32 %v48, 4294901760
    %v182 = vsub.f32 %v48, %v181
    %v183 = vand.u32 %v182, 4294901760
    %v184 = vsub.f32 %v182, %v183
    %v185 = vand.u32 %v184, 4294901760
    %186 = vmatpush1.msra.mxu0 %v185
    %187 = vmatprep.subr.mxu0 0.0
    %188 = vmatpush2.msra.mxu0 0.0
    %189 = vmatprep.subr.mxu0 0.0
    %190 = vmatpush2.msra.mxu0 0.0
    %191 = vmatprep.subr.mxu0 0.0
    %192 = vmatpush2.msra.mxu0 0.0
    %193 = vmatprep.subr.mxu0 0.0
    %194 = vmatpush2.msra.mxu0 0.0
    %195 = vmatprep.subr.mxu0 0.0
    %196 = vmatpush2.msra.mxu0 0.0
    %197 = vmatprep.subr.mxu0 0.0
    %198 = vmatpush2.msra.mxu0 0.0
    %199 = vmatprep.subr.mxu0 0.0
    %200 = vmatpush2.msra.mxu0 0.0
    %201 = vmatprep.subr.mxu0 0.0
    %202 = vmatpush2.msra.mxu0 0.0
    %203 = vmatprep.subr.mxu0 0.0
    %204 = vmatpush2.msra.mxu0 0.0
    %205 = vmatprep.subr.mxu0 0.0
    %206 = vmatpush2.msra.mxu0 0.0
    %207 = vmatprep.subr.mxu0 0.0
    %208 = vmatpush2.msra.mxu0 0.0
    %209 = vmatprep.subr.mxu0 0.0
    %210 = vmatpush2.msra.mxu0 0.0
    %211 = vmatprep.subr.mxu0 0.0
    %212 = vmatpush2.msra.mxu0 0.0
    %213 = vmatprep.subr.mxu0 0.0
    %214 = vmatpush2.msra.mxu0 0.0
    %215 = vmatprep.subr.mxu0 0.0
    %216 = vmatpush2.msra.mxu0 0.0
    %217 = vmatprep.subr.mxu0 0.0
    %218 = vmatpush2.msra.mxu0 0.0
    %219 = vmatprep.mubr.f32.mxu0 0.0
    %v220 = vand.u32 %v54, 4294901760
    %221 = vmatmul.mubr.f32.gmra.mxu0 %v220
    %v222 = vpop.f32.mrf.mxu0
    %v223 = vadd.f32 %v132, %v222
    %v224 = vpop.f32.mrf.mxu0
    %225 = vdwg.mxu0
    %226 = vmatprep.subr.mxu0 0.0
    %227 = vmatpush1.msra.mxu0 0.0
    %228 = vmatprep.subr.mxu0 0.0
    %229 = vmatpush1.msra.mxu0 0.0
    %230 = vmatprep.subr.mxu0 0.0
    %231 = vmatpush1.msra.mxu0 0.0
    %232 = vmatprep.subr.mxu0 0.0
    %233 = vmatpush1.msra.mxu0 0.0
    %234 = vmatprep.subr.mxu0 0.0
    %235 = vmatpush1.msra.mxu0 0.0
    %236 = vmatprep.subr.mxu0 0.0
    %237 = vmatpush1.msra.mxu0 0.0
    %238 = vmatprep.subr.mxu0 0.0
    %239 = vmatpush1.msra.mxu0 0.0
    %240 = vmatprep.subr.mxu0 0.0
    %241 = vmatpush1.msra.mxu0 0.0
    %242 = vmatprep.subr.mxu0 0.0
    %243 = vmatpush1.msra.mxu0 0.0
    %244 = vmatprep.subr.mxu0 0.0
    %245 = vmatpush1.msra.mxu0 0.0
    %246 = vmatprep.subr.mxu0 0.0
    %247 = vmatpush1.msra.mxu0 0.0
    %248 = vmatprep.subr.mxu0 0.0
    %249 = vmatpush1.msra.mxu0 0.0
    %250 = vmatprep.subr.mxu0 0.0
    %v251 = vand.u32 %v51, 4294901760
    %v252 = vsub.f32 %v51, %v251
    %253 = vmatpush1.msra.mxu0 %v252
    %254 = vmatprep.subr.mxu0 0.0
    %v255 = vand.u32 %v50, 4294901760
    %v256 = vsub.f32 %v50, %v255
    %257 = vmatpush1.msra.mxu0 %v256
    %258 = vmatprep.subr.mxu0 0.0
    %v259 = vand.u32 %v49, 4294901760
    %v260 = vsub.f32 %v49, %v259
    %261 = vmatpush1.msra.mxu0 %v260
    %262 = vmatprep.subr.mxu0 0.0
    %v263 = vand.u32 %v48, 4294901760
    %v264 = vsub.f32 %v48, %v263
    %265 = vmatpush1.msra.mxu0 %v264
    %266 = vmatprep.subr.mxu0 0.0
    %267 = vmatpush2.msra.mxu0 0.0
    %268 = vmatprep.subr.mxu0 0.0
    %269 = vmatpush2.msra.mxu0 0.0
    %270 = vmatprep.subr.mxu0 0.0
    %271 = vmatpush2.msra.mxu0 0.0
    %272 = vmatprep.subr.mxu0 0.0
    %273 = vmatpush2.msra.mxu0 0.0
    %274 = vmatprep.subr.mxu0 0.0
    %275 = vmatpush2.msra.mxu0 0.0
    %276 = vmatprep.subr.mxu0 0.0
    %277 = vmatpush2.msra.mxu0 0.0
    %278 = vmatprep.subr.mxu0 0.0
    %279 = vmatpush2.msra.mxu0 0.0
    %280 = vmatprep.subr.mxu0 0.0
    %281 = vmatpush2.msra.mxu0 0.0
    %282 = vmatprep.subr.mxu0 0.0
    %283 = vmatpush2.msra.mxu0 0.0
    %284 = vmatprep.subr.mxu0 0.0
    %285 = vmatpush2.msra.mxu0 0.0
    %286 = vmatprep.subr.mxu0 0.0
    %287 = vmatpush2.msra.mxu0 0.0
    %288 = vmatprep.subr.mxu0 0.0
    %289 = vmatpush2.msra.mxu0 0.0
    %290 = vmatprep.subr.mxu0 0.0
    %291 = vmatpush2.msra.mxu0 0.0
    %292 = vmatprep.subr.mxu0 0.0
    %293 = vmatpush2.msra.mxu0 0.0
    %294 = vmatprep.subr.mxu0 0.0
    %295 = vmatpush2.msra.mxu0 0.0
    %296 = vmatprep.subr.mxu0 0.0
    %297 = vmatpush2.msra.mxu0 0.0
    %298 = vmatprep.mubr.f32.mxu0 0.0
    %v299 = vand.u32 %v54, 4294901760
    %v300 = vsub.f32 %v54, %v299
    %301 = vmatmul.mubr.f32.gmra.mxu0 %v300
    %v302 = vpop.f32.mrf.mxu0
    %v303 = vadd.f32 %v223, %v302
    %v304 = vpop.f32.mrf.mxu0
    %305 = vdwg.mxu0
    %306 = vmatprep.subr.mxu0 0.0
    %307 = vmatpush1.msra.mxu0 0.0
    %308 = vmatprep.subr.mxu0 0.0
    %309 = vmatpush1.msra.mxu0 0.0
    %310 = vmatprep.subr.mxu0 0.0
    %311 = vmatpush1.msra.mxu0 0.0
    %312 = vmatprep.subr.mxu0 0.0
    %313 = vmatpush1.msra.mxu0 0.0
    %314 = vmatprep.subr.mxu0 0.0
    %315 = vmatpush1.msra.mxu0 0.0
    %316 = vmatprep.subr.mxu0 0.0
    %317 = vmatpush1.msra.mxu0 0.0
    %318 = vmatprep.subr.mxu0 0.0
    %319 = vmatpush1.msra.mxu0 0.0
    %320 = vmatprep.subr.mxu0 0.0
    %321 = vmatpush1.msra.mxu0 0.0
    %322 = vmatprep.subr.mxu0 0.0
    %323 = vmatpush1.msra.mxu0 0.0
    %324 = vmatprep.subr.mxu0 0.0
    %325 = vmatpush1.msra.mxu0 0.0
    %326 = vmatprep.subr.mxu0 0.0
    %327 = vmatpush1.msra.mxu0 0.0
    %328 = vmatprep.subr.mxu0 0.0
    %329 = vmatpush1.msra.mxu0 0.0
    %330 = vmatprep.subr.mxu0 0.0
    %v331 = vand.u32 %v51, 4294901760
    %332 = vmatpush1.msra.mxu0 %v331
    %333 = vmatprep.subr.mxu0 0.0
    %v334 = vand.u32 %v50, 4294901760
    %335 = vmatpush1.msra.mxu0 %v334
    %336 = vmatprep.subr.mxu0 0.0
    %v337 = vand.u32 %v49, 4294901760
    %338 = vmatpush1.msra.mxu0 %v337
    %339 = vmatprep.subr.mxu0 0.0
    %v340 = vand.u32 %v48, 4294901760
    %341 = vmatpush1.msra.mxu0 %v340
    %342 = vmatprep.subr.mxu0 0.0
    %343 = vmatpush2.msra.mxu0 0.0
    %344 = vmatprep.subr.mxu0 0.0
    %345 = vmatpush2.msra.mxu0 0.0
    %346 = vmatprep.subr.mxu0 0.0
    %347 = vmatpush2.msra.mxu0 0.0
    %348 = vmatprep.subr.mxu0 0.0
    %349 = vmatpush2.msra.mxu0 0.0
    %350 = vmatprep.subr.mxu0 0.0
    %351 = vmatpush2.msra.mxu0 0.0
    %352 = vmatprep.subr.mxu0 0.0
    %353 = vmatpush2.msra.mxu0 0.0
    %354 = vmatprep.subr.mxu0 0.0
    %355 = vmatpush2.msra.mxu0 0.0
    %356 = vmatprep.subr.mxu0 0.0
    %357 = vmatpush2.msra.mxu0 0.0
    %358 = vmatprep.subr.mxu0 0.0
    %359 = vmatpush2.msra.mxu0 0.0
    %360 = vmatprep.subr.mxu0 0.0
    %361 = vmatpush2.msra.mxu0 0.0
    %362 = vmatprep.subr.mxu0 0.0
    %363 = vmatpush2.msra.mxu0 0.0
    %364 = vmatprep.subr.mxu0 0.0
    %365 = vmatpush2.msra.mxu0 0.0
    %366 = vmatprep.subr.mxu0 0.0
    %367 = vmatpush2.msra.mxu0 0.0
    %368 = vmatprep.subr.mxu0 0.0
    %369 = vmatpush2.msra.mxu0 0.0
    %370 = vmatprep.subr.mxu0 0.0
    %371 = vmatpush2.msra.mxu0 0.0
    %372 = vmatprep.subr.mxu0 0.0
    %373 = vmatpush2.msra.mxu0 0.0
    %374 = vmatprep.mubr.f32.mxu0 0.0
    %v375 = vand.u32 %v54, 4294901760
    %v376 = vsub.f32 %v54, %v375
    %v377 = vand.u32 %v376, 4294901760
    %378 = vmatmul.mubr.f32.gmra.mxu0 %v377
    %v379 = vpop.f32.mrf.mxu0
    %v380 = vadd.f32 %v303, %v379
    %v381 = vpop.f32.mrf.mxu0
    %382 = vdwg.mxu0
    %383 = vmatprep.subr.mxu0 0.0
    %384 = vmatpush1.msra.mxu0 0.0
    %385 = vmatprep.subr.mxu0 0.0
    %386 = vmatpush1.msra.mxu0 0.0
    %387 = vmatprep.subr.mxu0 0.0
    %388 = vmatpush1.msra.mxu0 0.0
    %389 = vmatprep.subr.mxu0 0.0
    %390 = vmatpush1.msra.mxu0 0.0
    %391 = vmatprep.subr.mxu0 0.0
    %392 = vmatpush1.msra.mxu0 0.0
    %393 = vmatprep.subr.mxu0 0.0
    %394 = vmatpush1.msra.mxu0 0.0
    %395 = vmatprep.subr.mxu0 0.0
    %396 = vmatpush1.msra.mxu0 0.0
    %397 = vmatprep.subr.mxu0 0.0
    %398 = vmatpush1.msra.mxu0 0.0
    %399 = vmatprep.subr.mxu0 0.0
    %400 = vmatpush1.msra.mxu0 0.0
    %401 = vmatprep.subr.mxu0 0.0
    %402 = vmatpush1.msra.mxu0 0.0
    %403 = vmatprep.subr.mxu0 0.0
    %404 = vmatpush1.msra.mxu0 0.0
    %405 = vmatprep.subr.mxu0 0.0
    %406 = vmatpush1.msra.mxu0 0.0
    %407 = vmatprep.subr.mxu0 0.0
    %v408 = vand.u32 %v51, 4294901760
    %v409 = vsub.f32 %v51, %v408
    %v410 = vand.u32 %v409, 4294901760
    %411 = vmatpush1.msra.mxu0 %v410
    %412 = vmatprep.subr.mxu0 0.0
    %v413 = vand.u32 %v50, 4294901760
    %v414 = vsub.f32 %v50, %v413
    %v415 = vand.u32 %v414, 4294901760
    %416 = vmatpush1.msra.mxu0 %v415
    %417 = vmatprep.subr.mxu0 0.0
    %v418 = vand.u32 %v49, 4294901760
    %v419 = vsub.f32 %v49, %v418
    %v420 = vand.u32 %v419, 4294901760
    %421 = vmatpush1.msra.mxu0 %v420
    %422 = vmatprep.subr.mxu0 0.0
    %v423 = vand.u32 %v48, 4294901760
    %v424 = vsub.f32 %v48, %v423
    %v425 = vand.u32 %v424, 4294901760
    %426 = vmatpush1.msra.mxu0 %v425
    %427 = vmatprep.subr.mxu0 0.0
    %428 = vmatpush2.msra.mxu0 0.0
    %429 = vmatprep.subr.mxu0 0.0
    %430 = vmatpush2.msra.mxu0 0.0
    %431 = vmatprep.subr.mxu0 0.0
    %432 = vmatpush2.msra.mxu0 0.0
    %433 = vmatprep.subr.mxu0 0.0
    %434 = vmatpush2.msra.mxu0 0.0
    %435 = vmatprep.subr.mxu0 0.0
    %436 = vmatpush2.msra.mxu0 0.0
    %437 = vmatprep.subr.mxu0 0.0
    %438 = vmatpush2.msra.mxu0 0.0
    %439 = vmatprep.subr.mxu0 0.0
    %440 = vmatpush2.msra.mxu0 0.0
    %441 = vmatprep.subr.mxu0 0.0
    %442 = vmatpush2.msra.mxu0 0.0
    %443 = vmatprep.subr.mxu0 0.0
    %444 = vmatpush2.msra.mxu0 0.0
    %445 = vmatprep.subr.mxu0 0.0
    %446 = vmatpush2.msra.mxu0 0.0
    %447 = vmatprep.subr.mxu0 0.0
    %448 = vmatpush2.msra.mxu0 0.0
    %449 = vmatprep.subr.mxu0 0.0
    %450 = vmatpush2.msra.mxu0 0.0
    %451 = vmatprep.subr.mxu0 0.0
    %452 = vmatpush2.msra.mxu0 0.0
    %453 = vmatprep.subr.mxu0 0.0
    %454 = vmatpush2.msra.mxu0 0.0
    %455 = vmatprep.subr.mxu0 0.0
    %456 = vmatpush2.msra.mxu0 0.0
    %457 = vmatprep.subr.mxu0 0.0
    %458 = vmatpush2.msra.mxu0 0.0
    %459 = vmatprep.mubr.f32.mxu0 0.0
    %v460 = vand.u32 %v54, 4294901760
    %461 = vmatmul.mubr.f32.gmra.mxu0 %v460
    %v462 = vpop.f32.mrf.mxu0
    %v463 = vadd.f32 %v380, %v462
    %v464 = vpop.f32.mrf.mxu0
    %465 = vdwg.mxu0
    %466 = vmatprep.subr.mxu0 0.0
    %467 = vmatpush1.msra.mxu0 0.0
    %468 = vmatprep.subr.mxu0 0.0
    %469 = vmatpush1.msra.mxu0 0.0
    %470 = vmatprep.subr.mxu0 0.0
    %471 = vmatpush1.msra.mxu0 0.0
    %472 = vmatprep.subr.mxu0 0.0
    %473 = vmatpush1.msra.mxu0 0.0
    %474 = vmatprep.subr.mxu0 0.0
    %475 = vmatpush1.msra.mxu0 0.0
    %476 = vmatprep.subr.mxu0 0.0
    %477 = vmatpush1.msra.mxu0 0.0
    %478 = vmatprep.subr.mxu0 0.0
    %479 = vmatpush1.msra.mxu0 0.0
    %480 = vmatprep.subr.mxu0 0.0
    %481 = vmatpush1.msra.mxu0 0.0
    %482 = vmatprep.subr.mxu0 0.0
    %483 = vmatpush1.msra.mxu0 0.0
    %484 = vmatprep.subr.mxu0 0.0
    %485 = vmatpush1.msra.mxu0 0.0
    %486 = vmatprep.subr.mxu0 0.0
    %487 = vmatpush1.msra.mxu0 0.0
    %488 = vmatprep.subr.mxu0 0.0
    %489 = vmatpush1.msra.mxu0 0.0
    %490 = vmatprep.subr.mxu0 0.0
    %v491 = vand.u32 %v51, 4294901760
    %492 = vmatpush1.msra.mxu0 %v491
    %493 = vmatprep.subr.mxu0 0.0
    %v494 = vand.u32 %v50, 4294901760
    %495 = vmatpush1.msra.mxu0 %v494
    %496 = vmatprep.subr.mxu0 0.0
    %v497 = vand.u32 %v49, 4294901760
    %498 = vmatpush1.msra.mxu0 %v497
    %499 = vmatprep.subr.mxu0 0.0
    %v500 = vand.u32 %v48, 4294901760
    %501 = vmatpush1.msra.mxu0 %v500
    %502 = vmatprep.subr.mxu0 0.0
    %503 = vmatpush2.msra.mxu0 0.0
    %504 = vmatprep.subr.mxu0 0.0
    %505 = vmatpush2.msra.mxu0 0.0
    %506 = vmatprep.subr.mxu0 0.0
    %507 = vmatpush2.msra.mxu0 0.0
    %508 = vmatprep.subr.mxu0 0.0
    %509 = vmatpush2.msra.mxu0 0.0
    %510 = vmatprep.subr.mxu0 0.0
    %511 = vmatpush2.msra.mxu0 0.0
    %512 = vmatprep.subr.mxu0 0.0
    %513 = vmatpush2.msra.mxu0 0.0
    %514 = vmatprep.subr.mxu0 0.0
    %515 = vmatpush2.msra.mxu0 0.0
    %516 = vmatprep.subr.mxu0 0.0
    %517 = vmatpush2.msra.mxu0 0.0
    %518 = vmatprep.subr.mxu0 0.0
    %519 = vmatpush2.msra.mxu0 0.0
    %520 = vmatprep.subr.mxu0 0.0
    %521 = vmatpush2.msra.mxu0 0.0
    %522 = vmatprep.subr.mxu0 0.0
    %523 = vmatpush2.msra.mxu0 0.0
    %524 = vmatprep.subr.mxu0 0.0
    %525 = vmatpush2.msra.mxu0 0.0
    %526 = vmatprep.subr.mxu0 0.0
    %527 = vmatpush2.msra.mxu0 0.0
    %528 = vmatprep.subr.mxu0 0.0
    %529 = vmatpush2.msra.mxu0 0.0
    %530 = vmatprep.subr.mxu0 0.0
    %531 = vmatpush2.msra.mxu0 0.0
    %532 = vmatprep.subr.mxu0 0.0
    %533 = vmatpush2.msra.mxu0 0.0
    %534 = vmatprep.mubr.f32.mxu0 0.0
    %v535 = vand.u32 %v54, 4294901760
    %536 = vmatmul.mubr.f32.gmra.mxu0 %v535
    %v537 = vpop.f32.mrf.mxu0
    %v538 = vadd.f32 %v463, %v537
    %v539 = vpop.f32.mrf.mxu0
    %540 = vdwg.mxu0
    %v541 = vadd.f32 %v47, %v538
    %v542 = vld [vmem:[%s6] sm:$0xff]
    %v543 = vld [vmem:[%s6 + $0x8] sm:$0xff]
    %v544 = vld [vmem:[%s6 + $0x10] sm:$0xff]
    %v545 = vld [vmem:[%s6 + $0x18] sm:$0xff]
    %v546 = vld [vmem:[%s7] sm:$0x1]
    %v548 = vsel %vm52, %v45, 0
    %550 = vmatprep.subr.mxu0 0.0
    %551 = vmatpush1.msra.mxu0 0.0
    %552 = vmatprep.subr.mxu0 0.0
    %553 = vmatpush1.msra.mxu0 0.0
    %554 = vmatprep.subr.mxu0 0.0
    %555 = vmatpush1.msra.mxu0 0.0
    %556 = vmatprep.subr.mxu0 0.0
    %557 = vmatpush1.msra.mxu0 0.0
    %558 = vmatprep.subr.mxu0 0.0
    %559 = vmatpush1.msra.mxu0 0.0
    %560 = vmatprep.subr.mxu0 0.0
    %561 = vmatpush1.msra.mxu0 0.0
    %562 = vmatprep.subr.mxu0 0.0
    %563 = vmatpush1.msra.mxu0 0.0
    %564 = vmatprep.subr.mxu0 0.0
    %565 = vmatpush1.msra.mxu0 0.0
    %566 = vmatprep.subr.mxu0 0.0
    %567 = vmatpush1.msra.mxu0 0.0
    %568 = vmatprep.subr.mxu0 0.0
    %569 = vmatpush1.msra.mxu0 0.0
    %570 = vmatprep.subr.mxu0 0.0
    %571 = vmatpush1.msra.mxu0 0.0
    %572 = vmatprep.subr.mxu0 0.0
    %573 = vmatpush1.msra.mxu0 0.0
    %574 = vmatprep.subr.mxu0 0.0
    %v575 = vand.u32 %v545, 4294901760
    %576 = vmatpush1.msra.mxu0 %v575
    %577 = vmatprep.subr.mxu0 0.0
    %v578 = vand.u32 %v544, 4294901760
    %579 = vmatpush1.msra.mxu0 %v578
    %580 = vmatprep.subr.mxu0 0.0
    %v581 = vand.u32 %v543, 4294901760
    %582 = vmatpush1.msra.mxu0 %v581
    %583 = vmatprep.subr.mxu0 0.0
    %v584 = vand.u32 %v542, 4294901760
    %585 = vmatpush1.msra.mxu0 %v584
    %586 = vmatprep.subr.mxu0 0.0
    %587 = vmatpush2.msra.mxu0 0.0
    %588 = vmatprep.subr.mxu0 0.0
    %589 = vmatpush2.msra.mxu0 0.0
    %590 = vmatprep.subr.mxu0 0.0
    %591 = vmatpush2.msra.mxu0 0.0
    %592 = vmatprep.subr.mxu0 0.0
    %593 = vmatpush2.msra.mxu0 0.0
    %594 = vmatprep.subr.mxu0 0.0
    %595 = vmatpush2.msra.mxu0 0.0
    %596 = vmatprep.subr.mxu0 0.0
    %597 = vmatpush2.msra.mxu0 0.0
    %598 = vmatprep.subr.mxu0 0.0
    %599 = vmatpush2.msra.mxu0 0.0
    %600 = vmatprep.subr.mxu0 0.0
    %601 = vmatpush2.msra.mxu0 0.0
    %602 = vmatprep.subr.mxu0 0.0
    %603 = vmatpush2.msra.mxu0 0.0
    %604 = vmatprep.subr.mxu0 0.0
    %605 = vmatpush2.msra.mxu0 0.0
    %606 = vmatprep.subr.mxu0 0.0
    %607 = vmatpush2.msra.mxu0 0.0
    %608 = vmatprep.subr.mxu0 0.0
    %609 = vmatpush2.msra.mxu0 0.0
    %610 = vmatprep.subr.mxu0 0.0
    %611 = vmatpush2.msra.mxu0 0.0
    %612 = vmatprep.subr.mxu0 0.0
    %613 = vmatpush2.msra.mxu0 0.0
    %614 = vmatprep.subr.mxu0 0.0
    %615 = vmatpush2.msra.mxu0 0.0
    %616 = vmatprep.subr.mxu0 0.0
    %617 = vmatpush2.msra.mxu0 0.0
    %618 = vmatprep.mubr.f32.mxu0 0.0
    %v619 = vand.u32 %v548, 4294901760
    %v620 = vsub.f32 %v548, %v619
    %v621 = vand.u32 %v620, 4294901760
    %v622 = vsub.f32 %v620, %v621
    %v623 = vand.u32 %v622, 4294901760
    %624 = vmatmul.mubr.f32.gmra.mxu0 %v623
    %v625 = vpop.f32.mrf.mxu0
    %v626 = vadd.f32 %v546, %v625
    %v627 = vpop.f32.mrf.mxu0
    %628 = vdwg.mxu0
    %629 = vmatprep.subr.mxu0 0.0
    %630 = vmatpush1.msra.mxu0 0.0
    %631 = vmatprep.subr.mxu0 0.0
    %632 = vmatpush1.msra.mxu0 0.0
    %633 = vmatprep.subr.mxu0 0.0
    %634 = vmatpush1.msra.mxu0 0.0
    %635 = vmatprep.subr.mxu0 0.0
    %636 = vmatpush1.msra.mxu0 0.0
    %637 = vmatprep.subr.mxu0 0.0
    %638 = vmatpush1.msra.mxu0 0.0
    %639 = vmatprep.subr.mxu0 0.0
    %640 = vmatpush1.msra.mxu0 0.0
    %641 = vmatprep.subr.mxu0 0.0
    %642 = vmatpush1.msra.mxu0 0.0
    %643 = vmatprep.subr.mxu0 0.0
    %644 = vmatpush1.msra.mxu0 0.0
    %645 = vmatprep.subr.mxu0 0.0
    %646 = vmatpush1.msra.mxu0 0.0
    %647 = vmatprep.subr.mxu0 0.0
    %648 = vmatpush1.msra.mxu0 0.0
    %649 = vmatprep.subr.mxu0 0.0
    %650 = vmatpush1.msra.mxu0 0.0
    %651 = vmatprep.subr.mxu0 0.0
    %652 = vmatpush1.msra.mxu0 0.0
    %653 = vmatprep.subr.mxu0 0.0
    %v654 = vand.u32 %v545, 4294901760
    %v655 = vsub.f32 %v545, %v654
    %v656 = vand.u32 %v655, 4294901760
    %v657 = vsub.f32 %v655, %v656
    %v658 = vand.u32 %v657, 4294901760
    %659 = vmatpush1.msra.mxu0 %v658
    %660 = vmatprep.subr.mxu0 0.0
    %v661 = vand.u32 %v544, 4294901760
    %v662 = vsub.f32 %v544, %v661
    %v663 = vand.u32 %v662, 4294901760
    %v664 = vsub.f32 %v662, %v663
    %v665 = vand.u32 %v664, 4294901760
    %666 = vmatpush1.msra.mxu0 %v665
    %667 = vmatprep.subr.mxu0 0.0
    %v668 = vand.u32 %v543, 4294901760
    %v669 = vsub.f32 %v543, %v668
    %v670 = vand.u32 %v669, 4294901760
    %v671 = vsub.f32 %v669, %v670
    %v672 = vand.u32 %v671, 4294901760
    %673 = vmatpush1.msra.mxu0 %v672
    %674 = vmatprep.subr.mxu0 0.0
    %v675 = vand.u32 %v542, 4294901760
    %v676 = vsub.f32 %v542, %v675
    %v677 = vand.u32 %v676, 4294901760
    %v678 = vsub.f32 %v676, %v677
    %v679 = vand.u32 %v678, 4294901760
    %680 = vmatpush1.msra.mxu0 %v679
    %681 = vmatprep.subr.mxu0 0.0
    %682 = vmatpush2.msra.mxu0 0.0
    %683 = vmatprep.subr.mxu0 0.0
    %684 = vmatpush2.msra.mxu0 0.0
    %685 = vmatprep.subr.mxu0 0.0
    %686 = vmatpush2.msra.mxu0 0.0
    %687 = vmatprep.subr.mxu0 0.0
    %688 = vmatpush2.msra.mxu0 0.0
    %689 = vmatprep.subr.mxu0 0.0
    %690 = vmatpush2.msra.mxu0 0.0
    %691 = vmatprep.subr.mxu0 0.0
    %692 = vmatpush2.msra.mxu0 0.0
    %693 = vmatprep.subr.mxu0 0.0
    %694 = vmatpush2.msra.mxu0 0.0
    %695 = vmatprep.subr.mxu0 0.0
    %696 = vmatpush2.msra.mxu0 0.0
    %697 = vmatprep.subr.mxu0 0.0
    %698 = vmatpush2.msra.mxu0 0.0
    %699 = vmatprep.subr.mxu0 0.0
    %700 = vmatpush2.msra.mxu0 0.0
    %701 = vmatprep.subr.mxu0 0.0
    %702 = vmatpush2.msra.mxu0 0.0
    %703 = vmatprep.subr.mxu0 0.0
    %704 = vmatpush2.msra.mxu0 0.0
    %705 = vmatprep.subr.mxu0 0.0
    %706 = vmatpush2.msra.mxu0 0.0
    %707 = vmatprep.subr.mxu0 0.0
    %708 = vmatpush2.msra.mxu0 0.0
    %709 = vmatprep.subr.mxu0 0.0
    %710 = vmatpush2.msra.mxu0 0.0
    %711 = vmatprep.subr.mxu0 0.0
    %712 = vmatpush2.msra.mxu0 0.0
    %713 = vmatprep.mubr.f32.mxu0 0.0
    %v714 = vand.u32 %v548, 4294901760
    %715 = vmatmul.mubr.f32.gmra.mxu0 %v714
    %v716 = vpop.f32.mrf.mxu0
    %v717 = vadd.f32 %v626, %v716
    %v718 = vpop.f32.mrf.mxu0
    %719 = vdwg.mxu0
    %720 = vmatprep.subr.mxu0 0.0
    %721 = vmatpush1.msra.mxu0 0.0
    %722 = vmatprep.subr.mxu0 0.0
    %723 = vmatpush1.msra.mxu0 0.0
    %724 = vmatprep.subr.mxu0 0.0
    %725 = vmatpush1.msra.mxu0 0.0
    %726 = vmatprep.subr.mxu0 0.0
    %727 = vmatpush1.msra.mxu0 0.0
    %728 = vmatprep.subr.mxu0 0.0
    %729 = vmatpush1.msra.mxu0 0.0
    %730 = vmatprep.subr.mxu0 0.0
    %731 = vmatpush1.msra.mxu0 0.0
    %732 = vmatprep.subr.mxu0 0.0
    %733 = vmatpush1.msra.mxu0 0.0
    %734 = vmatprep.subr.mxu0 0.0
    %735 = vmatpush1.msra.mxu0 0.0
    %736 = vmatprep.subr.mxu0 0.0
    %737 = vmatpush1.msra.mxu0 0.0
    %738 = vmatprep.subr.mxu0 0.0
    %739 = vmatpush1.msra.mxu0 0.0
    %740 = vmatprep.subr.mxu0 0.0
    %741 = vmatpush1.msra.mxu0 0.0
    %742 = vmatprep.subr.mxu0 0.0
    %743 = vmatpush1.msra.mxu0 0.0
    %744 = vmatprep.subr.mxu0 0.0
    %v745 = vand.u32 %v545, 4294901760
    %v746 = vsub.f32 %v545, %v745
    %747 = vmatpush1.msra.mxu0 %v746
    %748 = vmatprep.subr.mxu0 0.0
    %v749 = vand.u32 %v544, 4294901760
    %v750 = vsub.f32 %v544, %v749
    %751 = vmatpush1.msra.mxu0 %v750
    %752 = vmatprep.subr.mxu0 0.0
    %v753 = vand.u32 %v543, 4294901760
    %v754 = vsub.f32 %v543, %v753
    %755 = vmatpush1.msra.mxu0 %v754
    %756 = vmatprep.subr.mxu0 0.0
    %v757 = vand.u32 %v542, 4294901760
    %v758 = vsub.f32 %v542, %v757
    %759 = vmatpush1.msra.mxu0 %v758
    %760 = vmatprep.subr.mxu0 0.0
    %761 = vmatpush2.msra.mxu0 0.0
    %762 = vmatprep.subr.mxu0 0.0
    %763 = vmatpush2.msra.mxu0 0.0
    %764 = vmatprep.subr.mxu0 0.0
    %765 = vmatpush2.msra.mxu0 0.0
    %766 = vmatprep.subr.mxu0 0.0
    %767 = vmatpush2.msra.mxu0 0.0
    %768 = vmatprep.subr.mxu0 0.0
    %769 = vmatpush2.msra.mxu0 0.0
    %770 = vmatprep.subr.mxu0 0.0
    %771 = vmatpush2.msra.mxu0 0.0
    %772 = vmatprep.subr.mxu0 0.0
    %773 = vmatpush2.msra.mxu0 0.0
    %774 = vmatprep.subr.mxu0 0.0
    %775 = vmatpush2.msra.mxu0 0.0
    %776 = vmatprep.subr.mxu0 0.0
    %777 = vmatpush2.msra.mxu0 0.0
    %778 = vmatprep.subr.mxu0 0.0
    %779 = vmatpush2.msra.mxu0 0.0
    %780 = vmatprep.subr.mxu0 0.0
    %781 = vmatpush2.msra.mxu0 0.0
    %782 = vmatprep.subr.mxu0 0.0
    %783 = vmatpush2.msra.mxu0 0.0
    %784 = vmatprep.subr.mxu0 0.0
    %785 = vmatpush2.msra.mxu0 0.0
    %786 = vmatprep.subr.mxu0 0.0
    %787 = vmatpush2.msra.mxu0 0.0
    %788 = vmatprep.subr.mxu0 0.0
    %789 = vmatpush2.msra.mxu0 0.0
    %790 = vmatprep.subr.mxu0 0.0
    %791 = vmatpush2.msra.mxu0 0.0
    %792 = vmatprep.mubr.f32.mxu0 0.0
    %v793 = vand.u32 %v548, 4294901760
    %v794 = vsub.f32 %v548, %v793
    %795 = vmatmul.mubr.f32.gmra.mxu0 %v794
    %v796 = vpop.f32.mrf.mxu0
    %v797 = vadd.f32 %v717, %v796
    %v798 = vpop.f32.mrf.mxu0
    %799 = vdwg.mxu0
    %800 = vmatprep.subr.mxu0 0.0
    %801 = vmatpush1.msra.mxu0 0.0
    %802 = vmatprep.subr.mxu0 0.0
    %803 = vmatpush1.msra.mxu0 0.0
    %804 = vmatprep.subr.mxu0 0.0
    %805 = vmatpush1.msra.mxu0 0.0
    %806 = vmatprep.subr.mxu0 0.0
    %807 = vmatpush1.msra.mxu0 0.0
    %808 = vmatprep.subr.mxu0 0.0
    %809 = vmatpush1.msra.mxu0 0.0
    %810 = vmatprep.subr.mxu0 0.0
    %811 = vmatpush1.msra.mxu0 0.0
    %812 = vmatprep.subr.mxu0 0.0
    %813 = vmatpush1.msra.mxu0 0.0
    %814 = vmatprep.subr.mxu0 0.0
    %815 = vmatpush1.msra.mxu0 0.0
    %816 = vmatprep.subr.mxu0 0.0
    %817 = vmatpush1.msra.mxu0 0.0
    %818 = vmatprep.subr.mxu0 0.0
    %819 = vmatpush1.msra.mxu0 0.0
    %820 = vmatprep.subr.mxu0 0.0
    %821 = vmatpush1.msra.mxu0 0.0
    %822 = vmatprep.subr.mxu0 0.0
    %823 = vmatpush1.msra.mxu0 0.0
    %824 = vmatprep.subr.mxu0 0.0
    %v825 = vand.u32 %v545, 4294901760
    %826 = vmatpush1.msra.mxu0 %v825
    %827 = vmatprep.subr.mxu0 0.0
    %v828 = vand.u32 %v544, 4294901760
    %829 = vmatpush1.msra.mxu0 %v828
    %830 = vmatprep.subr.mxu0 0.0
    %v831 = vand.u32 %v543, 4294901760
    %832 = vmatpush1.msra.mxu0 %v831
    %833 = vmatprep.subr.mxu0 0.0
    %v834 = vand.u32 %v542, 4294901760
    %835 = vmatpush1.msra.mxu0 %v834
    %836 = vmatprep.subr.mxu0 0.0
    %837 = vmatpush2.msra.mxu0 0.0
    %838 = vmatprep.subr.mxu0 0.0
    %839 = vmatpush2.msra.mxu0 0.0
    %840 = vmatprep.subr.mxu0 0.0
    %841 = vmatpush2.msra.mxu0 0.0
    %842 = vmatprep.subr.mxu0 0.0
    %843 = vmatpush2.msra.mxu0 0.0
    %844 = vmatprep.subr.mxu0 0.0
    %845 = vmatpush2.msra.mxu0 0.0
    %846 = vmatprep.subr.mxu0 0.0
    %847 = vmatpush2.msra.mxu0 0.0
    %848 = vmatprep.subr.mxu0 0.0
    %849 = vmatpush2.msra.mxu0 0.0
    %850 = vmatprep.subr.mxu0 0.0
    %851 = vmatpush2.msra.mxu0 0.0
    %852 = vmatprep.subr.mxu0 0.0
    %853 = vmatpush2.msra.mxu0 0.0
    %854 = vmatprep.subr.mxu0 0.0
    %855 = vmatpush2.msra.mxu0 0.0
    %856 = vmatprep.subr.mxu0 0.0
    %857 = vmatpush2.msra.mxu0 0.0
    %858 = vmatprep.subr.mxu0 0.0
    %859 = vmatpush2.msra.mxu0 0.0
    %860 = vmatprep.subr.mxu0 0.0
    %861 = vmatpush2.msra.mxu0 0.0
    %862 = vmatprep.subr.mxu0 0.0
    %863 = vmatpush2.msra.mxu0 0.0
    %864 = vmatprep.subr.mxu0 0.0
    %865 = vmatpush2.msra.mxu0 0.0
    %866 = vmatprep.subr.mxu0 0.0
    %867 = vmatpush2.msra.mxu0 0.0
    %868 = vmatprep.mubr.f32.mxu0 0.0
    %v869 = vand.u32 %v548, 4294901760
    %v870 = vsub.f32 %v548, %v869
    %v871 = vand.u32 %v870, 4294901760
    %872 = vmatmul.mubr.f32.gmra.mxu0 %v871
    %v873 = vpop.f32.mrf.mxu0
    %v874 = vadd.f32 %v797, %v873
    %v875 = vpop.f32.mrf.mxu0
    %876 = vdwg.mxu0
    %877 = vmatprep.subr.mxu0 0.0
    %878 = vmatpush1.msra.mxu0 0.0
    %879 = vmatprep.subr.mxu0 0.0
    %880 = vmatpush1.msra.mxu0 0.0
    %881 = vmatprep.subr.mxu0 0.0
    %882 = vmatpush1.msra.mxu0 0.0
    %883 = vmatprep.subr.mxu0 0.0
    %884 = vmatpush1.msra.mxu0 0.0
    %885 = vmatprep.subr.mxu0 0.0
    %886 = vmatpush1.msra.mxu0 0.0
    %887 = vmatprep.subr.mxu0 0.0
    %888 = vmatpush1.msra.mxu0 0.0
    %889 = vmatprep.subr.mxu0 0.0
    %890 = vmatpush1.msra.mxu0 0.0
    %891 = vmatprep.subr.mxu0 0.0
    %892 = vmatpush1.msra.mxu0 0.0
    %893 = vmatprep.subr.mxu0 0.0
    %894 = vmatpush1.msra.mxu0 0.0
    %895 = vmatprep.subr.mxu0 0.0
    %896 = vmatpush1.msra.mxu0 0.0
    %897 = vmatprep.subr.mxu0 0.0
    %898 = vmatpush1.msra.mxu0 0.0
    %899 = vmatprep.subr.mxu0 0.0
    %900 = vmatpush1.msra.mxu0 0.0
    %901 = vmatprep.subr.mxu0 0.0
    %v902 = vand.u32 %v545, 4294901760
    %v903 = vsub.f32 %v545, %v902
    %v904 = vand.u32 %v903, 4294901760
    %905 = vmatpush1.msra.mxu0 %v904
    %906 = vmatprep.subr.mxu0 0.0
    %v907 = vand.u32 %v544, 4294901760
    %v908 = vsub.f32 %v544, %v907
    %v909 = vand.u32 %v908, 4294901760
    %910 = vmatpush1.msra.mxu0 %v909
    %911 = vmatprep.subr.mxu0 0.0
    %v912 = vand.u32 %v543, 4294901760
    %v913 = vsub.f32 %v543, %v912
    %v914 = vand.u32 %v913, 4294901760
    %915 = vmatpush1.msra.mxu0 %v914
    %916 = vmatprep.subr.mxu0 0.0
    %v917 = vand.u32 %v542, 4294901760
    %v918 = vsub.f32 %v542, %v917
    %v919 = vand.u32 %v918, 4294901760
    %920 = vmatpush1.msra.mxu0 %v919
    %921 = vmatprep.subr.mxu0 0.0
    %922 = vmatpush2.msra.mxu0 0.0
    %923 = vmatprep.subr.mxu0 0.0
    %924 = vmatpush2.msra.mxu0 0.0
    %925 = vmatprep.subr.mxu0 0.0
    %926 = vmatpush2.msra.mxu0 0.0
    %927 = vmatprep.subr.mxu0 0.0
    %928 = vmatpush2.msra.mxu0 0.0
    %929 = vmatprep.subr.mxu0 0.0
    %930 = vmatpush2.msra.mxu0 0.0
    %931 = vmatprep.subr.mxu0 0.0
    %932 = vmatpush2.msra.mxu0 0.0
    %933 = vmatprep.subr.mxu0 0.0
    %934 = vmatpush2.msra.mxu0 0.0
    %935 = vmatprep.subr.mxu0 0.0
    %936 = vmatpush2.msra.mxu0 0.0
    %937 = vmatprep.subr.mxu0 0.0
    %938 = vmatpush2.msra.mxu0 0.0
    %939 = vmatprep.subr.mxu0 0.0
    %940 = vmatpush2.msra.mxu0 0.0
    %941 = vmatprep.subr.mxu0 0.0
    %942 = vmatpush2.msra.mxu0 0.0
    %943 = vmatprep.subr.mxu0 0.0
    %944 = vmatpush2.msra.mxu0 0.0
    %945 = vmatprep.subr.mxu0 0.0
    %946 = vmatpush2.msra.mxu0 0.0
    %947 = vmatprep.subr.mxu0 0.0
    %948 = vmatpush2.msra.mxu0 0.0
    %949 = vmatprep.subr.mxu0 0.0
    %950 = vmatpush2.msra.mxu0 0.0
    %951 = vmatprep.subr.mxu0 0.0
    %952 = vmatpush2.msra.mxu0 0.0
    %953 = vmatprep.mubr.f32.mxu0 0.0
    %v954 = vand.u32 %v548, 4294901760
    %955 = vmatmul.mubr.f32.gmra.mxu0 %v954
    %v956 = vpop.f32.mrf.mxu0
    %v957 = vadd.f32 %v874, %v956
    %v958 = vpop.f32.mrf.mxu0
    %959 = vdwg.mxu0
    %960 = vmatprep.subr.mxu0 0.0
    %961 = vmatpush1.msra.mxu0 0.0
    %962 = vmatprep.subr.mxu0 0.0
    %963 = vmatpush1.msra.mxu0 0.0
    %964 = vmatprep.subr.mxu0 0.0
    %965 = vmatpush1.msra.mxu0 0.0
    %966 = vmatprep.subr.mxu0 0.0
    %967 = vmatpush1.msra.mxu0 0.0
    %968 = vmatprep.subr.mxu0 0.0
    %969 = vmatpush1.msra.mxu0 0.0
    %970 = vmatprep.subr.mxu0 0.0
    %971 = vmatpush1.msra.mxu0 0.0
    %972 = vmatprep.subr.mxu0 0.0
    %973 = vmatpush1.msra.mxu0 0.0
    %974 = vmatprep.subr.mxu0 0.0
    %975 = vmatpush1.msra.mxu0 0.0
    %976 = vmatprep.subr.mxu0 0.0
    %977 = vmatpush1.msra.mxu0 0.0
    %978 = vmatprep.subr.mxu0 0.0
    %979 = vmatpush1.msra.mxu0 0.0
    %980 = vmatprep.subr.mxu0 0.0
    %981 = vmatpush1.msra.mxu0 0.0
    %982 = vmatprep.subr.mxu0 0.0
    %983 = vmatpush1.msra.mxu0 0.0
    %984 = vmatprep.subr.mxu0 0.0
    %v985 = vand.u32 %v545, 4294901760
    %986 = vmatpush1.msra.mxu0 %v985
    %987 = vmatprep.subr.mxu0 0.0
    %v988 = vand.u32 %v544, 4294901760
    %989 = vmatpush1.msra.mxu0 %v988
    %990 = vmatprep.subr.mxu0 0.0
    %v991 = vand.u32 %v543, 4294901760
    %992 = vmatpush1.msra.mxu0 %v991
    %993 = vmatprep.subr.mxu0 0.0
    %v994 = vand.u32 %v542, 4294901760
    %995 = vmatpush1.msra.mxu0 %v994
    %996 = vmatprep.subr.mxu0 0.0
    %997 = vmatpush2.msra.mxu0 0.0
    %998 = vmatprep.subr.mxu0 0.0
    %999 = vmatpush2.msra.mxu0 0.0
    %1000 = vmatprep.subr.mxu0 0.0
    %1001 = vmatpush2.msra.mxu0 0.0
    %1002 = vmatprep.subr.mxu0 0.0
    %1003 = vmatpush2.msra.mxu0 0.0
    %1004 = vmatprep.subr.mxu0 0.0
    %1005 = vmatpush2.msra.mxu0 0.0
    %1006 = vmatprep.subr.mxu0 0.0
    %1007 = vmatpush2.msra.mxu0 0.0
    %1008 = vmatprep.subr.mxu0 0.0
    %1009 = vmatpush2.msra.mxu0 0.0
    %1010 = vmatprep.subr.mxu0 0.0
    %1011 = vmatpush2.msra.mxu0 0.0
    %1012 = vmatprep.subr.mxu0 0.0
    %1013 = vmatpush2.msra.mxu0 0.0
    %1014 = vmatprep.subr.mxu0 0.0
    %1015 = vmatpush2.msra.mxu0 0.0
    %1016 = vmatprep.subr.mxu0 0.0
    %1017 = vmatpush2.msra.mxu0 0.0
    %1018 = vmatprep.subr.mxu0 0.0
    %1019 = vmatpush2.msra.mxu0 0.0
    %1020 = vmatprep.subr.mxu0 0.0
    %1021 = vmatpush2.msra.mxu0 0.0
    %1022 = vmatprep.subr.mxu0 0.0
    %1023 = vmatpush2.msra.mxu0 0.0
    %1024 = vmatprep.subr.mxu0 0.0
    %1025 = vmatpush2.msra.mxu0 0.0
    %1026 = vmatprep.subr.mxu0 0.0
    %1027 = vmatpush2.msra.mxu0 0.0
    %1028 = vmatprep.mubr.f32.mxu0 0.0
    %v1029 = vand.u32 %v548, 4294901760
    %1030 = vmatmul.mubr.f32.gmra.mxu0 %v1029
    %v1031 = vpop.f32.mrf.mxu0
    %v1032 = vadd.f32 %v957, %v1031
    %v1033 = vpop.f32.mrf.mxu0
    %1034 = vdwg.mxu0
    %v1035 = vadd.f32 %v541, %v1032
    %v1036 = vxor.u32 %v1035, 2147483648
    %v1037 = vmul.f32 %v1036, 1.442695
    %v1038 = vpow.pop %v1037
    %v1039 = vadd.f32 %v1038, 1.0
    %v1040 = vrcp.pop %v1039
    %v1041 = vmul.f32 1.0, %v1040
    %v1044 = vunpack.c.l.s4 1966171168
    %v1045 = vunpack.c.0.s8 %v1044
    %v1046 = vlaneseq
    %v1047 = vshrl.u32 %v1046, 7
    %v1048 = vsub.s32 %v1045, %v1047
    %v1049 = vrot.slane %v1032, %v1048
    %v1051 = vunpack.c.l.s4 1966171168
    %v1052 = vunpack.c.0.s8 %v1051
    %v1053 = vlaneseq
    %v1054 = vshrl.u32 %v1053, 7
    %v1055 = vsub.s32 %v1052, %v1054
    %v1056 = vrot.slane %v1049, %v1055
    %1057 = vrot.lane.b32.xlu0 %v1056, 64
    %v1058 = vpop.permute.xlu0 %1057
    %v1060 = vmul.f32 %v1041, %v1058
    %1062 = vrot.lane.b32.xlu0 %v1060, 64
    %v1063 = vpop.permute.xlu0 %1062
    %v1065 = vadd.f32 %v541, %v1063
    %v1066 = vtanh.pop %v1065
    %v1067 = vsub.f32 1.0, %v1041
    %1069 = vrot.lane.b32.xlu0 %v1066, 96
    %v1070 = vpop.permute.xlu0 %1069
    %v1072 = vmul.f32 %v1067, %v1070
    %1073 = vrot.lane.b32.xlu0 %v45, 32
    %v1074 = vpop.permute.xlu0 %1073
    %v1076 = vmul.f32 %v1041, %v1074
    %v1077 = vadd.f32 %v1072, %v1076
    %v1078 = vld [vmem:[%s4] sm:$0xff]
    %v1079 = vld [vmem:[%s4 + $0x8] sm:$0xff]
    %v1080 = vld [vmem:[%s4 + $0x10] sm:$0xff]
    %v1081 = vld [vmem:[%s4 + $0x18] sm:$0xff]
    %v1083 = vlaneseq
    %v1084 = vshrl.u32 %v1083, 7
    %v1085 = vsub.s32 0, %v1084
    %v1086 = vrot.slane %v1077, %v1085
    %1087 = vrot.lane.b32.xlu0 %v1086, 96
    %v1088 = vpop.permute.xlu0 %1087
    %v1089 = vsel %vm52, %v1088, 0
    %1091 = vmatprep.subr.mxu0 0.0
    %1092 = vmatpush1.msra.mxu0 0.0
    %1093 = vmatprep.subr.mxu0 0.0
    %1094 = vmatpush1.msra.mxu0 0.0
    %1095 = vmatprep.subr.mxu0 0.0
    %1096 = vmatpush1.msra.mxu0 0.0
    %1097 = vmatprep.subr.mxu0 0.0
    %1098 = vmatpush1.msra.mxu0 0.0
    %1099 = vmatprep.subr.mxu0 0.0
    %1100 = vmatpush1.msra.mxu0 0.0
    %1101 = vmatprep.subr.mxu0 0.0
    %1102 = vmatpush1.msra.mxu0 0.0
    %1103 = vmatprep.subr.mxu0 0.0
    %1104 = vmatpush1.msra.mxu0 0.0
    %1105 = vmatprep.subr.mxu0 0.0
    %1106 = vmatpush1.msra.mxu0 0.0
    %1107 = vmatprep.subr.mxu0 0.0
    %1108 = vmatpush1.msra.mxu0 0.0
    %1109 = vmatprep.subr.mxu0 0.0
    %1110 = vmatpush1.msra.mxu0 0.0
    %1111 = vmatprep.subr.mxu0 0.0
    %1112 = vmatpush1.msra.mxu0 0.0
    %1113 = vmatprep.subr.mxu0 0.0
    %1114 = vmatpush1.msra.mxu0 0.0
    %1115 = vmatprep.subr.mxu0 0.0
    %v1116 = vand.u32 %v1081, 4294901760
    %1117 = vmatpush1.msra.mxu0 %v1116
    %1118 = vmatprep.subr.mxu0 0.0
    %v1119 = vand.u32 %v1080, 4294901760
    %1120 = vmatpush1.msra.mxu0 %v1119
    %1121 = vmatprep.subr.mxu0 0.0
    %v1122 = vand.u32 %v1079, 4294901760
    %1123 = vmatpush1.msra.mxu0 %v1122
    %1124 = vmatprep.subr.mxu0 0.0
    %v1125 = vand.u32 %v1078, 4294901760
    %1126 = vmatpush1.msra.mxu0 %v1125
    %1127 = vmatprep.subr.mxu0 0.0
    %1128 = vmatpush2.msra.mxu0 0.0
    %1129 = vmatprep.subr.mxu0 0.0
    %1130 = vmatpush2.msra.mxu0 0.0
    %1131 = vmatprep.subr.mxu0 0.0
    %1132 = vmatpush2.msra.mxu0 0.0
    %1133 = vmatprep.subr.mxu0 0.0
    %1134 = vmatpush2.msra.mxu0 0.0
    %1135 = vmatprep.subr.mxu0 0.0
    %1136 = vmatpush2.msra.mxu0 0.0
    %1137 = vmatprep.subr.mxu0 0.0
    %1138 = vmatpush2.msra.mxu0 0.0
    %1139 = vmatprep.subr.mxu0 0.0
    %1140 = vmatpush2.msra.mxu0 0.0
    %1141 = vmatprep.subr.mxu0 0.0
    %1142 = vmatpush2.msra.mxu0 0.0
    %1143 = vmatprep.subr.mxu0 0.0
    %1144 = vmatpush2.msra.mxu0 0.0
    %1145 = vmatprep.subr.mxu0 0.0
    %1146 = vmatpush2.msra.mxu0 0.0
    %1147 = vmatprep.subr.mxu0 0.0
    %1148 = vmatpush2.msra.mxu0 0.0
    %1149 = vmatprep.subr.mxu0 0.0
    %1150 = vmatpush2.msra.mxu0 0.0
    %1151 = vmatprep.subr.mxu0 0.0
    %1152 = vmatpush2.msra.mxu0 0.0
    %1153 = vmatprep.subr.mxu0 0.0
    %1154 = vmatpush2.msra.mxu0 0.0
    %1155 = vmatprep.subr.mxu0 0.0
    %1156 = vmatpush2.msra.mxu0 0.0
    %1157 = vmatprep.subr.mxu0 0.0
    %1158 = vmatpush2.msra.mxu0 0.0
    %1159 = vmatprep.mubr.f32.mxu0 0.0
    %v1160 = vand.u32 %v1089, 4294901760
    %v1161 = vsub.f32 %v1089, %v1160
    %v1162 = vand.u32 %v1161, 4294901760
    %v1163 = vsub.f32 %v1161, %v1162
    %v1164 = vand.u32 %v1163, 4294901760
    %1165 = vmatmul.mubr.f32.gmra.mxu0 %v1164
    %v1166 = vpop.f32.mrf.mxu0
    %v1167 = vadd.f32 0.0, %v1166
    %v1168 = vpop.f32.mrf.mxu0
    %1169 = vdwg.mxu0
    %1170 = vmatprep.subr.mxu0 0.0
    %1171 = vmatpush1.msra.mxu0 0.0
    %1172 = vmatprep.subr.mxu0 0.0
    %1173 = vmatpush1.msra.mxu0 0.0
    %1174 = vmatprep.subr.mxu0 0.0
    %1175 = vmatpush1.msra.mxu0 0.0
    %1176 = vmatprep.subr.mxu0 0.0
    %1177 = vmatpush1.msra.mxu0 0.0
    %1178 = vmatprep.subr.mxu0 0.0
    %1179 = vmatpush1.msra.mxu0 0.0
    %1180 = vmatprep.subr.mxu0 0.0
    %1181 = vmatpush1.msra.mxu0 0.0
    %1182 = vmatprep.subr.mxu0 0.0
    %1183 = vmatpush1.msra.mxu0 0.0
    %1184 = vmatprep.subr.mxu0 0.0
    %1185 = vmatpush1.msra.mxu0 0.0
    %1186 = vmatprep.subr.mxu0 0.0
    %1187 = vmatpush1.msra.mxu0 0.0
    %1188 = vmatprep.subr.mxu0 0.0
    %1189 = vmatpush1.msra.mxu0 0.0
    %1190 = vmatprep.subr.mxu0 0.0
    %1191 = vmatpush1.msra.mxu0 0.0
    %1192 = vmatprep.subr.mxu0 0.0
    %1193 = vmatpush1.msra.mxu0 0.0
    %1194 = vmatprep.subr.mxu0 0.0
    %v1195 = vand.u32 %v1081, 4294901760
    %v1196 = vsub.f32 %v1081, %v1195
    %v1197 = vand.u32 %v1196, 4294901760
    %v1198 = vsub.f32 %v1196, %v1197
    %v1199 = vand.u32 %v1198, 4294901760
    %1200 = vmatpush1.msra.mxu0 %v1199
    %1201 = vmatprep.subr.mxu0 0.0
    %v1202 = vand.u32 %v1080, 4294901760
    %v1203 = vsub.f32 %v1080, %v1202
    %v1204 = vand.u32 %v1203, 4294901760
    %v1205 = vsub.f32 %v1203, %v1204
    %v1206 = vand.u32 %v1205, 4294901760
    %1207 = vmatpush1.msra.mxu0 %v1206
    %1208 = vmatprep.subr.mxu0 0.0
    %v1209 = vand.u32 %v1079, 4294901760
    %v1210 = vsub.f32 %v1079, %v1209
    %v1211 = vand.u32 %v1210, 4294901760
    %v1212 = vsub.f32 %v1210, %v1211
    %v1213 = vand.u32 %v1212, 4294901760
    %1214 = vmatpush1.msra.mxu0 %v1213
    %1215 = vmatprep.subr.mxu0 0.0
    %v1216 = vand.u32 %v1078, 4294901760
    %v1217 = vsub.f32 %v1078, %v1216
    %v1218 = vand.u32 %v1217, 4294901760
    %v1219 = vsub.f32 %v1217, %v1218
    %v1220 = vand.u32 %v1219, 4294901760
    %1221 = vmatpush1.msra.mxu0 %v1220
    %1222 = vmatprep.subr.mxu0 0.0
    %1223 = vmatpush2.msra.mxu0 0.0
    %1224 = vmatprep.subr.mxu0 0.0
    %1225 = vmatpush2.msra.mxu0 0.0
    %1226 = vmatprep.subr.mxu0 0.0
    %1227 = vmatpush2.msra.mxu0 0.0
    %1228 = vmatprep.subr.mxu0 0.0
    %1229 = vmatpush2.msra.mxu0 0.0
    %1230 = vmatprep.subr.mxu0 0.0
    %1231 = vmatpush2.msra.mxu0 0.0
    %1232 = vmatprep.subr.mxu0 0.0
    %1233 = vmatpush2.msra.mxu0 0.0
    %1234 = vmatprep.subr.mxu0 0.0
    %1235 = vmatpush2.msra.mxu0 0.0
    %1236 = vmatprep.subr.mxu0 0.0
    %1237 = vmatpush2.msra.mxu0 0.0
    %1238 = vmatprep.subr.mxu0 0.0
    %1239 = vmatpush2.msra.mxu0 0.0
    %1240 = vmatprep.subr.mxu0 0.0
    %1241 = vmatpush2.msra.mxu0 0.0
    %1242 = vmatprep.subr.mxu0 0.0
    %1243 = vmatpush2.msra.mxu0 0.0
    %1244 = vmatprep.subr.mxu0 0.0
    %1245 = vmatpush2.msra.mxu0 0.0
    %1246 = vmatprep.subr.mxu0 0.0
    %1247 = vmatpush2.msra.mxu0 0.0
    %1248 = vmatprep.subr.mxu0 0.0
    %1249 = vmatpush2.msra.mxu0 0.0
    %1250 = vmatprep.subr.mxu0 0.0
    %1251 = vmatpush2.msra.mxu0 0.0
    %1252 = vmatprep.subr.mxu0 0.0
    %1253 = vmatpush2.msra.mxu0 0.0
    %1254 = vmatprep.mubr.f32.mxu0 0.0
    %v1255 = vand.u32 %v1089, 4294901760
    %1256 = vmatmul.mubr.f32.gmra.mxu0 %v1255
    %v1257 = vpop.f32.mrf.mxu0
    %v1258 = vadd.f32 %v1167, %v1257
    %v1259 = vpop.f32.mrf.mxu0
    %1260 = vdwg.mxu0
    %1261 = vmatprep.subr.mxu0 0.0
    %1262 = vmatpush1.msra.mxu0 0.0
    %1263 = vmatprep.subr.mxu0 0.0
    %1264 = vmatpush1.msra.mxu0 0.0
    %1265 = vmatprep.subr.mxu0 0.0
    %1266 = vmatpush1.msra.mxu0 0.0
    %1267 = vmatprep.subr.mxu0 0.0
    %1268 = vmatpush1.msra.mxu0 0.0
    %1269 = vmatprep.subr.mxu0 0.0
    %1270 = vmatpush1.msra.mxu0 0.0
    %1271 = vmatprep.subr.mxu0 0.0
    %1272 = vmatpush1.msra.mxu0 0.0
    %1273 = vmatprep.subr.mxu0 0.0
    %1274 = vmatpush1.msra.mxu0 0.0
    %1275 = vmatprep.subr.mxu0 0.0
    %1276 = vmatpush1.msra.mxu0 0.0
    %1277 = vmatprep.subr.mxu0 0.0
    %1278 = vmatpush1.msra.mxu0 0.0
    %1279 = vmatprep.subr.mxu0 0.0
    %1280 = vmatpush1.msra.mxu0 0.0
    %1281 = vmatprep.subr.mxu0 0.0
    %1282 = vmatpush1.msra.mxu0 0.0
    %1283 = vmatprep.subr.mxu0 0.0
    %1284 = vmatpush1.msra.mxu0 0.0
    %1285 = vmatprep.subr.mxu0 0.0
    %v1286 = vand.u32 %v1081, 4294901760
    %v1287 = vsub.f32 %v1081, %v1286
    %1288 = vmatpush1.msra.mxu0 %v1287
    %1289 = vmatprep.subr.mxu0 0.0
    %v1290 = vand.u32 %v1080, 4294901760
    %v1291 = vsub.f32 %v1080, %v1290
    %1292 = vmatpush1.msra.mxu0 %v1291
    %1293 = vmatprep.subr.mxu0 0.0
    %v1294 = vand.u32 %v1079, 4294901760
    %v1295 = vsub.f32 %v1079, %v1294
    %1296 = vmatpush1.msra.mxu0 %v1295
    %1297 = vmatprep.subr.mxu0 0.0
    %v1298 = vand.u32 %v1078, 4294901760
    %v1299 = vsub.f32 %v1078, %v1298
    %1300 = vmatpush1.msra.mxu0 %v1299
    %1301 = vmatprep.subr.mxu0 0.0
    %1302 = vmatpush2.msra.mxu0 0.0
    %1303 = vmatprep.subr.mxu0 0.0
    %1304 = vmatpush2.msra.mxu0 0.0
    %1305 = vmatprep.subr.mxu0 0.0
    %1306 = vmatpush2.msra.mxu0 0.0
    %1307 = vmatprep.subr.mxu0 0.0
    %1308 = vmatpush2.msra.mxu0 0.0
    %1309 = vmatprep.subr.mxu0 0.0
    %1310 = vmatpush2.msra.mxu0 0.0
    %1311 = vmatprep.subr.mxu0 0.0
    %1312 = vmatpush2.msra.mxu0 0.0
    %1313 = vmatprep.subr.mxu0 0.0
    %1314 = vmatpush2.msra.mxu0 0.0
    %1315 = vmatprep.subr.mxu0 0.0
    %1316 = vmatpush2.msra.mxu0 0.0
    %1317 = vmatprep.subr.mxu0 0.0
    %1318 = vmatpush2.msra.mxu0 0.0
    %1319 = vmatprep.subr.mxu0 0.0
    %1320 = vmatpush2.msra.mxu0 0.0
    %1321 = vmatprep.subr.mxu0 0.0
    %1322 = vmatpush2.msra.mxu0 0.0
    %1323 = vmatprep.subr.mxu0 0.0
    %1324 = vmatpush2.msra.mxu0 0.0
    %1325 = vmatprep.subr.mxu0 0.0
    %1326 = vmatpush2.msra.mxu0 0.0
    %1327 = vmatprep.subr.mxu0 0.0
    %1328 = vmatpush2.msra.mxu0 0.0
    %1329 = vmatprep.subr.mxu0 0.0
    %1330 = vmatpush2.msra.mxu0 0.0
    %1331 = vmatprep.subr.mxu0 0.0
    %1332 = vmatpush2.msra.mxu0 0.0
    %1333 = vmatprep.mubr.f32.mxu0 0.0
    %v1334 = vand.u32 %v1089, 4294901760
    %v1335 = vsub.f32 %v1089, %v1334
    %1336 = vmatmul.mubr.f32.gmra.mxu0 %v1335
    %v1337 = vpop.f32.mrf.mxu0
    %v1338 = vadd.f32 %v1258, %v1337
    %v1339 = vpop.f32.mrf.mxu0
    %1340 = vdwg.mxu0
    %1341 = vmatprep.subr.mxu0 0.0
    %1342 = vmatpush1.msra.mxu0 0.0
    %1343 = vmatprep.subr.mxu0 0.0
    %1344 = vmatpush1.msra.mxu0 0.0
    %1345 = vmatprep.subr.mxu0 0.0
    %1346 = vmatpush1.msra.mxu0 0.0
    %1347 = vmatprep.subr.mxu0 0.0
    %1348 = vmatpush1.msra.mxu0 0.0
    %1349 = vmatprep.subr.mxu0 0.0
    %1350 = vmatpush1.msra.mxu0 0.0
    %1351 = vmatprep.subr.mxu0 0.0
    %1352 = vmatpush1.msra.mxu0 0.0
    %1353 = vmatprep.subr.mxu0 0.0
    %1354 = vmatpush1.msra.mxu0 0.0
    %1355 = vmatprep.subr.mxu0 0.0
    %1356 = vmatpush1.msra.mxu0 0.0
    %1357 = vmatprep.subr.mxu0 0.0
    %1358 = vmatpush1.msra.mxu0 0.0
    %1359 = vmatprep.subr.mxu0 0.0
    %1360 = vmatpush1.msra.mxu0 0.0
    %1361 = vmatprep.subr.mxu0 0.0
    %1362 = vmatpush1.msra.mxu0 0.0
    %1363 = vmatprep.subr.mxu0 0.0
    %1364 = vmatpush1.msra.mxu0 0.0
    %1365 = vmatprep.subr.mxu0 0.0
    %v1366 = vand.u32 %v1081, 4294901760
    %1367 = vmatpush1.msra.mxu0 %v1366
    %1368 = vmatprep.subr.mxu0 0.0
    %v1369 = vand.u32 %v1080, 4294901760
    %1370 = vmatpush1.msra.mxu0 %v1369
    %1371 = vmatprep.subr.mxu0 0.0
    %v1372 = vand.u32 %v1079, 4294901760
    %1373 = vmatpush1.msra.mxu0 %v1372
    %1374 = vmatprep.subr.mxu0 0.0
    %v1375 = vand.u32 %v1078, 4294901760
    %1376 = vmatpush1.msra.mxu0 %v1375
    %1377 = vmatprep.subr.mxu0 0.0
    %1378 = vmatpush2.msra.mxu0 0.0
    %1379 = vmatprep.subr.mxu0 0.0
    %1380 = vmatpush2.msra.mxu0 0.0
    %1381 = vmatprep.subr.mxu0 0.0
    %1382 = vmatpush2.msra.mxu0 0.0
    %1383 = vmatprep.subr.mxu0 0.0
    %1384 = vmatpush2.msra.mxu0 0.0
    %1385 = vmatprep.subr.mxu0 0.0
    %1386 = vmatpush2.msra.mxu0 0.0
    %1387 = vmatprep.subr.mxu0 0.0
    %1388 = vmatpush2.msra.mxu0 0.0
    %1389 = vmatprep.subr.mxu0 0.0
    %1390 = vmatpush2.msra.mxu0 0.0
    %1391 = vmatprep.subr.mxu0 0.0
    %1392 = vmatpush2.msra.mxu0 0.0
    %1393 = vmatprep.subr.mxu0 0.0
    %1394 = vmatpush2.msra.mxu0 0.0
    %1395 = vmatprep.subr.mxu0 0.0
    %1396 = vmatpush2.msra.mxu0 0.0
    %1397 = vmatprep.subr.mxu0 0.0
    %1398 = vmatpush2.msra.mxu0 0.0
    %1399 = vmatprep.subr.mxu0 0.0
    %1400 = vmatpush2.msra.mxu0 0.0
    %1401 = vmatprep.subr.mxu0 0.0
    %1402 = vmatpush2.msra.mxu0 0.0
    %1403 = vmatprep.subr.mxu0 0.0
    %1404 = vmatpush2.msra.mxu0 0.0
    %1405 = vmatprep.subr.mxu0 0.0
    %1406 = vmatpush2.msra.mxu0 0.0
    %1407 = vmatprep.subr.mxu0 0.0
    %1408 = vmatpush2.msra.mxu0 0.0
    %1409 = vmatprep.mubr.f32.mxu0 0.0
    %v1410 = vand.u32 %v1089, 4294901760
    %v1411 = vsub.f32 %v1089, %v1410
    %v1412 = vand.u32 %v1411, 4294901760
    %1413 = vmatmul.mubr.f32.gmra.mxu0 %v1412
    %v1414 = vpop.f32.mrf.mxu0
    %v1415 = vadd.f32 %v1338, %v1414
    %v1416 = vpop.f32.mrf.mxu0
    %1417 = vdwg.mxu0
    %1418 = vmatprep.subr.mxu0 0.0
    %1419 = vmatpush1.msra.mxu0 0.0
    %1420 = vmatprep.subr.mxu0 0.0
    %1421 = vmatpush1.msra.mxu0 0.0
    %1422 = vmatprep.subr.mxu0 0.0
    %1423 = vmatpush1.msra.mxu0 0.0
    %1424 = vmatprep.subr.mxu0 0.0
    %1425 = vmatpush1.msra.mxu0 0.0
    %1426 = vmatprep.subr.mxu0 0.0
    %1427 = vmatpush1.msra.mxu0 0.0
    %1428 = vmatprep.subr.mxu0 0.0
    %1429 = vmatpush1.msra.mxu0 0.0
    %1430 = vmatprep.subr.mxu0 0.0
    %1431 = vmatpush1.msra.mxu0 0.0
    %1432 = vmatprep.subr.mxu0 0.0
    %1433 = vmatpush1.msra.mxu0 0.0
    %1434 = vmatprep.subr.mxu0 0.0
    %1435 = vmatpush1.msra.mxu0 0.0
    %1436 = vmatprep.subr.mxu0 0.0
    %1437 = vmatpush1.msra.mxu0 0.0
    %1438 = vmatprep.subr.mxu0 0.0
    %1439 = vmatpush1.msra.mxu0 0.0
    %1440 = vmatprep.subr.mxu0 0.0
    %1441 = vmatpush1.msra.mxu0 0.0
    %1442 = vmatprep.subr.mxu0 0.0
    %v1443 = vand.u32 %v1081, 4294901760
    %v1444 = vsub.f32 %v1081, %v1443
    %v1445 = vand.u32 %v1444, 4294901760
    %1446 = vmatpush1.msra.mxu0 %v1445
    %1447 = vmatprep.subr.mxu0 0.0
    %v1448 = vand.u32 %v1080, 4294901760
    %v1449 = vsub.f32 %v1080, %v1448
    %v1450 = vand.u32 %v1449, 4294901760
    %1451 = vmatpush1.msra.mxu0 %v1450
    %1452 = vmatprep.subr.mxu0 0.0
    %v1453 = vand.u32 %v1079, 4294901760
    %v1454 = vsub.f32 %v1079, %v1453
    %v1455 = vand.u32 %v1454, 4294901760
    %1456 = vmatpush1.msra.mxu0 %v1455
    %1457 = vmatprep.subr.mxu0 0.0
    %v1458 = vand.u32 %v1078, 4294901760
    %v1459 = vsub.f32 %v1078, %v1458
    %v1460 = vand.u32 %v1459, 4294901760
    %1461 = vmatpush1.msra.mxu0 %v1460
    %1462 = vmatprep.subr.mxu0 0.0
    %1463 = vmatpush2.msra.mxu0 0.0
    %1464 = vmatprep.subr.mxu0 0.0
    %1465 = vmatpush2.msra.mxu0 0.0
    %1466 = vmatprep.subr.mxu0 0.0
    %1467 = vmatpush2.msra.mxu0 0.0
    %1468 = vmatprep.subr.mxu0 0.0
    %1469 = vmatpush2.msra.mxu0 0.0
    %1470 = vmatprep.subr.mxu0 0.0
    %1471 = vmatpush2.msra.mxu0 0.0
    %1472 = vmatprep.subr.mxu0 0.0
    %1473 = vmatpush2.msra.mxu0 0.0
    %1474 = vmatprep.subr.mxu0 0.0
    %1475 = vmatpush2.msra.mxu0 0.0
    %1476 = vmatprep.subr.mxu0 0.0
    %1477 = vmatpush2.msra.mxu0 0.0
    %1478 = vmatprep.subr.mxu0 0.0
    %1479 = vmatpush2.msra.mxu0 0.0
    %1480 = vmatprep.subr.mxu0 0.0
    %1481 = vmatpush2.msra.mxu0 0.0
    %1482 = vmatprep.subr.mxu0 0.0
    %1483 = vmatpush2.msra.mxu0 0.0
    %1484 = vmatprep.subr.mxu0 0.0
    %1485 = vmatpush2.msra.mxu0 0.0
    %1486 = vmatprep.subr.mxu0 0.0
    %1487 = vmatpush2.msra.mxu0 0.0
    %1488 = vmatprep.subr.mxu0 0.0
    %1489 = vmatpush2.msra.mxu0 0.0
    %1490 = vmatprep.subr.mxu0 0.0
    %1491 = vmatpush2.msra.mxu0 0.0
    %1492 = vmatprep.subr.mxu0 0.0
    %1493 = vmatpush2.msra.mxu0 0.0
    %1494 = vmatprep.mubr.f32.mxu0 0.0
    %v1495 = vand.u32 %v1089, 4294901760
    %1496 = vmatmul.mubr.f32.gmra.mxu0 %v1495
    %v1497 = vpop.f32.mrf.mxu0
    %v1498 = vadd.f32 %v1415, %v1497
    %v1499 = vpop.f32.mrf.mxu0
    %1500 = vdwg.mxu0
    %1501 = vmatprep.subr.mxu0 0.0
    %1502 = vmatpush1.msra.mxu0 0.0
    %1503 = vmatprep.subr.mxu0 0.0
    %1504 = vmatpush1.msra.mxu0 0.0
    %1505 = vmatprep.subr.mxu0 0.0
    %1506 = vmatpush1.msra.mxu0 0.0
    %1507 = vmatprep.subr.mxu0 0.0
    %1508 = vmatpush1.msra.mxu0 0.0
    %1509 = vmatprep.subr.mxu0 0.0
    %1510 = vmatpush1.msra.mxu0 0.0
    %1511 = vmatprep.subr.mxu0 0.0
    %1512 = vmatpush1.msra.mxu0 0.0
    %1513 = vmatprep.subr.mxu0 0.0
    %1514 = vmatpush1.msra.mxu0 0.0
    %1515 = vmatprep.subr.mxu0 0.0
    %1516 = vmatpush1.msra.mxu0 0.0
    %1517 = vmatprep.subr.mxu0 0.0
    %1518 = vmatpush1.msra.mxu0 0.0
    %1519 = vmatprep.subr.mxu0 0.0
    %1520 = vmatpush1.msra.mxu0 0.0
    %1521 = vmatprep.subr.mxu0 0.0
    %1522 = vmatpush1.msra.mxu0 0.0
    %1523 = vmatprep.subr.mxu0 0.0
    %1524 = vmatpush1.msra.mxu0 0.0
    %1525 = vmatprep.subr.mxu0 0.0
    %v1526 = vand.u32 %v1081, 4294901760
    %1527 = vmatpush1.msra.mxu0 %v1526
    %1528 = vmatprep.subr.mxu0 0.0
    %v1529 = vand.u32 %v1080, 4294901760
    %1530 = vmatpush1.msra.mxu0 %v1529
    %1531 = vmatprep.subr.mxu0 0.0
    %v1532 = vand.u32 %v1079, 4294901760
    %1533 = vmatpush1.msra.mxu0 %v1532
    %1534 = vmatprep.subr.mxu0 0.0
    %v1535 = vand.u32 %v1078, 4294901760
    %1536 = vmatpush1.msra.mxu0 %v1535
    %1537 = vmatprep.subr.mxu0 0.0
    %1538 = vmatpush2.msra.mxu0 0.0
    %1539 = vmatprep.subr.mxu0 0.0
    %1540 = vmatpush2.msra.mxu0 0.0
    %1541 = vmatprep.subr.mxu0 0.0
    %1542 = vmatpush2.msra.mxu0 0.0
    %1543 = vmatprep.subr.mxu0 0.0
    %1544 = vmatpush2.msra.mxu0 0.0
    %1545 = vmatprep.subr.mxu0 0.0
    %1546 = vmatpush2.msra.mxu0 0.0
    %1547 = vmatprep.subr.mxu0 0.0
    %1548 = vmatpush2.msra.mxu0 0.0
    %1549 = vmatprep.subr.mxu0 0.0
    %1550 = vmatpush2.msra.mxu0 0.0
    %1551 = vmatprep.subr.mxu0 0.0
    %1552 = vmatpush2.msra.mxu0 0.0
    %1553 = vmatprep.subr.mxu0 0.0
    %1554 = vmatpush2.msra.mxu0 0.0
    %1555 = vmatprep.subr.mxu0 0.0
    %1556 = vmatpush2.msra.mxu0 0.0
    %1557 = vmatprep.subr.mxu0 0.0
    %1558 = vmatpush2.msra.mxu0 0.0
    %1559 = vmatprep.subr.mxu0 0.0
    %1560 = vmatpush2.msra.mxu0 0.0
    %1561 = vmatprep.subr.mxu0 0.0
    %1562 = vmatpush2.msra.mxu0 0.0
    %1563 = vmatprep.subr.mxu0 0.0
    %1564 = vmatpush2.msra.mxu0 0.0
    %1565 = vmatprep.subr.mxu0 0.0
    %1566 = vmatpush2.msra.mxu0 0.0
    %1567 = vmatprep.subr.mxu0 0.0
    %1568 = vmatpush2.msra.mxu0 0.0
    %1569 = vmatprep.mubr.f32.mxu0 0.0
    %v1570 = vand.u32 %v1089, 4294901760
    %1571 = vmatmul.mubr.f32.gmra.mxu0 %v1570
    %v1572 = vpop.f32.mrf.mxu0
    %v1573 = vadd.f32 %v1498, %v1572
    %v1574 = vpop.f32.mrf.mxu0
    %1575 = vdwg.mxu0
    %vm1576 = vcmask 57344
    %v1577 = vsel %vm1576, %v1573, -inf
    %1578 = vmax.xlane.f32.xlu0 %v1577
    %v1579 = vpop.xlane.xlu0 %1578
    %v1580 = vsub.f32 %v1573, %v1579
    %v1581 = vmul.f32 %v1580, 1.442695
    %v1582 = vpow.pop %v1581
    %v1583 = vsel %vm1576, %v1582, 0.0
    %1584 = vadd.xlane.f32.xlu0 %v1583
    %v1585 = vpop.xlane.xlu0 %1584
    %v1586 = vrcp.pop %v1585
    %v1587 = vmul.f32 %v1582, %v1586
    %v1588 = vld [vmem:[%s3] sm:$0xff]
    %vm1589 = vcmask 64512
    %v1591 = vsel %vm1589, %v1587, 0
    %1593 = vmatprep.subr.mxu0 0.0
    %1594 = vmatpush1.msra.mxu0 0.0
    %1595 = vmatprep.subr.mxu0 0.0
    %1596 = vmatpush1.msra.mxu0 0.0
    %1597 = vmatprep.subr.mxu0 0.0
    %1598 = vmatpush1.msra.mxu0 0.0
    %1599 = vmatprep.subr.mxu0 0.0
    %1600 = vmatpush1.msra.mxu0 0.0
    %1601 = vmatprep.subr.mxu0 0.0
    %1602 = vmatpush1.msra.mxu0 0.0
    %1603 = vmatprep.subr.mxu0 0.0
    %1604 = vmatpush1.msra.mxu0 0.0
    %1605 = vmatprep.subr.mxu0 0.0
    %1606 = vmatpush1.msra.mxu0 0.0
    %1607 = vmatprep.subr.mxu0 0.0
    %1608 = vmatpush1.msra.mxu0 0.0
    %1609 = vmatprep.subr.mxu0 0.0
    %1610 = vmatpush1.msra.mxu0 0.0
    %1611 = vmatprep.subr.mxu0 0.0
    %1612 = vmatpush1.msra.mxu0 0.0
    %1613 = vmatprep.subr.mxu0 0.0
    %1614 = vmatpush1.msra.mxu0 0.0
    %1615 = vmatprep.subr.mxu0 0.0
    %1616 = vmatpush1.msra.mxu0 0.0
    %1617 = vmatprep.subr.mxu0 0.0
    %1618 = vmatpush1.msra.mxu0 0.0
    %1619 = vmatprep.subr.mxu0 0.0
    %1620 = vmatpush1.msra.mxu0 0.0
    %1621 = vmatprep.subr.mxu0 0.0
    %1622 = vmatpush1.msra.mxu0 0.0
    %1623 = vmatprep.subr.mxu0 0.0
    %v1624 = vand.u32 %v1588, 4294901760
    %1625 = vmatpush1.msra.mxu0 %v1624
    %1626 = vmatprep.subr.mxu0 0.0
    %1627 = vmatpush2.msra.mxu0 0.0
    %1628 = vmatprep.subr.mxu0 0.0
    %1629 = vmatpush2.msra.mxu0 0.0
    %1630 = vmatprep.subr.mxu0 0.0
    %1631 = vmatpush2.msra.mxu0 0.0
    %1632 = vmatprep.subr.mxu0 0.0
    %1633 = vmatpush2.msra.mxu0 0.0
    %1634 = vmatprep.subr.mxu0 0.0
    %1635 = vmatpush2.msra.mxu0 0.0
    %1636 = vmatprep.subr.mxu0 0.0
    %1637 = vmatpush2.msra.mxu0 0.0
    %1638 = vmatprep.subr.mxu0 0.0
    %1639 = vmatpush2.msra.mxu0 0.0
    %1640 = vmatprep.subr.mxu0 0.0
    %1641 = vmatpush2.msra.mxu0 0.0
    %1642 = vmatprep.subr.mxu0 0.0
    %1643 = vmatpush2.msra.mxu0 0.0
    %1644 = vmatprep.subr.mxu0 0.0
    %1645 = vmatpush2.msra.mxu0 0.0
    %1646 = vmatprep.subr.mxu0 0.0
    %1647 = vmatpush2.msra.mxu0 0.0
    %1648 = vmatprep.subr.mxu0 0.0
    %1649 = vmatpush2.msra.mxu0 0.0
    %1650 = vmatprep.subr.mxu0 0.0
    %1651 = vmatpush2.msra.mxu0 0.0
    %1652 = vmatprep.subr.mxu0 0.0
    %1653 = vmatpush2.msra.mxu0 0.0
    %1654 = vmatprep.subr.mxu0 0.0
    %1655 = vmatpush2.msra.mxu0 0.0
    %1656 = vmatprep.subr.mxu0 0.0
    %1657 = vmatpush2.msra.mxu0 0.0
    %1658 = vmatprep.mubr.f32.mxu0 0.0
    %v1659 = vand.u32 %v1591, 4294901760
    %v1660 = vsub.f32 %v1591, %v1659
    %v1661 = vand.u32 %v1660, 4294901760
    %v1662 = vsub.f32 %v1660, %v1661
    %v1663 = vand.u32 %v1662, 4294901760
    %1664 = vmatmul.mubr.f32.gmra.mxu0 %v1663
    %v1665 = vpop.f32.mrf.mxu0
    %v1666 = vadd.f32 0.0, %v1665
    %v1667 = vpop.f32.mrf.mxu0
    %1668 = vdwg.mxu0
    %1669 = vmatprep.subr.mxu0 0.0
    %1670 = vmatpush1.msra.mxu0 0.0
    %1671 = vmatprep.subr.mxu0 0.0
    %1672 = vmatpush1.msra.mxu0 0.0
    %1673 = vmatprep.subr.mxu0 0.0
    %1674 = vmatpush1.msra.mxu0 0.0
    %1675 = vmatprep.subr.mxu0 0.0
    %1676 = vmatpush1.msra.mxu0 0.0
    %1677 = vmatprep.subr.mxu0 0.0
    %1678 = vmatpush1.msra.mxu0 0.0
    %1679 = vmatprep.subr.mxu0 0.0
    %1680 = vmatpush1.msra.mxu0 0.0
    %1681 = vmatprep.subr.mxu0 0.0
    %1682 = vmatpush1.msra.mxu0 0.0
    %1683 = vmatprep.subr.mxu0 0.0
    %1684 = vmatpush1.msra.mxu0 0.0
    %1685 = vmatprep.subr.mxu0 0.0
    %1686 = vmatpush1.msra.mxu0 0.0
    %1687 = vmatprep.subr.mxu0 0.0
    %1688 = vmatpush1.msra.mxu0 0.0
    %1689 = vmatprep.subr.mxu0 0.0
    %1690 = vmatpush1.msra.mxu0 0.0
    %1691 = vmatprep.subr.mxu0 0.0
    %1692 = vmatpush1.msra.mxu0 0.0
    %1693 = vmatprep.subr.mxu0 0.0
    %1694 = vmatpush1.msra.mxu0 0.0
    %1695 = vmatprep.subr.mxu0 0.0
    %1696 = vmatpush1.msra.mxu0 0.0
    %1697 = vmatprep.subr.mxu0 0.0
    %1698 = vmatpush1.msra.mxu0 0.0
    %1699 = vmatprep.subr.mxu0 0.0
    %v1700 = vand.u32 %v1588, 4294901760
    %v1701 = vsub.f32 %v1588, %v1700
    %v1702 = vand.u32 %v1701, 4294901760
    %v1703 = vsub.f32 %v1701, %v1702
    %v1704 = vand.u32 %v1703, 4294901760
    %1705 = vmatpush1.msra.mxu0 %v1704
    %1706 = vmatprep.subr.mxu0 0.0
    %1707 = vmatpush2.msra.mxu0 0.0
    %1708 = vmatprep.subr.mxu0 0.0
    %1709 = vmatpush2.msra.mxu0 0.0
    %1710 = vmatprep.subr.mxu0 0.0
    %1711 = vmatpush2.msra.mxu0 0.0
    %1712 = vmatprep.subr.mxu0 0.0
    %1713 = vmatpush2.msra.mxu0 0.0
    %1714 = vmatprep.subr.mxu0 0.0
    %1715 = vmatpush2.msra.mxu0 0.0
    %1716 = vmatprep.subr.mxu0 0.0
    %1717 = vmatpush2.msra.mxu0 0.0
    %1718 = vmatprep.subr.mxu0 0.0
    %1719 = vmatpush2.msra.mxu0 0.0
    %1720 = vmatprep.subr.mxu0 0.0
    %1721 = vmatpush2.msra.mxu0 0.0
    %1722 = vmatprep.subr.mxu0 0.0
    %1723 = vmatpush2.msra.mxu0 0.0
    %1724 = vmatprep.subr.mxu0 0.0
    %1725 = vmatpush2.msra.mxu0 0.0
    %1726 = vmatprep.subr.mxu0 0.0
    %1727 = vmatpush2.msra.mxu0 0.0
    %1728 = vmatprep.subr.mxu0 0.0
    %1729 = vmatpush2.msra.mxu0 0.0
    %1730 = vmatprep.subr.mxu0 0.0
    %1731 = vmatpush2.msra.mxu0 0.0
    %1732 = vmatprep.subr.mxu0 0.0
    %1733 = vmatpush2.msra.mxu0 0.0
    %1734 = vmatprep.subr.mxu0 0.0
    %1735 = vmatpush2.msra.mxu0 0.0
    %1736 = vmatprep.subr.mxu0 0.0
    %1737 = vmatpush2.msra.mxu0 0.0
    %1738 = vmatprep.mubr.f32.mxu0 0.0
    %v1739 = vand.u32 %v1591, 4294901760
    %1740 = vmatmul.mubr.f32.gmra.mxu0 %v1739
    %v1741 = vpop.f32.mrf.mxu0
    %v1742 = vadd.f32 %v1666, %v1741
    %v1743 = vpop.f32.mrf.mxu0
    %1744 = vdwg.mxu0
    %1745 = vmatprep.subr.mxu0 0.0
    %1746 = vmatpush1.msra.mxu0 0.0
    %1747 = vmatprep.subr.mxu0 0.0
    %1748 = vmatpush1.msra.mxu0 0.0
    %1749 = vmatprep.subr.mxu0 0.0
    %1750 = vmatpush1.msra.mxu0 0.0
    %1751 = vmatprep.subr.mxu0 0.0
    %1752 = vmatpush1.msra.mxu0 0.0
    %1753 = vmatprep.subr.mxu0 0.0
    %1754 = vmatpush1.msra.mxu0 0.0
    %1755 = vmatprep.subr.mxu0 0.0
    %1756 = vmatpush1.msra.mxu0 0.0
    %1757 = vmatprep.subr.mxu0 0.0
    %1758 = vmatpush1.msra.mxu0 0.0
    %1759 = vmatprep.subr.mxu0 0.0
    %1760 = vmatpush1.msra.mxu0 0.0
    %1761 = vmatprep.subr.mxu0 0.0
    %1762 = vmatpush1.msra.mxu0 0.0
    %1763 = vmatprep.subr.mxu0 0.0
    %1764 = vmatpush1.msra.mxu0 0.0
    %1765 = vmatprep.subr.mxu0 0.0
    %1766 = vmatpush1.msra.mxu0 0.0
    %1767 = vmatprep.subr.mxu0 0.0
    %1768 = vmatpush1.msra.mxu0 0.0
    %1769 = vmatprep.subr.mxu0 0.0
    %1770 = vmatpush1.msra.mxu0 0.0
    %1771 = vmatprep.subr.mxu0 0.0
    %1772 = vmatpush1.msra.mxu0 0.0
    %1773 = vmatprep.subr.mxu0 0.0
    %1774 = vmatpush1.msra.mxu0 0.0
    %1775 = vmatprep.subr.mxu0 0.0
    %v1776 = vand.u32 %v1588, 4294901760
    %v1777 = vsub.f32 %v1588, %v1776
    %1778 = vmatpush1.msra.mxu0 %v1777
    %1779 = vmatprep.subr.mxu0 0.0
    %1780 = vmatpush2.msra.mxu0 0.0
    %1781 = vmatprep.subr.mxu0 0.0
    %1782 = vmatpush2.msra.mxu0 0.0
    %1783 = vmatprep.subr.mxu0 0.0
    %1784 = vmatpush2.msra.mxu0 0.0
    %1785 = vmatprep.subr.mxu0 0.0
    %1786 = vmatpush2.msra.mxu0 0.0
    %1787 = vmatprep.subr.mxu0 0.0
    %1788 = vmatpush2.msra.mxu0 0.0
    %1789 = vmatprep.subr.mxu0 0.0
    %1790 = vmatpush2.msra.mxu0 0.0
    %1791 = vmatprep.subr.mxu0 0.0
    %1792 = vmatpush2.msra.mxu0 0.0
    %1793 = vmatprep.subr.mxu0 0.0
    %1794 = vmatpush2.msra.mxu0 0.0
    %1795 = vmatprep.subr.mxu0 0.0
    %1796 = vmatpush2.msra.mxu0 0.0
    %1797 = vmatprep.subr.mxu0 0.0
    %1798 = vmatpush2.msra.mxu0 0.0
    %1799 = vmatprep.subr.mxu0 0.0
    %1800 = vmatpush2.msra.mxu0 0.0
    %1801 = vmatprep.subr.mxu0 0.0
    %1802 = vmatpush2.msra.mxu0 0.0
    %1803 = vmatprep.subr.mxu0 0.0
    %1804 = vmatpush2.msra.mxu0 0.0
    %1805 = vmatprep.subr.mxu0 0.0
    %1806 = vmatpush2.msra.mxu0 0.0
    %1807 = vmatprep.subr.mxu0 0.0
    %1808 = vmatpush2.msra.mxu0 0.0
    %1809 = vmatprep.subr.mxu0 0.0
    %1810 = vmatpush2.msra.mxu0 0.0
    %1811 = vmatprep.mubr.f32.mxu0 0.0
    %v1812 = vand.u32 %v1591, 4294901760
    %v1813 = vsub.f32 %v1591, %v1812
    %1814 = vmatmul.mubr.f32.gmra.mxu0 %v1813
    %v1815 = vpop.f32.mrf.mxu0
    %v1816 = vadd.f32 %v1742, %v1815
    %v1817 = vpop.f32.mrf.mxu0
    %1818 = vdwg.mxu0
    %1819 = vmatprep.subr.mxu0 0.0
    %1820 = vmatpush1.msra.mxu0 0.0
    %1821 = vmatprep.subr.mxu0 0.0
    %1822 = vmatpush1.msra.mxu0 0.0
    %1823 = vmatprep.subr.mxu0 0.0
    %1824 = vmatpush1.msra.mxu0 0.0
    %1825 = vmatprep.subr.mxu0 0.0
    %1826 = vmatpush1.msra.mxu0 0.0
    %1827 = vmatprep.subr.mxu0 0.0
    %1828 = vmatpush1.msra.mxu0 0.0
    %1829 = vmatprep.subr.mxu0 0.0
    %1830 = vmatpush1.msra.mxu0 0.0
    %1831 = vmatprep.subr.mxu0 0.0
    %1832 = vmatpush1.msra.mxu0 0.0
    %1833 = vmatprep.subr.mxu0 0.0
    %1834 = vmatpush1.msra.mxu0 0.0
    %1835 = vmatprep.subr.mxu0 0.0
    %1836 = vmatpush1.msra.mxu0 0.0
    %1837 = vmatprep.subr.mxu0 0.0
    %1838 = vmatpush1.msra.mxu0 0.0
    %1839 = vmatprep.subr.mxu0 0.0
    %1840 = vmatpush1.msra.mxu0 0.0
    %1841 = vmatprep.subr.mxu0 0.0
    %1842 = vmatpush1.msra.mxu0 0.0
    %1843 = vmatprep.subr.mxu0 0.0
    %1844 = vmatpush1.msra.mxu0 0.0
    %1845 = vmatprep.subr.mxu0 0.0
    %1846 = vmatpush1.msra.mxu0 0.0
    %1847 = vmatprep.subr.mxu0 0.0
    %1848 = vmatpush1.msra.mxu0 0.0
    %1849 = vmatprep.subr.mxu0 0.0
    %v1850 = vand.u32 %v1588, 4294901760
    %1851 = vmatpush1.msra.mxu0 %v1850
    %1852 = vmatprep.subr.mxu0 0.0
    %1853 = vmatpush2.msra.mxu0 0.0
    %1854 = vmatprep.subr.mxu0 0.0
    %1855 = vmatpush2.msra.mxu0 0.0
    %1856 = vmatprep.subr.mxu0 0.0
    %1857 = vmatpush2.msra.mxu0 0.0
    %1858 = vmatprep.subr.mxu0 0.0
    %1859 = vmatpush2.msra.mxu0 0.0
    %1860 = vmatprep.subr.mxu0 0.0
    %1861 = vmatpush2.msra.mxu0 0.0
    %1862 = vmatprep.subr.mxu0 0.0
    %1863 = vmatpush2.msra.mxu0 0.0
    %1864 = vmatprep.subr.mxu0 0.0
    %1865 = vmatpush2.msra.mxu0 0.0
    %1866 = vmatprep.subr.mxu0 0.0
    %1867 = vmatpush2.msra.mxu0 0.0
    %1868 = vmatprep.subr.mxu0 0.0
    %1869 = vmatpush2.msra.mxu0 0.0
    %1870 = vmatprep.subr.mxu0 0.0
    %1871 = vmatpush2.msra.mxu0 0.0
    %1872 = vmatprep.subr.mxu0 0.0
    %1873 = vmatpush2.msra.mxu0 0.0
    %1874 = vmatprep.subr.mxu0 0.0
    %1875 = vmatpush2.msra.mxu0 0.0
    %1876 = vmatprep.subr.mxu0 0.0
    %1877 = vmatpush2.msra.mxu0 0.0
    %1878 = vmatprep.subr.mxu0 0.0
    %1879 = vmatpush2.msra.mxu0 0.0
    %1880 = vmatprep.subr.mxu0 0.0
    %1881 = vmatpush2.msra.mxu0 0.0
    %1882 = vmatprep.subr.mxu0 0.0
    %1883 = vmatpush2.msra.mxu0 0.0
    %1884 = vmatprep.mubr.f32.mxu0 0.0
    %v1885 = vand.u32 %v1591, 4294901760
    %v1886 = vsub.f32 %v1591, %v1885
    %v1887 = vand.u32 %v1886, 4294901760
    %1888 = vmatmul.mubr.f32.gmra.mxu0 %v1887
    %v1889 = vpop.f32.mrf.mxu0
    %v1890 = vadd.f32 %v1816, %v1889
    %v1891 = vpop.f32.mrf.mxu0
    %1892 = vdwg.mxu0
    %1893 = vmatprep.subr.mxu0 0.0
    %1894 = vmatpush1.msra.mxu0 0.0
    %1895 = vmatprep.subr.mxu0 0.0
    %1896 = vmatpush1.msra.mxu0 0.0
    %1897 = vmatprep.subr.mxu0 0.0
    %1898 = vmatpush1.msra.mxu0 0.0
    %1899 = vmatprep.subr.mxu0 0.0
    %1900 = vmatpush1.msra.mxu0 0.0
    %1901 = vmatprep.subr.mxu0 0.0
    %1902 = vmatpush1.msra.mxu0 0.0
    %1903 = vmatprep.subr.mxu0 0.0
    %1904 = vmatpush1.msra.mxu0 0.0
    %1905 = vmatprep.subr.mxu0 0.0
    %1906 = vmatpush1.msra.mxu0 0.0
    %1907 = vmatprep.subr.mxu0 0.0
    %1908 = vmatpush1.msra.mxu0 0.0
    %1909 = vmatprep.subr.mxu0 0.0
    %1910 = vmatpush1.msra.mxu0 0.0
    %1911 = vmatprep.subr.mxu0 0.0
    %1912 = vmatpush1.msra.mxu0 0.0
    %1913 = vmatprep.subr.mxu0 0.0
    %1914 = vmatpush1.msra.mxu0 0.0
    %1915 = vmatprep.subr.mxu0 0.0
    %1916 = vmatpush1.msra.mxu0 0.0
    %1917 = vmatprep.subr.mxu0 0.0
    %1918 = vmatpush1.msra.mxu0 0.0
    %1919 = vmatprep.subr.mxu0 0.0
    %1920 = vmatpush1.msra.mxu0 0.0
    %1921 = vmatprep.subr.mxu0 0.0
    %1922 = vmatpush1.msra.mxu0 0.0
    %1923 = vmatprep.subr.mxu0 0.0
    %v1924 = vand.u32 %v1588, 4294901760
    %v1925 = vsub.f32 %v1588, %v1924
    %v1926 = vand.u32 %v1925, 4294901760
    %1927 = vmatpush1.msra.mxu0 %v1926
    %1928 = vmatprep.subr.mxu0 0.0
    %1929 = vmatpush2.msra.mxu0 0.0
    %1930 = vmatprep.subr.mxu0 0.0
    %1931 = vmatpush2.msra.mxu0 0.0
    %1932 = vmatprep.subr.mxu0 0.0
    %1933 = vmatpush2.msra.mxu0 0.0
    %1934 = vmatprep.subr.mxu0 0.0
    %1935 = vmatpush2.msra.mxu0 0.0
    %1936 = vmatprep.subr.mxu0 0.0
    %1937 = vmatpush2.msra.mxu0 0.0
    %1938 = vmatprep.subr.mxu0 0.0
    %1939 = vmatpush2.msra.mxu0 0.0
    %1940 = vmatprep.subr.mxu0 0.0
    %1941 = vmatpush2.msra.mxu0 0.0
    %1942 = vmatprep.subr.mxu0 0.0
    %1943 = vmatpush2.msra.mxu0 0.0
    %1944 = vmatprep.subr.mxu0 0.0
    %1945 = vmatpush2.msra.mxu0 0.0
    %1946 = vmatprep.subr.mxu0 0.0
    %1947 = vmatpush2.msra.mxu0 0.0
    %1948 = vmatprep.subr.mxu0 0.0
    %1949 = vmatpush2.msra.mxu0 0.0
    %1950 = vmatprep.subr.mxu0 0.0
    %1951 = vmatpush2.msra.mxu0 0.0
    %1952 = vmatprep.subr.mxu0 0.0
    %1953 = vmatpush2.msra.mxu0 0.0
    %1954 = vmatprep.subr.mxu0 0.0
    %1955 = vmatpush2.msra.mxu0 0.0
    %1956 = vmatprep.subr.mxu0 0.0
    %1957 = vmatpush2.msra.mxu0 0.0
    %1958 = vmatprep.subr.mxu0 0.0
    %1959 = vmatpush2.msra.mxu0 0.0
    %1960 = vmatprep.mubr.f32.mxu0 0.0
    %v1961 = vand.u32 %v1591, 4294901760
    %1962 = vmatmul.mubr.f32.gmra.mxu0 %v1961
    %v1963 = vpop.f32.mrf.mxu0
    %v1964 = vadd.f32 %v1890, %v1963
    %v1965 = vpop.f32.mrf.mxu0
    %1966 = vdwg.mxu0
    %1967 = vmatprep.subr.mxu0 0.0
    %1968 = vmatpush1.msra.mxu0 0.0
    %1969 = vmatprep.subr.mxu0 0.0
    %1970 = vmatpush1.msra.mxu0 0.0
    %1971 = vmatprep.subr.mxu0 0.0
    %1972 = vmatpush1.msra.mxu0 0.0
    %1973 = vmatprep.subr.mxu0 0.0
    %1974 = vmatpush1.msra.mxu0 0.0
    %1975 = vmatprep.subr.mxu0 0.0
    %1976 = vmatpush1.msra.mxu0 0.0
    %1977 = vmatprep.subr.mxu0 0.0
    %1978 = vmatpush1.msra.mxu0 0.0
    %1979 = vmatprep.subr.mxu0 0.0
    %1980 = vmatpush1.msra.mxu0 0.0
    %1981 = vmatprep.subr.mxu0 0.0
    %1982 = vmatpush1.msra.mxu0 0.0
    %1983 = vmatprep.subr.mxu0 0.0
    %1984 = vmatpush1.msra.mxu0 0.0
    %1985 = vmatprep.subr.mxu0 0.0
    %1986 = vmatpush1.msra.mxu0 0.0
    %1987 = vmatprep.subr.mxu0 0.0
    %1988 = vmatpush1.msra.mxu0 0.0
    %1989 = vmatprep.subr.mxu0 0.0
    %1990 = vmatpush1.msra.mxu0 0.0
    %1991 = vmatprep.subr.mxu0 0.0
    %1992 = vmatpush1.msra.mxu0 0.0
    %1993 = vmatprep.subr.mxu0 0.0
    %1994 = vmatpush1.msra.mxu0 0.0
    %1995 = vmatprep.subr.mxu0 0.0
    %1996 = vmatpush1.msra.mxu0 0.0
    %1997 = vmatprep.subr.mxu0 0.0
    %v1998 = vand.u32 %v1588, 4294901760
    %1999 = vmatpush1.msra.mxu0 %v1998
    %2000 = vmatprep.subr.mxu0 0.0
    %2001 = vmatpush2.msra.mxu0 0.0
    %2002 = vmatprep.subr.mxu0 0.0
    %2003 = vmatpush2.msra.mxu0 0.0
    %2004 = vmatprep.subr.mxu0 0.0
    %2005 = vmatpush2.msra.mxu0 0.0
    %2006 = vmatprep.subr.mxu0 0.0
    %2007 = vmatpush2.msra.mxu0 0.0
    %2008 = vmatprep.subr.mxu0 0.0
    %2009 = vmatpush2.msra.mxu0 0.0
    %2010 = vmatprep.subr.mxu0 0.0
    %2011 = vmatpush2.msra.mxu0 0.0
    %2012 = vmatprep.subr.mxu0 0.0
    %2013 = vmatpush2.msra.mxu0 0.0
    %2014 = vmatprep.subr.mxu0 0.0
    %2015 = vmatpush2.msra.mxu0 0.0
    %2016 = vmatprep.subr.mxu0 0.0
    %2017 = vmatpush2.msra.mxu0 0.0
    %2018 = vmatprep.subr.mxu0 0.0
    %2019 = vmatpush2.msra.mxu0 0.0
    %2020 = vmatprep.subr.mxu0 0.0
    %2021 = vmatpush2.msra.mxu0 0.0
    %2022 = vmatprep.subr.mxu0 0.0
    %2023 = vmatpush2.msra.mxu0 0.0
    %2024 = vmatprep.subr.mxu0 0.0
    %2025 = vmatpush2.msra.mxu0 0.0
    %2026 = vmatprep.subr.mxu0 0.0
    %2027 = vmatpush2.msra.mxu0 0.0
    %2028 = vmatprep.subr.mxu0 0.0
    %2029 = vmatpush2.msra.mxu0 0.0
    %2030 = vmatprep.subr.mxu0 0.0
    %2031 = vmatpush2.msra.mxu0 0.0
    %2032 = vmatprep.mubr.f32.mxu0 0.0
    %v2033 = vand.u32 %v1591, 4294901760
    %2034 = vmatmul.mubr.f32.gmra.mxu0 %v2033
    %v2035 = vpop.f32.mrf.mxu0
    %v2036 = vadd.f32 %v1964, %v2035
    %v2037 = vpop.f32.mrf.mxu0
    %2038 = vdwg.mxu0
    %vm2040 = vcmask 253952
    %2041 = vst.msk [vmem:[#allocation6] sm:$0x1] %vm2040, %v1088
    %2042 = vst.msk [vmem:[#allocation4] sm:$0x1] %vm2040, %v2036
    %2043 = vst.msk [vmem:[#allocation7] sm:$0x1] %vm1576, %v1587
    %v2044 = vld [vmem:[#allocation6] sm:$0x1]
    %v2045 = vld [vmem:[#allocation4] sm:$0x1]
    %v2046 = vld [vmem:[%s8] sm:$0xff]
    %v2047 = vld [vmem:[%s8 + $0x8] sm:$0xff]
    %v2048 = vld [vmem:[%s8 + $0x10] sm:$0xff]
    %v2049 = vld [vmem:[%s8 + $0x18] sm:$0xff]
    %v2050 = vld [vmem:[%s9] sm:$0xff]
    %v2051 = vld [vmem:[%s9 + $0x8] sm:$0xff]
    %v2052 = vld [vmem:[%s9 + $0x10] sm:$0xff]
    %v2053 = vld [vmem:[%s9 + $0x18] sm:$0xff]
    %v2055 = vsel %vm52, %v2045, 0
    %2057 = vmatprep.subr.mxu0 0.0
    %2058 = vmatpush1.msra.mxu0 0.0
    %2059 = vmatprep.subr.mxu0 0.0
    %2060 = vmatpush1.msra.mxu0 0.0
    %2061 = vmatprep.subr.mxu0 0.0
    %2062 = vmatpush1.msra.mxu0 0.0
    %2063 = vmatprep.subr.mxu0 0.0
    %2064 = vmatpush1.msra.mxu0 0.0
    %2065 = vmatprep.subr.mxu0 0.0
    %2066 = vmatpush1.msra.mxu0 0.0
    %2067 = vmatprep.subr.mxu0 0.0
    %2068 = vmatpush1.msra.mxu0 0.0
    %2069 = vmatprep.subr.mxu0 0.0
    %2070 = vmatpush1.msra.mxu0 0.0
    %2071 = vmatprep.subr.mxu0 0.0
    %2072 = vmatpush1.msra.mxu0 0.0
    %2073 = vmatprep.subr.mxu0 0.0
    %2074 = vmatpush1.msra.mxu0 0.0
    %2075 = vmatprep.subr.mxu0 0.0
    %2076 = vmatpush1.msra.mxu0 0.0
    %2077 = vmatprep.subr.mxu0 0.0
    %2078 = vmatpush1.msra.mxu0 0.0
    %2079 = vmatprep.subr.mxu0 0.0
    %2080 = vmatpush1.msra.mxu0 0.0
    %2081 = vmatprep.subr.mxu0 0.0
    %v2082 = vand.u32 %v2053, 4294901760
    %2083 = vmatpush1.msra.mxu0 %v2082
    %2084 = vmatprep.subr.mxu0 0.0
    %v2085 = vand.u32 %v2052, 4294901760
    %2086 = vmatpush1.msra.mxu0 %v2085
    %2087 = vmatprep.subr.mxu0 0.0
    %v2088 = vand.u32 %v2051, 4294901760
    %2089 = vmatpush1.msra.mxu0 %v2088
    %2090 = vmatprep.subr.mxu0 0.0
    %v2091 = vand.u32 %v2050, 4294901760
    %2092 = vmatpush1.msra.mxu0 %v2091
    %2093 = vmatprep.subr.mxu0 0.0
    %2094 = vmatpush2.msra.mxu0 0.0
    %2095 = vmatprep.subr.mxu0 0.0
    %2096 = vmatpush2.msra.mxu0 0.0
    %2097 = vmatprep.subr.mxu0 0.0
    %2098 = vmatpush2.msra.mxu0 0.0
    %2099 = vmatprep.subr.mxu0 0.0
    %2100 = vmatpush2.msra.mxu0 0.0
    %2101 = vmatprep.subr.mxu0 0.0
    %2102 = vmatpush2.msra.mxu0 0.0
    %2103 = vmatprep.subr.mxu0 0.0
    %2104 = vmatpush2.msra.mxu0 0.0
    %2105 = vmatprep.subr.mxu0 0.0
    %2106 = vmatpush2.msra.mxu0 0.0
    %2107 = vmatprep.subr.mxu0 0.0
    %2108 = vmatpush2.msra.mxu0 0.0
    %2109 = vmatprep.subr.mxu0 0.0
    %2110 = vmatpush2.msra.mxu0 0.0
    %2111 = vmatprep.subr.mxu0 0.0
    %2112 = vmatpush2.msra.mxu0 0.0
    %2113 = vmatprep.subr.mxu0 0.0
    %2114 = vmatpush2.msra.mxu0 0.0
    %2115 = vmatprep.subr.mxu0 0.0
    %2116 = vmatpush2.msra.mxu0 0.0
    %2117 = vmatprep.subr.mxu0 0.0
    %2118 = vmatpush2.msra.mxu0 0.0
    %2119 = vmatprep.subr.mxu0 0.0
    %2120 = vmatpush2.msra.mxu0 0.0
    %2121 = vmatprep.subr.mxu0 0.0
    %2122 = vmatpush2.msra.mxu0 0.0
    %2123 = vmatprep.subr.mxu0 0.0
    %2124 = vmatpush2.msra.mxu0 0.0
    %2125 = vmatprep.mubr.f32.mxu0 0.0
    %v2126 = vand.u32 %v2055, 4294901760
    %v2127 = vsub.f32 %v2055, %v2126
    %v2128 = vand.u32 %v2127, 4294901760
    %v2129 = vsub.f32 %v2127, %v2128
    %v2130 = vand.u32 %v2129, 4294901760
    %2131 = vmatmul.mubr.f32.gmra.mxu0 %v2130
    %v2132 = vpop.f32.mrf.mxu0
    %v2133 = vadd.f32 0.0, %v2132
    %v2134 = vpop.f32.mrf.mxu0
    %2135 = vdwg.mxu0
    %2136 = vmatprep.subr.mxu0 0.0
    %2137 = vmatpush1.msra.mxu0 0.0
    %2138 = vmatprep.subr.mxu0 0.0
    %2139 = vmatpush1.msra.mxu0 0.0
    %2140 = vmatprep.subr.mxu0 0.0
    %2141 = vmatpush1.msra.mxu0 0.0
    %2142 = vmatprep.subr.mxu0 0.0
    %2143 = vmatpush1.msra.mxu0 0.0
    %2144 = vmatprep.subr.mxu0 0.0
    %2145 = vmatpush1.msra.mxu0 0.0
    %2146 = vmatprep.subr.mxu0 0.0
    %2147 = vmatpush1.msra.mxu0 0.0
    %2148 = vmatprep.subr.mxu0 0.0
    %2149 = vmatpush1.msra.mxu0 0.0
    %2150 = vmatprep.subr.mxu0 0.0
    %2151 = vmatpush1.msra.mxu0 0.0
    %2152 = vmatprep.subr.mxu0 0.0
    %2153 = vmatpush1.msra.mxu0 0.0
    %2154 = vmatprep.subr.mxu0 0.0
    %2155 = vmatpush1.msra.mxu0 0.0
    %2156 = vmatprep.subr.mxu0 0.0
    %2157 = vmatpush1.msra.mxu0 0.0
    %2158 = vmatprep.subr.mxu0 0.0
    %2159 = vmatpush1.msra.mxu0 0.0
    %2160 = vmatprep.subr.mxu0 0.0
    %v2161 = vand.u32 %v2053, 4294901760
    %v2162 = vsub.f32 %v2053, %v2161
    %v2163 = vand.u32 %v2162, 4294901760
    %v2164 = vsub.f32 %v2162, %v2163
    %v2165 = vand.u32 %v2164, 4294901760
    %2166 = vmatpush1.msra.mxu0 %v2165
    %2167 = vmatprep.subr.mxu0 0.0
    %v2168 = vand.u32 %v2052, 4294901760
    %v2169 = vsub.f32 %v2052, %v2168
    %v2170 = vand.u32 %v2169, 4294901760
    %v2171 = vsub.f32 %v2169, %v2170
    %v2172 = vand.u32 %v2171, 4294901760
    %2173 = vmatpush1.msra.mxu0 %v2172
    %2174 = vmatprep.subr.mxu0 0.0
    %v2175 = vand.u32 %v2051, 4294901760
    %v2176 = vsub.f32 %v2051, %v2175
    %v2177 = vand.u32 %v2176, 4294901760
    %v2178 = vsub.f32 %v2176, %v2177
    %v2179 = vand.u32 %v2178, 4294901760
    %2180 = vmatpush1.msra.mxu0 %v2179
    %2181 = vmatprep.subr.mxu0 0.0
    %v2182 = vand.u32 %v2050, 4294901760
    %v2183 = vsub.f32 %v2050, %v2182
    %v2184 = vand.u32 %v2183, 4294901760
    %v2185 = vsub.f32 %v2183, %v2184
    %v2186 = vand.u32 %v2185, 4294901760
    %2187 = vmatpush1.msra.mxu0 %v2186
    %2188 = vmatprep.subr.mxu0 0.0
    %2189 = vmatpush2.msra.mxu0 0.0
    %2190 = vmatprep.subr.mxu0 0.0
    %2191 = vmatpush2.msra.mxu0 0.0
    %2192 = vmatprep.subr.mxu0 0.0
    %2193 = vmatpush2.msra.mxu0 0.0
    %2194 = vmatprep.subr.mxu0 0.0
    %2195 = vmatpush2.msra.mxu0 0.0
    %2196 = vmatprep.subr.mxu0 0.0
    %2197 = vmatpush2.msra.mxu0 0.0
    %2198 = vmatprep.subr.mxu0 0.0
    %2199 = vmatpush2.msra.mxu0 0.0
    %2200 = vmatprep.subr.mxu0 0.0
    %2201 = vmatpush2.msra.mxu0 0.0
    %2202 = vmatprep.subr.mxu0 0.0
    %2203 = vmatpush2.msra.mxu0 0.0
    %2204 = vmatprep.subr.mxu0 0.0
    %2205 = vmatpush2.msra.mxu0 0.0
    %2206 = vmatprep.subr.mxu0 0.0
    %2207 = vmatpush2.msra.mxu0 0.0
    %2208 = vmatprep.subr.mxu0 0.0
    %2209 = vmatpush2.msra.mxu0 0.0
    %2210 = vmatprep.subr.mxu0 0.0
    %2211 = vmatpush2.msra.mxu0 0.0
    %2212 = vmatprep.subr.mxu0 0.0
    %2213 = vmatpush2.msra.mxu0 0.0
    %2214 = vmatprep.subr.mxu0 0.0
    %2215 = vmatpush2.msra.mxu0 0.0
    %2216 = vmatprep.subr.mxu0 0.0
    %2217 = vmatpush2.msra.mxu0 0.0
    %2218 = vmatprep.subr.mxu0 0.0
    %2219 = vmatpush2.msra.mxu0 0.0
    %2220 = vmatprep.mubr.f32.mxu0 0.0
    %v2221 = vand.u32 %v2055, 4294901760
    %2222 = vmatmul.mubr.f32.gmra.mxu0 %v2221
    %v2223 = vpop.f32.mrf.mxu0
    %v2224 = vadd.f32 %v2133, %v2223
    %v2225 = vpop.f32.mrf.mxu0
    %2226 = vdwg.mxu0
    %2227 = vmatprep.subr.mxu0 0.0
    %2228 = vmatpush1.msra.mxu0 0.0
    %2229 = vmatprep.subr.mxu0 0.0
    %2230 = vmatpush1.msra.mxu0 0.0
    %2231 = vmatprep.subr.mxu0 0.0
    %2232 = vmatpush1.msra.mxu0 0.0
    %2233 = vmatprep.subr.mxu0 0.0
    %2234 = vmatpush1.msra.mxu0 0.0
    %2235 = vmatprep.subr.mxu0 0.0
    %2236 = vmatpush1.msra.mxu0 0.0
    %2237 = vmatprep.subr.mxu0 0.0
    %2238 = vmatpush1.msra.mxu0 0.0
    %2239 = vmatprep.subr.mxu0 0.0
    %2240 = vmatpush1.msra.mxu0 0.0
    %2241 = vmatprep.subr.mxu0 0.0
    %2242 = vmatpush1.msra.mxu0 0.0
    %2243 = vmatprep.subr.mxu0 0.0
    %2244 = vmatpush1.msra.mxu0 0.0
    %2245 = vmatprep.subr.mxu0 0.0
    %2246 = vmatpush1.msra.mxu0 0.0
    %2247 = vmatprep.subr.mxu0 0.0
    %2248 = vmatpush1.msra.mxu0 0.0
    %2249 = vmatprep.subr.mxu0 0.0
    %2250 = vmatpush1.msra.mxu0 0.0
    %2251 = vmatprep.subr.mxu0 0.0
    %v2252 = vand.u32 %v2053, 4294901760
    %v2253 = vsub.f32 %v2053, %v2252
    %2254 = vmatpush1.msra.mxu0 %v2253
    %2255 = vmatprep.subr.mxu0 0.0
    %v2256 = vand.u32 %v2052, 4294901760
    %v2257 = vsub.f32 %v2052, %v2256
    %2258 = vmatpush1.msra.mxu0 %v2257
    %2259 = vmatprep.subr.mxu0 0.0
    %v2260 = vand.u32 %v2051, 4294901760
    %v2261 = vsub.f32 %v2051, %v2260
    %2262 = vmatpush1.msra.mxu0 %v2261
    %2263 = vmatprep.subr.mxu0 0.0
    %v2264 = vand.u32 %v2050, 4294901760
    %v2265 = vsub.f32 %v2050, %v2264
    %2266 = vmatpush1.msra.mxu0 %v2265
    %2267 = vmatprep.subr.mxu0 0.0
    %2268 = vmatpush2.msra.mxu0 0.0
    %2269 = vmatprep.subr.mxu0 0.0
    %2270 = vmatpush2.msra.mxu0 0.0
    %2271 = vmatprep.subr.mxu0 0.0
    %2272 = vmatpush2.msra.mxu0 0.0
    %2273 = vmatprep.subr.mxu0 0.0
    %2274 = vmatpush2.msra.mxu0 0.0
    %2275 = vmatprep.subr.mxu0 0.0
    %2276 = vmatpush2.msra.mxu0 0.0
    %2277 = vmatprep.subr.mxu0 0.0
    %2278 = vmatpush2.msra.mxu0 0.0
    %2279 = vmatprep.subr.mxu0 0.0
    %2280 = vmatpush2.msra.mxu0 0.0
    %2281 = vmatprep.subr.mxu0 0.0
    %2282 = vmatpush2.msra.mxu0 0.0
    %2283 = vmatprep.subr.mxu0 0.0
    %2284 = vmatpush2.msra.mxu0 0.0
    %2285 = vmatprep.subr.mxu0 0.0
    %2286 = vmatpush2.msra.mxu0 0.0
    %2287 = vmatprep.subr.mxu0 0.0
    %2288 = vmatpush2.msra.mxu0 0.0
    %2289 = vmatprep.subr.mxu0 0.0
    %2290 = vmatpush2.msra.mxu0 0.0
    %2291 = vmatprep.subr.mxu0 0.0
    %2292 = vmatpush2.msra.mxu0 0.0
    %2293 = vmatprep.subr.mxu0 0.0
    %2294 = vmatpush2.msra.mxu0 0.0
    %2295 = vmatprep.subr.mxu0 0.0
    %2296 = vmatpush2.msra.mxu0 0.0
    %2297 = vmatprep.subr.mxu0 0.0
    %2298 = vmatpush2.msra.mxu0 0.0
    %2299 = vmatprep.mubr.f32.mxu0 0.0
    %v2300 = vand.u32 %v2055, 4294901760
    %v2301 = vsub.f32 %v2055, %v2300
    %2302 = vmatmul.mubr.f32.gmra.mxu0 %v2301
    %v2303 = vpop.f32.mrf.mxu0
    %v2304 = vadd.f32 %v2224, %v2303
    %v2305 = vpop.f32.mrf.mxu0
    %2306 = vdwg.mxu0
    %2307 = vmatprep.subr.mxu0 0.0
    %2308 = vmatpush1.msra.mxu0 0.0
    %2309 = vmatprep.subr.mxu0 0.0
    %2310 = vmatpush1.msra.mxu0 0.0
    %2311 = vmatprep.subr.mxu0 0.0
    %2312 = vmatpush1.msra.mxu0 0.0
    %2313 = vmatprep.subr.mxu0 0.0
    %2314 = vmatpush1.msra.mxu0 0.0
    %2315 = vmatprep.subr.mxu0 0.0
    %2316 = vmatpush1.msra.mxu0 0.0
    %2317 = vmatprep.subr.mxu0 0.0
    %2318 = vmatpush1.msra.mxu0 0.0
    %2319 = vmatprep.subr.mxu0 0.0
    %2320 = vmatpush1.msra.mxu0 0.0
    %2321 = vmatprep.subr.mxu0 0.0
    %2322 = vmatpush1.msra.mxu0 0.0
    %2323 = vmatprep.subr.mxu0 0.0
    %2324 = vmatpush1.msra.mxu0 0.0
    %2325 = vmatprep.subr.mxu0 0.0
    %2326 = vmatpush1.msra.mxu0 0.0
    %2327 = vmatprep.subr.mxu0 0.0
    %2328 = vmatpush1.msra.mxu0 0.0
    %2329 = vmatprep.subr.mxu0 0.0
    %2330 = vmatpush1.msra.mxu0 0.0
    %2331 = vmatprep.subr.mxu0 0.0
    %v2332 = vand.u32 %v2053, 4294901760
    %2333 = vmatpush1.msra.mxu0 %v2332
    %2334 = vmatprep.subr.mxu0 0.0
    %v2335 = vand.u32 %v2052, 4294901760
    %2336 = vmatpush1.msra.mxu0 %v2335
    %2337 = vmatprep.subr.mxu0 0.0
    %v2338 = vand.u32 %v2051, 4294901760
    %2339 = vmatpush1.msra.mxu0 %v2338
    %2340 = vmatprep.subr.mxu0 0.0
    %v2341 = vand.u32 %v2050, 4294901760
    %2342 = vmatpush1.msra.mxu0 %v2341
    %2343 = vmatprep.subr.mxu0 0.0
    %2344 = vmatpush2.msra.mxu0 0.0
    %2345 = vmatprep.subr.mxu0 0.0
    %2346 = vmatpush2.msra.mxu0 0.0
    %2347 = vmatprep.subr.mxu0 0.0
    %2348 = vmatpush2.msra.mxu0 0.0
    %2349 = vmatprep.subr.mxu0 0.0
    %2350 = vmatpush2.msra.mxu0 0.0
    %2351 = vmatprep.subr.mxu0 0.0
    %2352 = vmatpush2.msra.mxu0 0.0
    %2353 = vmatprep.subr.mxu0 0.0
    %2354 = vmatpush2.msra.mxu0 0.0
    %2355 = vmatprep.subr.mxu0 0.0
    %2356 = vmatpush2.msra.mxu0 0.0
    %2357 = vmatprep.subr.mxu0 0.0
    %2358 = vmatpush2.msra.mxu0 0.0
    %2359 = vmatprep.subr.mxu0 0.0
    %2360 = vmatpush2.msra.mxu0 0.0
    %2361 = vmatprep.subr.mxu0 0.0
    %2362 = vmatpush2.msra.mxu0 0.0
    %2363 = vmatprep.subr.mxu0 0.0
    %2364 = vmatpush2.msra.mxu0 0.0
    %2365 = vmatprep.subr.mxu0 0.0
    %2366 = vmatpush2.msra.mxu0 0.0
    %2367 = vmatprep.subr.mxu0 0.0
    %2368 = vmatpush2.msra.mxu0 0.0
    %2369 = vmatprep.subr.mxu0 0.0
    %2370 = vmatpush2.msra.mxu0 0.0
    %2371 = vmatprep.subr.mxu0 0.0
    %2372 = vmatpush2.msra.mxu0 0.0
    %2373 = vmatprep.subr.mxu0 0.0
    %2374 = vmatpush2.msra.mxu0 0.0
    %2375 = vmatprep.mubr.f32.mxu0 0.0
    %v2376 = vand.u32 %v2055, 4294901760
    %v2377 = vsub.f32 %v2055, %v2376
    %v2378 = vand.u32 %v2377, 4294901760
    %2379 = vmatmul.mubr.f32.gmra.mxu0 %v2378
    %v2380 = vpop.f32.mrf.mxu0
    %v2381 = vadd.f32 %v2304, %v2380
    %v2382 = vpop.f32.mrf.mxu0
    %2383 = vdwg.mxu0
    %2384 = vmatprep.subr.mxu0 0.0
    %2385 = vmatpush1.msra.mxu0 0.0
    %2386 = vmatprep.subr.mxu0 0.0
    %2387 = vmatpush1.msra.mxu0 0.0
    %2388 = vmatprep.subr.mxu0 0.0
    %2389 = vmatpush1.msra.mxu0 0.0
    %2390 = vmatprep.subr.mxu0 0.0
    %2391 = vmatpush1.msra.mxu0 0.0
    %2392 = vmatprep.subr.mxu0 0.0
    %2393 = vmatpush1.msra.mxu0 0.0
    %2394 = vmatprep.subr.mxu0 0.0
    %2395 = vmatpush1.msra.mxu0 0.0
    %2396 = vmatprep.subr.mxu0 0.0
    %2397 = vmatpush1.msra.mxu0 0.0
    %2398 = vmatprep.subr.mxu0 0.0
    %2399 = vmatpush1.msra.mxu0 0.0
    %2400 = vmatprep.subr.mxu0 0.0
    %2401 = vmatpush1.msra.mxu0 0.0
    %2402 = vmatprep.subr.mxu0 0.0
    %2403 = vmatpush1.msra.mxu0 0.0
    %2404 = vmatprep.subr.mxu0 0.0
    %2405 = vmatpush1.msra.mxu0 0.0
    %2406 = vmatprep.subr.mxu0 0.0
    %2407 = vmatpush1.msra.mxu0 0.0
    %2408 = vmatprep.subr.mxu0 0.0
    %v2409 = vand.u32 %v2053, 4294901760
    %v2410 = vsub.f32 %v2053, %v2409
    %v2411 = vand.u32 %v2410, 4294901760
    %2412 = vmatpush1.msra.mxu0 %v2411
    %2413 = vmatprep.subr.mxu0 0.0
    %v2414 = vand.u32 %v2052, 4294901760
    %v2415 = vsub.f32 %v2052, %v2414
    %v2416 = vand.u32 %v2415, 4294901760
    %2417 = vmatpush1.msra.mxu0 %v2416
    %2418 = vmatprep.subr.mxu0 0.0
    %v2419 = vand.u32 %v2051, 4294901760
    %v2420 = vsub.f32 %v2051, %v2419
    %v2421 = vand.u32 %v2420, 4294901760
    %2422 = vmatpush1.msra.mxu0 %v2421
    %2423 = vmatprep.subr.mxu0 0.0
    %v2424 = vand.u32 %v2050, 4294901760
    %v2425 = vsub.f32 %v2050, %v2424
    %v2426 = vand.u32 %v2425, 4294901760
    %2427 = vmatpush1.msra.mxu0 %v2426
    %2428 = vmatprep.subr.mxu0 0.0
    %2429 = vmatpush2.msra.mxu0 0.0
    %2430 = vmatprep.subr.mxu0 0.0
    %2431 = vmatpush2.msra.mxu0 0.0
    %2432 = vmatprep.subr.mxu0 0.0
    %2433 = vmatpush2.msra.mxu0 0.0
    %2434 = vmatprep.subr.mxu0 0.0
    %2435 = vmatpush2.msra.mxu0 0.0
    %2436 = vmatprep.subr.mxu0 0.0
    %2437 = vmatpush2.msra.mxu0 0.0
    %2438 = vmatprep.subr.mxu0 0.0
    %2439 = vmatpush2.msra.mxu0 0.0
    %2440 = vmatprep.subr.mxu0 0.0
    %2441 = vmatpush2.msra.mxu0 0.0
    %2442 = vmatprep.subr.mxu0 0.0
    %2443 = vmatpush2.msra.mxu0 0.0
    %2444 = vmatprep.subr.mxu0 0.0
    %2445 = vmatpush2.msra.mxu0 0.0
    %2446 = vmatprep.subr.mxu0 0.0
    %2447 = vmatpush2.msra.mxu0 0.0
    %2448 = vmatprep.subr.mxu0 0.0
    %2449 = vmatpush2.msra.mxu0 0.0
    %2450 = vmatprep.subr.mxu0 0.0
    %2451 = vmatpush2.msra.mxu0 0.0
    %2452 = vmatprep.subr.mxu0 0.0
    %2453 = vmatpush2.msra.mxu0 0.0
    %2454 = vmatprep.subr.mxu0 0.0
    %2455 = vmatpush2.msra.mxu0 0.0
    %2456 = vmatprep.subr.mxu0 0.0
    %2457 = vmatpush2.msra.mxu0 0.0
    %2458 = vmatprep.subr.mxu0 0.0
    %2459 = vmatpush2.msra.mxu0 0.0
    %2460 = vmatprep.mubr.f32.mxu0 0.0
    %v2461 = vand.u32 %v2055, 4294901760
    %2462 = vmatmul.mubr.f32.gmra.mxu0 %v2461
    %v2463 = vpop.f32.mrf.mxu0
    %v2464 = vadd.f32 %v2381, %v2463
    %v2465 = vpop.f32.mrf.mxu0
    %2466 = vdwg.mxu0
    %2467 = vmatprep.subr.mxu0 0.0
    %2468 = vmatpush1.msra.mxu0 0.0
    %2469 = vmatprep.subr.mxu0 0.0
    %2470 = vmatpush1.msra.mxu0 0.0
    %2471 = vmatprep.subr.mxu0 0.0
    %2472 = vmatpush1.msra.mxu0 0.0
    %2473 = vmatprep.subr.mxu0 0.0
    %2474 = vmatpush1.msra.mxu0 0.0
    %2475 = vmatprep.subr.mxu0 0.0
    %2476 = vmatpush1.msra.mxu0 0.0
    %2477 = vmatprep.subr.mxu0 0.0
    %2478 = vmatpush1.msra.mxu0 0.0
    %2479 = vmatprep.subr.mxu0 0.0
    %2480 = vmatpush1.msra.mxu0 0.0
    %2481 = vmatprep.subr.mxu0 0.0
    %2482 = vmatpush1.msra.mxu0 0.0
    %2483 = vmatprep.subr.mxu0 0.0
    %2484 = vmatpush1.msra.mxu0 0.0
    %2485 = vmatprep.subr.mxu0 0.0
    %2486 = vmatpush1.msra.mxu0 0.0
    %2487 = vmatprep.subr.mxu0 0.0
    %2488 = vmatpush1.msra.mxu0 0.0
    %2489 = vmatprep.subr.mxu0 0.0
    %2490 = vmatpush1.msra.mxu0 0.0
    %2491 = vmatprep.subr.mxu0 0.0
    %v2492 = vand.u32 %v2053, 4294901760
    %2493 = vmatpush1.msra.mxu0 %v2492
    %2494 = vmatprep.subr.mxu0 0.0
    %v2495 = vand.u32 %v2052, 4294901760
    %2496 = vmatpush1.msra.mxu0 %v2495
    %2497 = vmatprep.subr.mxu0 0.0
    %v2498 = vand.u32 %v2051, 4294901760
    %2499 = vmatpush1.msra.mxu0 %v2498
    %2500 = vmatprep.subr.mxu0 0.0
    %v2501 = vand.u32 %v2050, 4294901760
    %2502 = vmatpush1.msra.mxu0 %v2501
    %2503 = vmatprep.subr.mxu0 0.0
    %2504 = vmatpush2.msra.mxu0 0.0
    %2505 = vmatprep.subr.mxu0 0.0
    %2506 = vmatpush2.msra.mxu0 0.0
    %2507 = vmatprep.subr.mxu0 0.0
    %2508 = vmatpush2.msra.mxu0 0.0
    %2509 = vmatprep.subr.mxu0 0.0
    %2510 = vmatpush2.msra.mxu0 0.0
    %2511 = vmatprep.subr.mxu0 0.0
    %2512 = vmatpush2.msra.mxu0 0.0
    %2513 = vmatprep.subr.mxu0 0.0
    %2514 = vmatpush2.msra.mxu0 0.0
    %2515 = vmatprep.subr.mxu0 0.0
    %2516 = vmatpush2.msra.mxu0 0.0
    %2517 = vmatprep.subr.mxu0 0.0
    %2518 = vmatpush2.msra.mxu0 0.0
    %2519 = vmatprep.subr.mxu0 0.0
    %2520 = vmatpush2.msra.mxu0 0.0
    %2521 = vmatprep.subr.mxu0 0.0
    %2522 = vmatpush2.msra.mxu0 0.0
    %2523 = vmatprep.subr.mxu0 0.0
    %2524 = vmatpush2.msra.mxu0 0.0
    %2525 = vmatprep.subr.mxu0 0.0
    %2526 = vmatpush2.msra.mxu0 0.0
    %2527 = vmatprep.subr.mxu0 0.0
    %2528 = vmatpush2.msra.mxu0 0.0
    %2529 = vmatprep.subr.mxu0 0.0
    %2530 = vmatpush2.msra.mxu0 0.0
    %2531 = vmatprep.subr.mxu0 0.0
    %2532 = vmatpush2.msra.mxu0 0.0
    %2533 = vmatprep.subr.mxu0 0.0
    %2534 = vmatpush2.msra.mxu0 0.0
    %2535 = vmatprep.mubr.f32.mxu0 0.0
    %v2536 = vand.u32 %v2055, 4294901760
    %2537 = vmatmul.mubr.f32.gmra.mxu0 %v2536
    %v2538 = vpop.f32.mrf.mxu0
    %v2539 = vadd.f32 %v2464, %v2538
    %v2540 = vpop.f32.mrf.mxu0
    %2541 = vdwg.mxu0
    %v2543 = vsel %vm52, %v2044, 0
    %2545 = vmatprep.subr.mxu0 0.0
    %2546 = vmatpush1.msra.mxu0 0.0
    %2547 = vmatprep.subr.mxu0 0.0
    %2548 = vmatpush1.msra.mxu0 0.0
    %2549 = vmatprep.subr.mxu0 0.0
    %2550 = vmatpush1.msra.mxu0 0.0
    %2551 = vmatprep.subr.mxu0 0.0
    %2552 = vmatpush1.msra.mxu0 0.0
    %2553 = vmatprep.subr.mxu0 0.0
    %2554 = vmatpush1.msra.mxu0 0.0
    %2555 = vmatprep.subr.mxu0 0.0
    %2556 = vmatpush1.msra.mxu0 0.0
    %2557 = vmatprep.subr.mxu0 0.0
    %2558 = vmatpush1.msra.mxu0 0.0
    %2559 = vmatprep.subr.mxu0 0.0
    %2560 = vmatpush1.msra.mxu0 0.0
    %2561 = vmatprep.subr.mxu0 0.0
    %2562 = vmatpush1.msra.mxu0 0.0
    %2563 = vmatprep.subr.mxu0 0.0
    %2564 = vmatpush1.msra.mxu0 0.0
    %2565 = vmatprep.subr.mxu0 0.0
    %2566 = vmatpush1.msra.mxu0 0.0
    %2567 = vmatprep.subr.mxu0 0.0
    %2568 = vmatpush1.msra.mxu0 0.0
    %2569 = vmatprep.subr.mxu0 0.0
    %v2570 = vand.u32 %v2049, 4294901760
    %2571 = vmatpush1.msra.mxu0 %v2570
    %2572 = vmatprep.subr.mxu0 0.0
    %v2573 = vand.u32 %v2048, 4294901760
    %2574 = vmatpush1.msra.mxu0 %v2573
    %2575 = vmatprep.subr.mxu0 0.0
    %v2576 = vand.u32 %v2047, 4294901760
    %2577 = vmatpush1.msra.mxu0 %v2576
    %2578 = vmatprep.subr.mxu0 0.0
    %v2579 = vand.u32 %v2046, 4294901760
    %2580 = vmatpush1.msra.mxu0 %v2579
    %2581 = vmatprep.subr.mxu0 0.0
    %2582 = vmatpush2.msra.mxu0 0.0
    %2583 = vmatprep.subr.mxu0 0.0
    %2584 = vmatpush2.msra.mxu0 0.0
    %2585 = vmatprep.subr.mxu0 0.0
    %2586 = vmatpush2.msra.mxu0 0.0
    %2587 = vmatprep.subr.mxu0 0.0
    %2588 = vmatpush2.msra.mxu0 0.0
    %2589 = vmatprep.subr.mxu0 0.0
    %2590 = vmatpush2.msra.mxu0 0.0
    %2591 = vmatprep.subr.mxu0 0.0
    %2592 = vmatpush2.msra.mxu0 0.0
    %2593 = vmatprep.subr.mxu0 0.0
    %2594 = vmatpush2.msra.mxu0 0.0
    %2595 = vmatprep.subr.mxu0 0.0
    %2596 = vmatpush2.msra.mxu0 0.0
    %2597 = vmatprep.subr.mxu0 0.0
    %2598 = vmatpush2.msra.mxu0 0.0
    %2599 = vmatprep.subr.mxu0 0.0
    %2600 = vmatpush2.msra.mxu0 0.0
    %2601 = vmatprep.subr.mxu0 0.0
    %2602 = vmatpush2.msra.mxu0 0.0
    %2603 = vmatprep.subr.mxu0 0.0
    %2604 = vmatpush2.msra.mxu0 0.0
    %2605 = vmatprep.subr.mxu0 0.0
    %2606 = vmatpush2.msra.mxu0 0.0
    %2607 = vmatprep.subr.mxu0 0.0
    %2608 = vmatpush2.msra.mxu0 0.0
    %2609 = vmatprep.subr.mxu0 0.0
    %2610 = vmatpush2.msra.mxu0 0.0
    %2611 = vmatprep.subr.mxu0 0.0
    %2612 = vmatpush2.msra.mxu0 0.0
    %2613 = vmatprep.mubr.f32.mxu0 0.0
    %v2614 = vand.u32 %v2543, 4294901760
    %v2615 = vsub.f32 %v2543, %v2614
    %v2616 = vand.u32 %v2615, 4294901760
    %v2617 = vsub.f32 %v2615, %v2616
    %v2618 = vand.u32 %v2617, 4294901760
    %2619 = vmatmul.mubr.f32.gmra.mxu0 %v2618
    %v2620 = vpop.f32.mrf.mxu0
    %v2621 = vadd.f32 %v2539, %v2620
    %v2622 = vpop.f32.mrf.mxu0
    %2623 = vdwg.mxu0
    %2624 = vmatprep.subr.mxu0 0.0
    %2625 = vmatpush1.msra.mxu0 0.0
    %2626 = vmatprep.subr.mxu0 0.0
    %2627 = vmatpush1.msra.mxu0 0.0
    %2628 = vmatprep.subr.mxu0 0.0
    %2629 = vmatpush1.msra.mxu0 0.0
    %2630 = vmatprep.subr.mxu0 0.0
    %2631 = vmatpush1.msra.mxu0 0.0
    %2632 = vmatprep.subr.mxu0 0.0
    %2633 = vmatpush1.msra.mxu0 0.0
    %2634 = vmatprep.subr.mxu0 0.0
    %2635 = vmatpush1.msra.mxu0 0.0
    %2636 = vmatprep.subr.mxu0 0.0
    %2637 = vmatpush1.msra.mxu0 0.0
    %2638 = vmatprep.subr.mxu0 0.0
    %2639 = vmatpush1.msra.mxu0 0.0
    %2640 = vmatprep.subr.mxu0 0.0
    %2641 = vmatpush1.msra.mxu0 0.0
    %2642 = vmatprep.subr.mxu0 0.0
    %2643 = vmatpush1.msra.mxu0 0.0
    %2644 = vmatprep.subr.mxu0 0.0
    %2645 = vmatpush1.msra.mxu0 0.0
    %2646 = vmatprep.subr.mxu0 0.0
    %2647 = vmatpush1.msra.mxu0 0.0
    %2648 = vmatprep.subr.mxu0 0.0
    %v2649 = vand.u32 %v2049, 4294901760
    %v2650 = vsub.f32 %v2049, %v2649
    %v2651 = vand.u32 %v2650, 4294901760
    %v2652 = vsub.f32 %v2650, %v2651
    %v2653 = vand.u32 %v2652, 4294901760
    %2654 = vmatpush1.msra.mxu0 %v2653
    %2655 = vmatprep.subr.mxu0 0.0
    %v2656 = vand.u32 %v2048, 4294901760
    %v2657 = vsub.f32 %v2048, %v2656
    %v2658 = vand.u32 %v2657, 4294901760
    %v2659 = vsub.f32 %v2657, %v2658
    %v2660 = vand.u32 %v2659, 4294901760
    %2661 = vmatpush1.msra.mxu0 %v2660
    %2662 = vmatprep.subr.mxu0 0.0
    %v2663 = vand.u32 %v2047, 4294901760
    %v2664 = vsub.f32 %v2047, %v2663
    %v2665 = vand.u32 %v2664, 4294901760
    %v2666 = vsub.f32 %v2664, %v2665
    %v2667 = vand.u32 %v2666, 4294901760
    %2668 = vmatpush1.msra.mxu0 %v2667
    %2669 = vmatprep.subr.mxu0 0.0
    %v2670 = vand.u32 %v2046, 4294901760
    %v2671 = vsub.f32 %v2046, %v2670
    %v2672 = vand.u32 %v2671, 4294901760
    %v2673 = vsub.f32 %v2671, %v2672
    %v2674 = vand.u32 %v2673, 4294901760
    %2675 = vmatpush1.msra.mxu0 %v2674
    %2676 = vmatprep.subr.mxu0 0.0
    %2677 = vmatpush2.msra.mxu0 0.0
    %2678 = vmatprep.subr.mxu0 0.0
    %2679 = vmatpush2.msra.mxu0 0.0
    %2680 = vmatprep.subr.mxu0 0.0
    %2681 = vmatpush2.msra.mxu0 0.0
    %2682 = vmatprep.subr.mxu0 0.0
    %2683 = vmatpush2.msra.mxu0 0.0
    %2684 = vmatprep.subr.mxu0 0.0
    %2685 = vmatpush2.msra.mxu0 0.0
    %2686 = vmatprep.subr.mxu0 0.0
    %2687 = vmatpush2.msra.mxu0 0.0
    %2688 = vmatprep.subr.mxu0 0.0
    %2689 = vmatpush2.msra.mxu0 0.0
    %2690 = vmatprep.subr.mxu0 0.0
    %2691 = vmatpush2.msra.mxu0 0.0
    %2692 = vmatprep.subr.mxu0 0.0
    %2693 = vmatpush2.msra.mxu0 0.0
    %2694 = vmatprep.subr.mxu0 0.0
    %2695 = vmatpush2.msra.mxu0 0.0
    %2696 = vmatprep.subr.mxu0 0.0
    %2697 = vmatpush2.msra.mxu0 0.0
    %2698 = vmatprep.subr.mxu0 0.0
    %2699 = vmatpush2.msra.mxu0 0.0
    %2700 = vmatprep.subr.mxu0 0.0
    %2701 = vmatpush2.msra.mxu0 0.0
    %2702 = vmatprep.subr.mxu0 0.0
    %2703 = vmatpush2.msra.mxu0 0.0
    %2704 = vmatprep.subr.mxu0 0.0
    %2705 = vmatpush2.msra.mxu0 0.0
    %2706 = vmatprep.subr.mxu0 0.0
    %2707 = vmatpush2.msra.mxu0 0.0
    %2708 = vmatprep.mubr.f32.mxu0 0.0
    %v2709 = vand.u32 %v2543, 4294901760
    %2710 = vmatmul.mubr.f32.gmra.mxu0 %v2709
    %v2711 = vpop.f32.mrf.mxu0
    %v2712 = vadd.f32 %v2621, %v2711
    %v2713 = vpop.f32.mrf.mxu0
    %2714 = vdwg.mxu0
    %2715 = vmatprep.subr.mxu0 0.0
    %2716 = vmatpush1.msra.mxu0 0.0
    %2717 = vmatprep.subr.mxu0 0.0
    %2718 = vmatpush1.msra.mxu0 0.0
    %2719 = vmatprep.subr.mxu0 0.0
    %2720 = vmatpush1.msra.mxu0 0.0
    %2721 = vmatprep.subr.mxu0 0.0
    %2722 = vmatpush1.msra.mxu0 0.0
    %2723 = vmatprep.subr.mxu0 0.0
    %2724 = vmatpush1.msra.mxu0 0.0
    %2725 = vmatprep.subr.mxu0 0.0
    %2726 = vmatpush1.msra.mxu0 0.0
    %2727 = vmatprep.subr.mxu0 0.0
    %2728 = vmatpush1.msra.mxu0 0.0
    %2729 = vmatprep.subr.mxu0 0.0
    %2730 = vmatpush1.msra.mxu0 0.0
    %2731 = vmatprep.subr.mxu0 0.0
    %2732 = vmatpush1.msra.mxu0 0.0
    %2733 = vmatprep.subr.mxu0 0.0
    %2734 = vmatpush1.msra.mxu0 0.0
    %2735 = vmatprep.subr.mxu0 0.0
    %2736 = vmatpush1.msra.mxu0 0.0
    %2737 = vmatprep.subr.mxu0 0.0
    %2738 = vmatpush1.msra.mxu0 0.0
    %2739 = vmatprep.subr.mxu0 0.0
    %v2740 = vand.u32 %v2049, 4294901760
    %v2741 = vsub.f32 %v2049, %v2740
    %2742 = vmatpush1.msra.mxu0 %v2741
    %2743 = vmatprep.subr.mxu0 0.0
    %v2744 = vand.u32 %v2048, 4294901760
    %v2745 = vsub.f32 %v2048, %v2744
    %2746 = vmatpush1.msra.mxu0 %v2745
    %2747 = vmatprep.subr.mxu0 0.0
    %v2748 = vand.u32 %v2047, 4294901760
    %v2749 = vsub.f32 %v2047, %v2748
    %2750 = vmatpush1.msra.mxu0 %v2749
    %2751 = vmatprep.subr.mxu0 0.0
    %v2752 = vand.u32 %v2046, 4294901760
    %v2753 = vsub.f32 %v2046, %v2752
    %2754 = vmatpush1.msra.mxu0 %v2753
    %2755 = vmatprep.subr.mxu0 0.0
    %2756 = vmatpush2.msra.mxu0 0.0
    %2757 = vmatprep.subr.mxu0 0.0
    %2758 = vmatpush2.msra.mxu0 0.0
    %2759 = vmatprep.subr.mxu0 0.0
    %2760 = vmatpush2.msra.mxu0 0.0
    %2761 = vmatprep.subr.mxu0 0.0
    %2762 = vmatpush2.msra.mxu0 0.0
    %2763 = vmatprep.subr.mxu0 0.0
    %2764 = vmatpush2.msra.mxu0 0.0
    %2765 = vmatprep.subr.mxu0 0.0
    %2766 = vmatpush2.msra.mxu0 0.0
    %2767 = vmatprep.subr.mxu0 0.0
    %2768 = vmatpush2.msra.mxu0 0.0
    %2769 = vmatprep.subr.mxu0 0.0
    %2770 = vmatpush2.msra.mxu0 0.0
    %2771 = vmatprep.subr.mxu0 0.0
    %2772 = vmatpush2.msra.mxu0 0.0
    %2773 = vmatprep.subr.mxu0 0.0
    %2774 = vmatpush2.msra.mxu0 0.0
    %2775 = vmatprep.subr.mxu0 0.0
    %2776 = vmatpush2.msra.mxu0 0.0
    %2777 = vmatprep.subr.mxu0 0.0
    %2778 = vmatpush2.msra.mxu0 0.0
    %2779 = vmatprep.subr.mxu0 0.0
    %2780 = vmatpush2.msra.mxu0 0.0
    %2781 = vmatprep.subr.mxu0 0.0
    %2782 = vmatpush2.msra.mxu0 0.0
    %2783 = vmatprep.subr.mxu0 0.0
    %2784 = vmatpush2.msra.mxu0 0.0
    %2785 = vmatprep.subr.mxu0 0.0
    %2786 = vmatpush2.msra.mxu0 0.0
    %2787 = vmatprep.mubr.f32.mxu0 0.0
    %v2788 = vand.u32 %v2543, 4294901760
    %v2789 = vsub.f32 %v2543, %v2788
    %2790 = vmatmul.mubr.f32.gmra.mxu0 %v2789
    %v2791 = vpop.f32.mrf.mxu0
    %v2792 = vadd.f32 %v2712, %v2791
    %v2793 = vpop.f32.mrf.mxu0
    %2794 = vdwg.mxu0
    %2795 = vmatprep.subr.mxu0 0.0
    %2796 = vmatpush1.msra.mxu0 0.0
    %2797 = vmatprep.subr.mxu0 0.0
    %2798 = vmatpush1.msra.mxu0 0.0
    %2799 = vmatprep.subr.mxu0 0.0
    %2800 = vmatpush1.msra.mxu0 0.0
    %2801 = vmatprep.subr.mxu0 0.0
    %2802 = vmatpush1.msra.mxu0 0.0
    %2803 = vmatprep.subr.mxu0 0.0
    %2804 = vmatpush1.msra.mxu0 0.0
    %2805 = vmatprep.subr.mxu0 0.0
    %2806 = vmatpush1.msra.mxu0 0.0
    %2807 = vmatprep.subr.mxu0 0.0
    %2808 = vmatpush1.msra.mxu0 0.0
    %2809 = vmatprep.subr.mxu0 0.0
    %2810 = vmatpush1.msra.mxu0 0.0
    %2811 = vmatprep.subr.mxu0 0.0
    %2812 = vmatpush1.msra.mxu0 0.0
    %2813 = vmatprep.subr.mxu0 0.0
    %2814 = vmatpush1.msra.mxu0 0.0
    %2815 = vmatprep.subr.mxu0 0.0
    %2816 = vmatpush1.msra.mxu0 0.0
    %2817 = vmatprep.subr.mxu0 0.0
    %2818 = vmatpush1.msra.mxu0 0.0
    %2819 = vmatprep.subr.mxu0 0.0
    %v2820 = vand.u32 %v2049, 4294901760
    %2821 = vmatpush1.msra.mxu0 %v2820
    %2822 = vmatprep.subr.mxu0 0.0
    %v2823 = vand.u32 %v2048, 4294901760
    %2824 = vmatpush1.msra.mxu0 %v2823
    %2825 = vmatprep.subr.mxu0 0.0
    %v2826 = vand.u32 %v2047, 4294901760
    %2827 = vmatpush1.msra.mxu0 %v2826
    %2828 = vmatprep.subr.mxu0 0.0
    %v2829 = vand.u32 %v2046, 4294901760
    %2830 = vmatpush1.msra.mxu0 %v2829
    %2831 = vmatprep.subr.mxu0 0.0
    %2832 = vmatpush2.msra.mxu0 0.0
    %2833 = vmatprep.subr.mxu0 0.0
    %2834 = vmatpush2.msra.mxu0 0.0
    %2835 = vmatprep.subr.mxu0 0.0
    %2836 = vmatpush2.msra.mxu0 0.0
    %2837 = vmatprep.subr.mxu0 0.0
    %2838 = vmatpush2.msra.mxu0 0.0
    %2839 = vmatprep.subr.mxu0 0.0
    %2840 = vmatpush2.msra.mxu0 0.0
    %2841 = vmatprep.subr.mxu0 0.0
    %2842 = vmatpush2.msra.mxu0 0.0
    %2843 = vmatprep.subr.mxu0 0.0
    %2844 = vmatpush2.msra.mxu0 0.0
    %2845 = vmatprep.subr.mxu0 0.0
    %2846 = vmatpush2.msra.mxu0 0.0
    %2847 = vmatprep.subr.mxu0 0.0
    %2848 = vmatpush2.msra.mxu0 0.0
    %2849 = vmatprep.subr.mxu0 0.0
    %2850 = vmatpush2.msra.mxu0 0.0
    %2851 = vmatprep.subr.mxu0 0.0
    %2852 = vmatpush2.msra.mxu0 0.0
    %2853 = vmatprep.subr.mxu0 0.0
    %2854 = vmatpush2.msra.mxu0 0.0
    %2855 = vmatprep.subr.mxu0 0.0
    %2856 = vmatpush2.msra.mxu0 0.0
    %2857 = vmatprep.subr.mxu0 0.0
    %2858 = vmatpush2.msra.mxu0 0.0
    %2859 = vmatprep.subr.mxu0 0.0
    %2860 = vmatpush2.msra.mxu0 0.0
    %2861 = vmatprep.subr.mxu0 0.0
    %2862 = vmatpush2.msra.mxu0 0.0
    %2863 = vmatprep.mubr.f32.mxu0 0.0
    %v2864 = vand.u32 %v2543, 4294901760
    %v2865 = vsub.f32 %v2543, %v2864
    %v2866 = vand.u32 %v2865, 4294901760
    %2867 = vmatmul.mubr.f32.gmra.mxu0 %v2866
    %v2868 = vpop.f32.mrf.mxu0
    %v2869 = vadd.f32 %v2792, %v2868
    %v2870 = vpop.f32.mrf.mxu0
    %2871 = vdwg.mxu0
    %2872 = vmatprep.subr.mxu0 0.0
    %2873 = vmatpush1.msra.mxu0 0.0
    %2874 = vmatprep.subr.mxu0 0.0
    %2875 = vmatpush1.msra.mxu0 0.0
    %2876 = vmatprep.subr.mxu0 0.0
    %2877 = vmatpush1.msra.mxu0 0.0
    %2878 = vmatprep.subr.mxu0 0.0
    %2879 = vmatpush1.msra.mxu0 0.0
    %2880 = vmatprep.subr.mxu0 0.0
    %2881 = vmatpush1.msra.mxu0 0.0
    %2882 = vmatprep.subr.mxu0 0.0
    %2883 = vmatpush1.msra.mxu0 0.0
    %2884 = vmatprep.subr.mxu0 0.0
    %2885 = vmatpush1.msra.mxu0 0.0
    %2886 = vmatprep.subr.mxu0 0.0
    %2887 = vmatpush1.msra.mxu0 0.0
    %2888 = vmatprep.subr.mxu0 0.0
    %2889 = vmatpush1.msra.mxu0 0.0
    %2890 = vmatprep.subr.mxu0 0.0
    %2891 = vmatpush1.msra.mxu0 0.0
    %2892 = vmatprep.subr.mxu0 0.0
    %2893 = vmatpush1.msra.mxu0 0.0
    %2894 = vmatprep.subr.mxu0 0.0
    %2895 = vmatpush1.msra.mxu0 0.0
    %2896 = vmatprep.subr.mxu0 0.0
    %v2897 = vand.u32 %v2049, 4294901760
    %v2898 = vsub.f32 %v2049, %v2897
    %v2899 = vand.u32 %v2898, 4294901760
    %2900 = vmatpush1.msra.mxu0 %v2899
    %2901 = vmatprep.subr.mxu0 0.0
    %v2902 = vand.u32 %v2048, 4294901760
    %v2903 = vsub.f32 %v2048, %v2902
    %v2904 = vand.u32 %v2903, 4294901760
    %2905 = vmatpush1.msra.mxu0 %v2904
    %2906 = vmatprep.subr.mxu0 0.0
    %v2907 = vand.u32 %v2047, 4294901760
    %v2908 = vsub.f32 %v2047, %v2907
    %v2909 = vand.u32 %v2908, 4294901760
    %2910 = vmatpush1.msra.mxu0 %v2909
    %2911 = vmatprep.subr.mxu0 0.0
    %v2912 = vand.u32 %v2046, 4294901760
    %v2913 = vsub.f32 %v2046, %v2912
    %v2914 = vand.u32 %v2913, 4294901760
    %2915 = vmatpush1.msra.mxu0 %v2914
    %2916 = vmatprep.subr.mxu0 0.0
    %2917 = vmatpush2.msra.mxu0 0.0
    %2918 = vmatprep.subr.mxu0 0.0
    %2919 = vmatpush2.msra.mxu0 0.0
    %2920 = vmatprep.subr.mxu0 0.0
    %2921 = vmatpush2.msra.mxu0 0.0
    %2922 = vmatprep.subr.mxu0 0.0
    %2923 = vmatpush2.msra.mxu0 0.0
    %2924 = vmatprep.subr.mxu0 0.0
    %2925 = vmatpush2.msra.mxu0 0.0
    %2926 = vmatprep.subr.mxu0 0.0
    %2927 = vmatpush2.msra.mxu0 0.0
    %2928 = vmatprep.subr.mxu0 0.0
    %2929 = vmatpush2.msra.mxu0 0.0
    %2930 = vmatprep.subr.mxu0 0.0
    %2931 = vmatpush2.msra.mxu0 0.0
    %2932 = vmatprep.subr.mxu0 0.0
    %2933 = vmatpush2.msra.mxu0 0.0
    %2934 = vmatprep.subr.mxu0 0.0
    %2935 = vmatpush2.msra.mxu0 0.0
    %2936 = vmatprep.subr.mxu0 0.0
    %2937 = vmatpush2.msra.mxu0 0.0
    %2938 = vmatprep.subr.mxu0 0.0
    %2939 = vmatpush2.msra.mxu0 0.0
    %2940 = vmatprep.subr.mxu0 0.0
    %2941 = vmatpush2.msra.mxu0 0.0
    %2942 = vmatprep.subr.mxu0 0.0
    %2943 = vmatpush2.msra.mxu0 0.0
    %2944 = vmatprep.subr.mxu0 0.0
    %2945 = vmatpush2.msra.mxu0 0.0
    %2946 = vmatprep.subr.mxu0 0.0
    %2947 = vmatpush2.msra.mxu0 0.0
    %2948 = vmatprep.mubr.f32.mxu0 0.0
    %v2949 = vand.u32 %v2543, 4294901760
    %2950 = vmatmul.mubr.f32.gmra.mxu0 %v2949
    %v2951 = vpop.f32.mrf.mxu0
    %v2952 = vadd.f32 %v2869, %v2951
    %v2953 = vpop.f32.mrf.mxu0
    %2954 = vdwg.mxu0
    %2955 = vmatprep.subr.mxu0 0.0
    %2956 = vmatpush1.msra.mxu0 0.0
    %2957 = vmatprep.subr.mxu0 0.0
    %2958 = vmatpush1.msra.mxu0 0.0
    %2959 = vmatprep.subr.mxu0 0.0
    %2960 = vmatpush1.msra.mxu0 0.0
    %2961 = vmatprep.subr.mxu0 0.0
    %2962 = vmatpush1.msra.mxu0 0.0
    %2963 = vmatprep.subr.mxu0 0.0
    %2964 = vmatpush1.msra.mxu0 0.0
    %2965 = vmatprep.subr.mxu0 0.0
    %2966 = vmatpush1.msra.mxu0 0.0
    %2967 = vmatprep.subr.mxu0 0.0
    %2968 = vmatpush1.msra.mxu0 0.0
    %2969 = vmatprep.subr.mxu0 0.0
    %2970 = vmatpush1.msra.mxu0 0.0
    %2971 = vmatprep.subr.mxu0 0.0
    %2972 = vmatpush1.msra.mxu0 0.0
    %2973 = vmatprep.subr.mxu0 0.0
    %2974 = vmatpush1.msra.mxu0 0.0
    %2975 = vmatprep.subr.mxu0 0.0
    %2976 = vmatpush1.msra.mxu0 0.0
    %2977 = vmatprep.subr.mxu0 0.0
    %2978 = vmatpush1.msra.mxu0 0.0
    %2979 = vmatprep.subr.mxu0 0.0
    %v2980 = vand.u32 %v2049, 4294901760
    %2981 = vmatpush1.msra.mxu0 %v2980
    %2982 = vmatprep.subr.mxu0 0.0
    %v2983 = vand.u32 %v2048, 4294901760
    %2984 = vmatpush1.msra.mxu0 %v2983
    %2985 = vmatprep.subr.mxu0 0.0
    %v2986 = vand.u32 %v2047, 4294901760
    %2987 = vmatpush1.msra.mxu0 %v2986
    %2988 = vmatprep.subr.mxu0 0.0
    %v2989 = vand.u32 %v2046, 4294901760
    %2990 = vmatpush1.msra.mxu0 %v2989
    %2991 = vmatprep.subr.mxu0 0.0
    %2992 = vmatpush2.msra.mxu0 0.0
    %2993 = vmatprep.subr.mxu0 0.0
    %2994 = vmatpush2.msra.mxu0 0.0
    %2995 = vmatprep.subr.mxu0 0.0
    %2996 = vmatpush2.msra.mxu0 0.0
    %2997 = vmatprep.subr.mxu0 0.0
    %2998 = vmatpush2.msra.mxu0 0.0
    %2999 = vmatprep.subr.mxu0 0.0
    %3000 = vmatpush2.msra.mxu0 0.0
    %3001 = vmatprep.subr.mxu0 0.0
    %3002 = vmatpush2.msra.mxu0 0.0
    %3003 = vmatprep.subr.mxu0 0.0
    %3004 = vmatpush2.msra.mxu0 0.0
    %3005 = vmatprep.subr.mxu0 0.0
    %3006 = vmatpush2.msra.mxu0 0.0
    %3007 = vmatprep.subr.mxu0 0.0
    %3008 = vmatpush2.msra.mxu0 0.0
    %3009 = vmatprep.subr.mxu0 0.0
    %3010 = vmatpush2.msra.mxu0 0.0
    %3011 = vmatprep.subr.mxu0 0.0
    %3012 = vmatpush2.msra.mxu0 0.0
    %3013 = vmatprep.subr.mxu0 0.0
    %3014 = vmatpush2.msra.mxu0 0.0
    %3015 = vmatprep.subr.mxu0 0.0
    %3016 = vmatpush2.msra.mxu0 0.0
    %3017 = vmatprep.subr.mxu0 0.0
    %3018 = vmatpush2.msra.mxu0 0.0
    %3019 = vmatprep.subr.mxu0 0.0
    %3020 = vmatpush2.msra.mxu0 0.0
    %3021 = vmatprep.subr.mxu0 0.0
    %3022 = vmatpush2.msra.mxu0 0.0
    %3023 = vmatprep.mubr.f32.mxu0 0.0
    %v3024 = vand.u32 %v2543, 4294901760
    %3025 = vmatmul.mubr.f32.gmra.mxu0 %v3024
    %v3026 = vpop.f32.mrf.mxu0
    %v3027 = vadd.f32 %v2952, %v3026
    %v3028 = vpop.f32.mrf.mxu0
    %3029 = vdwg.mxu0
    %v3030 = vld [vmem:[%s10] sm:$0x1]
    %v3031 = vadd.f32 %v3027, %v3030
    %vm3032 = vcmask 516096
    %v3033 = vsel %vm3032, %v3031, -inf
    %3034 = vmax.xlane.f32.xlu0 %v3033
    %v3035 = vpop.xlane.xlu0 %3034
    %v3036 = vsub.f32 %v3031, %v3035
    %v3037 = vmul.f32 %v3036, 1.442695
    %v3038 = vpow.pop %v3037
    %v3039 = vsel %vm3032, %v3038, 0.0
    %3040 = vadd.xlane.f32.xlu0 %v3039
    %v3041 = vpop.xlane.xlu0 %3040
    %v3042 = vlog2.pop %v3041
    %v3043 = vmul.f32 %v3042, 0.6931472
    %v3044 = vsub.f32 %v3036, %v3043
    %3045 = vst.msk [vmem:[#allocation2] sm:$0x1] %vm3032, %v3044
    // Predicated region
    $region46: #{attention_decoder_decode.1} parent=1 // pred_check
      _
    $region47: #{attention_decoder_decode.1} parent=1 // pred_check_branch
      %3047 = sbr.rel (0) target = $region49
    $region48: #{attention_decoder_decode.1} parent=1 // pred_region
      %s3049 = ssub.s32 16, 16
      %3050 = vsyncadd [#allocation3], %s3049
      %s3052 = sshll.u32 [#allocation2], 4
      %s3053 = int_to_ptr.vmem [resolvable:$true] %s3052
      %3055 = dma.vmem_to_hbm [thread:$0]  %s3053, 16, %s11, [#allocation3]
    $region49: #{attention_decoder_decode.1} parent=1 // pred_fallthru
      _
    // Predicated region
    $region50: #{attention_decoder_decode.1} parent=1 // pred_check
      _
    $region51: #{attention_decoder_decode.1} parent=1 // pred_check_branch
      %3057 = sbr.rel (0) target = $region53
    $region52: #{attention_decoder_decode.1} parent=1 // pred_region
      %s3059 = ssub.s32 16, 16
      %3060 = vsyncadd [#allocation5], %s3059
      %s3062 = sshll.u32 [#allocation4], 4
      %s3063 = int_to_ptr.vmem [resolvable:$true] %s3062
      %3065 = dma.vmem_to_hbm [thread:$0]  %s3063, 16, %s12, [#allocation5]
    $region53: #{attention_decoder_decode.1} parent=1 // pred_fallthru
      _
    // Predicated region
    $region54: #{attention_decoder_decode.1} parent=1 // pred_check
      _
    $region55: #{attention_decoder_decode.1} parent=1 // pred_check_branch
      %3067 = sbr.rel (0) target = $region57
    $region56: #{attention_decoder_decode.1} parent=1 // pred_region
      %s3069 = ssub.s32 16, 16
      %3070 = vsyncadd [#allocation5], %s3069
      %s3072 = sshll.u32 [#allocation6], 4
      %s3073 = int_to_ptr.vmem [resolvable:$true] %s3072
      %3075 = dma.vmem_to_hbm [thread:$0]  %s3073, 16, %s13, [#allocation5]
    $region57: #{attention_decoder_decode.1} parent=1 // pred_fallthru
      _
    // Predicated region
    $region58: #{attention_decoder_decode.1} parent=1 // pred_check
      _
    $region59: #{attention_decoder_decode.1} parent=1 // pred_check_branch
      %3077 = sbr.rel (0) target = $region61
    $region60: #{attention_decoder_decode.1} parent=1 // pred_region
      %s3079 = ssub.s32 16, 16
      %3080 = vsyncadd [#allocation8], %s3079
      %s3082 = sshll.u32 [#allocation7], 4
      %s3083 = int_to_ptr.vmem [resolvable:$true] %s3082
      %3085 = dma.vmem_to_hbm [thread:$0]  %s3083, 16, %s14, [#allocation8]
    $region61: #{attention_decoder_decode.1} parent=1 // pred_fallthru
      _
    // Predicated region
    $region62: #{attention_decoder_decode.1} parent=1 // pred_check
      _
    $region63: #{attention_decoder_decode.1} parent=1 // pred_check_branch
      %3087 = sbr.rel (0) target = $region65
    $region64: #{attention_decoder_decode.1} parent=1 // pred_region
      %3088 = dma.done [#allocation3], 16
    $region65: #{attention_decoder_decode.1} parent=1 // pred_fallthru
      _
    // Predicated region
    $region66: #{attention_decoder_decode.1} parent=1 // pred_check
      _
    $region67: #{attention_decoder_decode.1} parent=1 // pred_check_branch
      %3090 = sbr.rel (0) target = $region69
    $region68: #{attention_decoder_decode.1} parent=1 // pred_region
      %3091 = dma.done [#allocation5], 16
    $region69: #{attention_decoder_decode.1} parent=1 // pred_fallthru
      _
    // Predicated region
    $region70: #{attention_decoder_decode.1} parent=1 // pred_check
      _
    $region71: #{attention_decoder_decode.1} parent=1 // pred_check_branch
      %3093 = sbr.rel (0) target = $region73
    $region72: #{attention_decoder_decode.1} parent=1 // pred_region
      %3094 = dma.done [#allocation5], 16
    $region73: #{attention_decoder_decode.1} parent=1 // pred_fallthru
      _
    // Predicated region
    $region74: #{attention_decoder_decode.1} parent=1 // pred_check
      _
    $region75: #{attention_decoder_decode.1} parent=1 // pred_check_branch
      %3096 = sbr.rel (0) target = $region77
    $region76: #{attention_decoder_decode.1} parent=1 // pred_region
      %3097 = dma.done [#allocation8], 16
    $region77: #{attention_decoder_decode.1} parent=1 // pred_fallthru
      _
    %3098 = vsyncpa [#allocation3], 1
    %3099 = vsyncpa [#allocation5], 1
    %3100 = vsyncpa [#allocation8], 1

</llo_original>
